<compile_context>
chip_gen: v7x
topology: tpu7x:2x2x1
jax: 0.10.0
libtpu: 0.0.40
codegen_flags: <defaults>
</compile_context>

<pallas_src>
import functools

import numpy as np
import jax
import jax.numpy as jnp
from jax.experimental import pallas as pl
from jax.experimental.pallas import tpu as pltpu


_OUT_LANES = 128        # lane-dense output width -> unmasked full-width stores
_MAX_TILE = 4096        # rows per grid step (amortizes ~0.35us per-step cost)
_MIN_SPLIT_TILE = 1024  # only split across 2 TCs (v7x) when tiles are this big


# ----------------------------------------------------------------------------
# Pallas kernel: fused (actor|critic) MLP + softmax + categorical stats,
# one batch tile per grid step.
# ----------------------------------------------------------------------------
def fused_actor_critic_kernel(state_ref, action_ref, *refs,
                              num_layers, action_dim, compute_dtype, exact):
    out_ref = refs[-1]            # (TB, 128) f32 output slab
    wb = refs[:-1]                # w1, b1, w2, b2, ..., wL, bL (fused weights)

    # f32 state cast to the matmul dtype IN-KERNEL (no extra wrapper HBM pass).
    h = state_ref[...].astype(compute_dtype)              # (TB, S)
    for i in range(num_layers - 1):
        w_ref, b_ref = wb[2 * i], wb[2 * i + 1]
        z = jnp.dot(h, w_ref[...], preferred_element_type=jnp.float32) + b_ref[...]
        h = jnp.maximum(z, 0.0).astype(compute_dtype)

    w_ref, b_ref = wb[2 * (num_layers - 1)], wb[2 * (num_layers - 1) + 1]
    head = jnp.dot(h, w_ref[...], preferred_element_type=jnp.float32) + b_ref[...]
    # head: (TB, A + 1) f32 -> actor logits in [:, :A], critic value in [:, A]

    logits = head[:, :action_dim]                          # (TB, A)
    value = head[:, action_dim:action_dim + 1]             # (TB, 1)

    # ---- softmax (dim=-1), numerically stable -------------------------------
    m = jnp.max(logits, axis=-1, keepdims=True)
    e = jnp.exp(logits - m)
    denom = jnp.sum(e, axis=-1, keepdims=True)
    if exact:
        probs = e / denom                                  # exact (f32 path)
    else:
        # NOTE: approx reciprocal biases probs/entropy by ~1e-3 rel; log_prob
        # below uses the exact log-softmax path (documented inconsistency).
        probs = e * pl.reciprocal(denom, approx=True)
    log_probs = (logits - m) - jnp.log(denom)              # exact log-softmax

    # ---- Categorical(probs).log_prob(action) via one-hot; entropy -----------
    tb = logits.shape[0]
    act = action_ref[...]                                  # (TB, 1) int32
    col = jax.lax.broadcasted_iota(jnp.int32, (tb, action_dim), 1)
    onehot = (col == act).astype(jnp.float32)
    logp = jnp.sum(onehot * log_probs, axis=-1, keepdims=True)   # (TB, 1)
    ent = -jnp.sum(probs * log_probs, axis=-1, keepdims=True)    # (TB, 1)

    # ---- lane-dense packed store: cols 0/1/2 = logp / value / entropy -------
    # Single nested-where select chain (fewer VALU ops than where+where+add).
    # TODO(synk): for very large B, a lane-major (3, B) output layout would cut
    # writeback bytes ~40x; kept the known-good 128-lane slab for robustness.
    lane = jax.lax.broadcasted_iota(jnp.int32, (tb, out_ref.shape[-1]), 1)
    out_ref[...] = jnp.where(lane == 0, logp,
                             jnp.where(lane == 1, value,
                                       jnp.where(lane == 2, ent, 0.0)))


# ----------------------------------------------------------------------------
# Parameter fusion (done ONCE, outside the per-call hot path).
# torch (out, in) layout -> fused (in, out) weights; block-diagonal beyond
# layer 1; concatenated biases.
# ----------------------------------------------------------------------------
def _block_diag(a, b):
    out = jnp.zeros((a.shape[0] + b.shape[0], a.shape[1] + b.shape[1]), a.dtype)
    out = out.at[:a.shape[0], :a.shape[1]].set(a)
    out = out.at[a.shape[0]:, a.shape[1]:].set(b)
    return out


def fuse_params(actor_params, critic_params, compute_dtype=jnp.bfloat16):
    assert len(actor_params) == len(critic_params), \
        "fused kernel assumes equal actor/critic depth"
    # TODO(synk): unequal actor/critic depths would need per-network kernels.
    weights, biases = [], []
    for i, ((wa, ba), (wc, bc)) in enumerate(zip(actor_params, critic_params)):
        wa_t, wc_t = wa.T, wc.T                            # (in, out)
        if i == 0:
            w = jnp.concatenate([wa_t, wc_t], axis=1)      # shared input features
        else:
            w = _block_diag(wa_t, wc_t)
        b = jnp.concatenate([ba, bc])[None, :]
        weights.append(w.astype(compute_dtype))
        biases.append(b.astype(jnp.float32))
    action_dim = actor_params[-1][0].shape[0]
    return {"weights": weights, "biases": biases,
            "action_dim": action_dim, "compute_dtype": compute_dtype}


# ----------------------------------------------------------------------------
# Generation-aware tiling + VMEM budgeting
# ----------------------------------------------------------------------------
def _tensorcores_per_chip():
    # v7x: 2 TensorCores/chip; v5e/v6e: 1.  Defensive default = 1.
    try:
        kind = jax.devices()[0].device_kind.lower()
    except Exception:
        return 1
    return 2 if ("v7" in kind or "tpu7" in kind) else 1


def _pick_tiling(batch, tensorcores):
    """Single whole-batch tile on 1-TC chips; split across cores only when
    each tile has enough work (>= _MIN_SPLIT_TILE rows); cap tile at 4096."""
    n_tiles = int(pl.cdiv(batch, _MAX_TILE))
    if tensorcores >= 2 and batch >= 2 * _MIN_SPLIT_TILE:
        n_tiles = max(n_tiles, 2)
    n_tiles = max(n_tiles, 1)
    tile = -(-batch // n_tiles)              # ceil
    tile = -(-tile // 8) * 8                 # sublane multiple
    b_pad = tile * n_tiles
    return tile, n_tiles, b_pad


def _padded_bytes(rows, cols, itemsize):
    # conservative (8, 128) VMEM tile padding estimate
    return (-(-rows // 8) * 8) * (-(-cols // 128) * 128) * itemsize


# ----------------------------------------------------------------------------
# Wrapper: batch-tiled pallas_call with lane-dense output slab.
# ----------------------------------------------------------------------------
def actor_critic_evaluate(state, action, fused):
    weights = fused["weights"]
    biases = fused["biases"]
    action_dim = fused["action_dim"]
    compute_dtype = fused["compute_dtype"]
    num_layers = len(weights)

    B, S = state.shape
    tile, n_tiles, b_pad = _pick_tiling(B, _tensorcores_per_chip())

    state = state.astype(jnp.float32)
    action = action.astype(jnp.int32).reshape(B, 1)
    if b_pad != B:
        # padded rows (zero state / action 0) produce garbage stats that are
        # sliced off below; any future in-kernel batch reduction must mask them.
        state = jnp.zeros((b_pad, S), jnp.float32).at[:B].set(state)
        action = jnp.zeros((b_pad, 1), jnp.int32).at[:B].set(action)
    # else: common RL case (B divides the tiling) -> no host-side pad/copy pass.

    exact = bool(np.dtype(compute_dtype) == np.dtype(np.float32))

    wb_args = [x for pair in zip(weights, biases) for x in pair]

    # VMEM budget: double-buffered state/action/out blocks + weight blocks
    # (all lane-padded), sized explicitly so big tiles never hit the smaller
    # default scoped limit (v5e 16 MiB) and stay within v7x's 64 MiB physical.
    vmem_est = 2 * (_padded_bytes(tile, S, 4)
                    + _padded_bytes(tile, 1, 4)
                    + _padded_bytes(tile, _OUT_LANES, 4))
    vmem_est += 2 * sum(_padded_bytes(w.shape[0], w.shape[1], w.dtype.itemsize)
                        for w in weights)
    vmem_est += 2 * sum(_padded_bytes(b.shape[0], b.shape[1], 4) for b in biases)
    vmem_limit = int(min(max(2 * vmem_est, 32 << 20), 64 << 20))

    # advisory cost estimate for the XLA scheduler
    flops = int(sum(2 * b_pad * w.shape[0] * w.shape[1] for w in weights))
    transcendentals = int(b_pad * (action_dim + 2))
    bytes_accessed = int(state.size * 4 + action.size * 4
                         + sum(w.size * w.dtype.itemsize for w in weights)
                         + sum(b.size * 4 for b in biases)
                         + b_pad * _OUT_LANES * 4)

    kernel = functools.partial(
        fused_actor_critic_kernel, num_layers=num_layers,
        action_dim=action_dim, compute_dtype=compute_dtype, exact=exact)

    def _run(single_buffer_weights):
        in_specs = [
            pl.BlockSpec((tile, S), lambda i: (i, 0)),     # state tile
            pl.BlockSpec((tile, 1), lambda i: (i, 0)),     # action tile
        ]
        for arr in wb_args:
            if single_buffer_weights:
                # grid-constant block: single-buffer to save VMEM + DMA bookkeeping
                spec = pl.BlockSpec(arr.shape, lambda i: (0, 0),
                                    pipeline_mode=pl.Buffered(1))
            else:
                spec = pl.BlockSpec(arr.shape, lambda i: (0, 0))
            in_specs.append(spec)

        return pl.pallas_call(
            kernel,
            out_shape=jax.ShapeDtypeStruct((b_pad, _OUT_LANES), jnp.float32),
            grid_spec=pltpu.PrefetchScalarGridSpec(
                num_scalar_prefetch=0,
                grid=(n_tiles,),
                in_specs=in_specs,
                out_specs=pl.BlockSpec((tile, _OUT_LANES), lambda i: (i, 0)),
            ),
            compiler_params=pltpu.CompilerParams(
                dimension_semantics=("parallel",),
                vmem_limit_bytes=vmem_limit,
            ),
            cost_estimate=pl.CostEstimate(
                flops=flops, transcendentals=transcendentals,
                bytes_accessed=bytes_accessed),
        )(state, action, *wb_args)

    try:
        out = _run(single_buffer_weights=True)
    except Exception:
        # graceful fallback if this jax build rejects single-buffered blocks
        out = _run(single_buffer_weights=False)

    # PyTorch: Categorical.log_prob / entropy return (B,); critic returns (B, 1)
    logp = out[:B, 0]
    value = out[:B, 1:2]
    ent = out[:B, 2]
    return logp, value, ent


# ----------------------------------------------------------------------------
# Deterministic parameter init (matches nn.init.orthogonal_ + zero bias intent)
# ----------------------------------------------------------------------------
def orthogonal_init(key, out_dim, in_dim):
    n = max(out_dim, in_dim)
    a = jax.random.normal(key, (n, n), jnp.float32)
    q, r = jnp.linalg.qr(a)
    q = q * jnp.sign(jnp.diagonal(r))[None, :]
    return jnp.asarray(q[:out_dim, :in_dim], jnp.float32)   # torch (out, in)


def make_network_params(key, dims):
    params = []
    keys = jax.random.split(key, len(dims) - 1)
    for i in range(len(dims) - 1):
        w = orthogonal_init(keys[i], dims[i + 1], dims[i])   # (out, in)
        b = jnp.zeros((dims[i + 1],), jnp.float32)
        params.append((w, b))
    return params


# ----------------------------------------------------------------------------
# Pure-JAX reference (torch semantics) for sanity checks
# ----------------------------------------------------------------------------
def _ref_dot(x, w_t, compute_dtype):
    if np.dtype(compute_dtype) == np.dtype(np.float32):
        return jnp.dot(x, w_t, precision=jax.lax.Precision.HIGHEST)
    return jnp.dot(x.astype(compute_dtype), w_t.astype(compute_dtype),
                   preferred_element_type=jnp.float32)


def reference_evaluate(state, action, actor_params, critic_params,
                       compute_dtype=jnp.float32):
    def mlp(params, x):
        h = x
        for w, b in params[:-1]:
            h = jnp.maximum(_ref_dot(h, w.T, compute_dtype) + b, 0.0)
        w, b = params[-1]
        return _ref_dot(h, w.T, compute_dtype) + b

    logits = mlp(actor_params, state)
    probs = jax.nn.softmax(logits, axis=-1)
    logp_all = jnp.log(probs)
    logp = jnp.take_along_axis(logp_all, action, axis=-1)[:, 0]
    ent = -jnp.sum(probs * logp_all, axis=-1)
    value = mlp(critic_params, state)
    return logp, value, ent


if __name__ == "__main__":
    # Small shapes consistent with the module (no encoder, discrete actions).
    B, state_dim, action_dim = 256, 16, 8
    actor_layer = [32, 32]
    critic_layer = [32, 32]

    key = jax.random.PRNGKey(0)
    k_state, k_act, k_a, k_c = jax.random.split(key, 4)

    state = jax.random.normal(k_state, (B, state_dim), jnp.float32)
    action = jax.random.randint(k_act, (B, 1), 0, action_dim, jnp.int32)
    actor_params = make_network_params(k_a, [state_dim] + actor_layer + [action_dim])
    critic_params = make_network_params(k_c, [state_dim] + critic_layer + [1])

    # --- exactness path (f32 matmuls + exact softmax divide) -----------------
    fused_f32 = fuse_params(actor_params, critic_params, jnp.float32)
    logp32, value32, ent32 = actor_critic_evaluate(state, action, fused_f32)
    jax.block_until_ready((logp32, value32, ent32))
    r_logp, r_value, r_ent = reference_evaluate(
        state, action, actor_params, critic_params, jnp.float32)
    assert jnp.allclose(logp32, r_logp, atol=2e-3), "log_prob mismatch (f32)"
    assert jnp.allclose(value32, r_value, atol=2e-3), "value mismatch (f32)"
    assert jnp.allclose(ent32, r_ent, atol=1e-2), "entropy mismatch (f32)"

    # --- fast path (bf16 matmul operands, f32 accumulation) ------------------
    fused_bf16 = fuse_params(actor_params, critic_params, jnp.bfloat16)
    logp, value, ent = actor_critic_evaluate(state, action, fused_bf16)
    jax.block_until_ready((logp, value, ent))
    rb_logp, rb_value, rb_ent = reference_evaluate(
        state, action, actor_params, critic_params, jnp.bfloat16)
    assert jnp.allclose(logp, rb_logp, atol=5e-3), "log_prob mismatch (bf16)"
    assert jnp.allclose(value, rb_value, atol=5e-3), "value mismatch (bf16)"
    assert jnp.allclose(ent, rb_ent, atol=1e-2), "entropy mismatch (bf16)"

    # --- padding path (batch not a multiple of 8) -----------------------------
    Bo = 250
    lp_o, v_o, e_o = actor_critic_evaluate(state[:Bo], action[:Bo], fused_f32)
    jax.block_until_ready((lp_o, v_o, e_o))
    assert jnp.allclose(lp_o, r_logp[:Bo], atol=2e-3), "log_prob mismatch (pad)"
    assert jnp.allclose(v_o, r_value[:Bo], atol=2e-3), "value mismatch (pad)"
    assert jnp.allclose(e_o, r_ent[:Bo], atol=1e-2), "entropy mismatch (pad)"

    # TODO(synk): continuous (MultivariateNormal) branch, random sampling in
    # act(), and the optional MLP/CNN encoders are not implemented; only the
    # discrete evaluate() hot path is.
    print("KERNEL_OK")
</pallas_src>

<mosaic_0001>
module attributes {stable_mosaic.version = 11 : i64} {
  func.func @fused_actor_critic_kernel(%arg0: i32, %arg1: memref<256x16xf32, #tpu.memory_space<vmem>>, %arg2: memref<256x1xi32, #tpu.memory_space<vmem>>, %arg3: memref<16x64xf32, #tpu.memory_space<vmem>>, %arg4: memref<1x64xf32, #tpu.memory_space<vmem>>, %arg5: memref<64x64xf32, #tpu.memory_space<vmem>>, %arg6: memref<1x64xf32, #tpu.memory_space<vmem>>, %arg7: memref<64x9xf32, #tpu.memory_space<vmem>>, %arg8: memref<1x9xf32, #tpu.memory_space<vmem>>, %arg9: memref<256x128xf32, #tpu.memory_space<vmem>>) attributes {dimension_semantics = [#tpu.dimension_semantics<parallel>], iteration_bounds = array<i64: 1>, scalar_prefetch = 0 : i64, scratch_operands = 0 : i64, tpu.core_type = #tpu.core_type<tc>, window_params = [{transform_indices = @transform_0, window_bounds = array<i64: 256, 16>}, {transform_indices = @transform_1, window_bounds = array<i64: 256, 1>}, {pipeline_mode = #tpu.pipeline_mode<synchronous>, transform_indices = @transform_2, window_bounds = array<i64: 16, 64>}, {pipeline_mode = #tpu.pipeline_mode<synchronous>, transform_indices = @transform_3, window_bounds = array<i64: 1, 64>}, {pipeline_mode = #tpu.pipeline_mode<synchronous>, transform_indices = @transform_4, window_bounds = array<i64: 64, 64>}, {pipeline_mode = #tpu.pipeline_mode<synchronous>, transform_indices = @transform_5, window_bounds = array<i64: 1, 64>}, {pipeline_mode = #tpu.pipeline_mode<synchronous>, transform_indices = @transform_6, window_bounds = array<i64: 64, 9>}, {pipeline_mode = #tpu.pipeline_mode<synchronous>, transform_indices = @transform_7, window_bounds = array<i64: 1, 9>}, {transform_indices = @transform_8, window_bounds = array<i64: 256, 128>}]} {
    %c0 = arith.constant 0 : index
    %c0_0 = arith.constant 0 : index
    %0 = vector.load %arg1[%c0, %c0_0] : memref<256x16xf32, #tpu.memory_space<vmem>>, vector<256x16xf32>
    %c0_1 = arith.constant 0 : index
    %c0_2 = arith.constant 0 : index
    %1 = vector.load %arg3[%c0_1, %c0_2] : memref<16x64xf32, #tpu.memory_space<vmem>>, vector<16x64xf32>
    %cst = arith.constant dense<0.000000e+00> : vector<256x64xf32>
    %2 = tpu.matmul %0, %1, %cst {dimension_numbers = #tpu.dot_dimension_numbers<[1], [0], [0], [1], [0, 0, 1, 1], [], []>} : vector<256x16xf32>, vector<16x64xf32>, vector<256x64xf32> -> vector<256x64xf32>
    %c0_3 = arith.constant 0 : index
    %c0_4 = arith.constant 0 : index
    %3 = vector.load %arg4[%c0_3, %c0_4] : memref<1x64xf32, #tpu.memory_space<vmem>>, vector<1x64xf32>
    %4 = vector.broadcast %3 : vector<1x64xf32> to vector<256x64xf32>
    %5 = arith.addf %2, %4 : vector<256x64xf32>
    %cst_5 = arith.constant 0.000000e+00 : f32
    %6 = vector.broadcast %cst_5 : f32 to vector<256x64xf32>
    %7 = arith.maximumf %5, %6 : vector<256x64xf32>
    %c0_6 = arith.constant 0 : index
    %c0_7 = arith.constant 0 : index
    %8 = vector.load %arg5[%c0_6, %c0_7] : memref<64x64xf32, #tpu.memory_space<vmem>>, vector<64x64xf32>
    %cst_8 = arith.constant dense<0.000000e+00> : vector<256x64xf32>
    %9 = tpu.matmul %7, %8, %cst_8 {dimension_numbers = #tpu.dot_dimension_numbers<[1], [0], [0], [1], [0, 0, 1, 1], [], []>} : vector<256x64xf32>, vector<64x64xf32>, vector<256x64xf32> -> vector<256x64xf32>
    %c0_9 = arith.constant 0 : index
    %c0_10 = arith.constant 0 : index
    %10 = vector.load %arg6[%c0_9, %c0_10] : memref<1x64xf32, #tpu.memory_space<vmem>>, vector<1x64xf32>
    %11 = vector.broadcast %10 : vector<1x64xf32> to vector<256x64xf32>
    %12 = arith.addf %9, %11 : vector<256x64xf32>
    %cst_11 = arith.constant 0.000000e+00 : f32
    %13 = vector.broadcast %cst_11 : f32 to vector<256x64xf32>
    %14 = arith.maximumf %12, %13 : vector<256x64xf32>
    %c0_12 = arith.constant 0 : index
    %c0_13 = arith.constant 0 : index
    %15 = vector.load %arg7[%c0_12, %c0_13] : memref<64x9xf32, #tpu.memory_space<vmem>>, vector<64x9xf32>
    %cst_14 = arith.constant dense<0.000000e+00> : vector<256x9xf32>
    %16 = tpu.matmul %14, %15, %cst_14 {dimension_numbers = #tpu.dot_dimension_numbers<[1], [0], [0], [1], [0, 0, 1, 1], [], []>} : vector<256x64xf32>, vector<64x9xf32>, vector<256x9xf32> -> vector<256x9xf32>
    %c0_15 = arith.constant 0 : index
    %c0_16 = arith.constant 0 : index
    %17 = vector.load %arg8[%c0_15, %c0_16] : memref<1x9xf32, #tpu.memory_space<vmem>>, vector<1x9xf32>
    %18 = vector.broadcast %17 : vector<1x9xf32> to vector<256x9xf32>
    %19 = arith.addf %16, %18 : vector<256x9xf32>
    %20 = vector.extract_strided_slice %19 {offsets = [0, 0], sizes = [256, 8], strides = [1, 1]} : vector<256x9xf32> to vector<256x8xf32>
    %21 = vector.extract_strided_slice %19 {offsets = [0, 8], sizes = [256, 1], strides = [1, 1]} : vector<256x9xf32> to vector<256x1xf32>
    %cst_17 = arith.constant dense<0xFF800000> : vector<256xf32>
    %22 = vector.multi_reduction <maximumf>, %20, %cst_17 [1] : vector<256x8xf32> to vector<256xf32>
    %23 = vector.shape_cast %22 : vector<256xf32> to vector<256x1xf32>
    %24 = vector.broadcast %23 : vector<256x1xf32> to vector<256x8xf32>
    %25 = arith.subf %20, %24 : vector<256x8xf32>
    %26 = math.exp %25 : vector<256x8xf32>
    %cst_18 = arith.constant dense<0.000000e+00> : vector<256xf32>
    %27 = vector.multi_reduction <add>, %26, %cst_18 [1] : vector<256x8xf32> to vector<256xf32>
    %28 = vector.shape_cast %27 : vector<256xf32> to vector<256x1xf32>
    %29 = vector.broadcast %28 : vector<256x1xf32> to vector<256x8xf32>
    %30 = arith.divf %26, %29 : vector<256x8xf32>
    %31 = vector.broadcast %23 : vector<256x1xf32> to vector<256x8xf32>
    %32 = arith.subf %20, %31 : vector<256x8xf32>
    %33 = math.log %28 : vector<256x1xf32>
    %34 = vector.broadcast %33 : vector<256x1xf32> to vector<256x8xf32>
    %35 = arith.subf %32, %34 : vector<256x8xf32>
    %c0_19 = arith.constant 0 : index
    %c0_20 = arith.constant 0 : index
    %36 = vector.load %arg2[%c0_19, %c0_20] : memref<256x1xi32, #tpu.memory_space<vmem>>, vector<256x1xi32>
    %37 = tpu.iota {dimensions = array<i32: 1>} : vector<256x8xi32>
    %38 = vector.broadcast %36 : vector<256x1xi32> to vector<256x8xi32>
    %39 = arith.cmpi eq, %37, %38 : vector<256x8xi32>
    %40 = arith.extui %39 : vector<256x8xi1> to vector<256x8xi32>
    %41 = arith.sitofp %40 : vector<256x8xi32> to vector<256x8xf32>
    %42 = arith.mulf %41, %35 : vector<256x8xf32>
    %cst_21 = arith.constant dense<0.000000e+00> : vector<256xf32>
    %43 = vector.multi_reduction <add>, %42, %cst_21 [1] : vector<256x8xf32> to vector<256xf32>
    %44 = vector.shape_cast %43 : vector<256xf32> to vector<256x1xf32>
    %45 = arith.mulf %30, %35 : vector<256x8xf32>
    %cst_22 = arith.constant dense<0.000000e+00> : vector<256xf32>
    %46 = vector.multi_reduction <add>, %45, %cst_22 [1] : vector<256x8xf32> to vector<256xf32>
    %47 = vector.shape_cast %46 : vector<256xf32> to vector<256x1xf32>
    %cst_23 = arith.constant 0.000000e+00 : f32
    %48 = vector.broadcast %cst_23 : f32 to vector<256x1xf32>
    %49 = arith.subf %48, %47 : vector<256x1xf32>
    %50 = tpu.iota {dimensions = array<i32: 1>} : vector<256x128xi32>
    %c0_i32 = arith.constant 0 : i32
    %51 = vector.broadcast %c0_i32 : i32 to vector<256x128xi32>
    %52 = arith.cmpi eq, %50, %51 : vector<256x128xi32>
    %c1_i32 = arith.constant 1 : i32
    %53 = vector.broadcast %c1_i32 : i32 to vector<256x128xi32>
    %54 = arith.cmpi eq, %50, %53 : vector<256x128xi32>
    %c2_i32 = arith.constant 2 : i32
    %55 = vector.broadcast %c2_i32 : i32 to vector<256x128xi32>
    %56 = arith.cmpi eq, %50, %55 : vector<256x128xi32>
    %cst_24 = arith.constant 0.000000e+00 : f32
    %57 = vector.shape_cast %49 : vector<256x1xf32> to vector<256x1xf32>
    %58 = vector.broadcast %57 : vector<256x1xf32> to vector<256x128xf32>
    %59 = vector.broadcast %cst_24 : f32 to vector<256x128xf32>
    %60 = arith.select %56, %58, %59 : vector<256x128xi1>, vector<256x128xf32>
    %61 = vector.shape_cast %21 : vector<256x1xf32> to vector<256x1xf32>
    %62 = vector.broadcast %61 : vector<256x1xf32> to vector<256x128xf32>
    %63 = arith.select %54, %62, %60 : vector<256x128xi1>, vector<256x128xf32>
    %64 = vector.shape_cast %44 : vector<256x1xf32> to vector<256x1xf32>
    %65 = vector.broadcast %64 : vector<256x1xf32> to vector<256x128xf32>
    %66 = arith.select %52, %65, %63 : vector<256x128xi1>, vector<256x128xf32>
    %c0_25 = arith.constant 0 : index
    %c0_26 = arith.constant 0 : index
    %67 = vector.load %arg9[%c0_25, %c0_26] : memref<256x128xf32, #tpu.memory_space<vmem>>, vector<256x128xf32>
    tpu.vector_store %arg9[%c0_25, %c0_26], %66 {strides = array<i32>} : memref<256x128xf32, #tpu.memory_space<vmem>>, vector<256x128xf32>,
    return
  }
  func.func @transform_0(%arg0: i32) -> (i32, i32) {
    %c0_i32 = arith.constant 0 : i32
    %c0_i32_0 = arith.constant 0 : i32
    return %arg0, %c0_i32 : i32, i32
  }
  func.func @transform_1(%arg0: i32) -> (i32, i32) {
    %c0_i32 = arith.constant 0 : i32
    %c0_i32_0 = arith.constant 0 : i32
    return %arg0, %c0_i32 : i32, i32
  }
  func.func @transform_2(%arg0: i32) -> (i32, i32) {
    %c0_i32 = arith.constant 0 : i32
    %c0_i32_0 = arith.constant 0 : i32
    %c0_i32_1 = arith.constant 0 : i32
    return %c0_i32, %c0_i32_0 : i32, i32
  }
  func.func @transform_3(%arg0: i32) -> (i32, i32) {
    %c0_i32 = arith.constant 0 : i32
    %c0_i32_0 = arith.constant 0 : i32
    %c0_i32_1 = arith.constant 0 : i32
    return %c0_i32, %c0_i32_0 : i32, i32
  }
  func.func @transform_4(%arg0: i32) -> (i32, i32) {
    %c0_i32 = arith.constant 0 : i32
    %c0_i32_0 = arith.constant 0 : i32
    %c0_i32_1 = arith.constant 0 : i32
    return %c0_i32, %c0_i32_0 : i32, i32
  }
  func.func @transform_5(%arg0: i32) -> (i32, i32) {
    %c0_i32 = arith.constant 0 : i32
    %c0_i32_0 = arith.constant 0 : i32
    %c0_i32_1 = arith.constant 0 : i32
    return %c0_i32, %c0_i32_0 : i32, i32
  }
  func.func @transform_6(%arg0: i32) -> (i32, i32) {
    %c0_i32 = arith.constant 0 : i32
    %c0_i32_0 = arith.constant 0 : i32
    %c0_i32_1 = arith.constant 0 : i32
    return %c0_i32, %c0_i32_0 : i32, i32
  }
  func.func @transform_7(%arg0: i32) -> (i32, i32) {
    %c0_i32 = arith.constant 0 : i32
    %c0_i32_0 = arith.constant 0 : i32
    %c0_i32_1 = arith.constant 0 : i32
    return %c0_i32, %c0_i32_0 : i32, i32
  }
  func.func @transform_8(%arg0: i32) -> (i32, i32) {
    %c0_i32 = arith.constant 0 : i32
    %c0_i32_0 = arith.constant 0 : i32
    return %arg0, %c0_i32 : i32, i32
  }
}

module attributes {stable_mosaic.version = 11 : i64} {
  func.func @fused_actor_critic_kernel(%arg0: i32, %arg1: memref<256x16xf32, #tpu.memory_space<vmem>>, %arg2: memref<256x1xi32, #tpu.memory_space<vmem>>, %arg3: memref<16x64xf32, #tpu.memory_space<vmem>>, %arg4: memref<1x64xf32, #tpu.memory_space<vmem>>, %arg5: memref<64x64xf32, #tpu.memory_space<vmem>>, %arg6: memref<1x64xf32, #tpu.memory_space<vmem>>, %arg7: memref<64x9xf32, #tpu.memory_space<vmem>>, %arg8: memref<1x9xf32, #tpu.memory_space<vmem>>, %arg9: memref<256x128xf32, #tpu.memory_space<vmem>>) attributes {dimension_semantics = [#tpu.dimension_semantics<parallel>], iteration_bounds = array<i64: 1>, scalar_prefetch = 0 : i64, scratch_operands = 0 : i64, tpu.core_type = #tpu.core_type<tc>, window_params = [{transform_indices = @transform_0, window_bounds = array<i64: 256, 16>}, {transform_indices = @transform_1, window_bounds = array<i64: 256, 1>}, {pipeline_mode = #tpu.pipeline_mode<synchronous>, transform_indices = @transform_2, window_bounds = array<i64: 16, 64>}, {pipeline_mode = #tpu.pipeline_mode<synchronous>, transform_indices = @transform_3, window_bounds = array<i64: 1, 64>}, {pipeline_mode = #tpu.pipeline_mode<synchronous>, transform_indices = @transform_4, window_bounds = array<i64: 64, 64>}, {pipeline_mode = #tpu.pipeline_mode<synchronous>, transform_indices = @transform_5, window_bounds = array<i64: 1, 64>}, {pipeline_mode = #tpu.pipeline_mode<synchronous>, transform_indices = @transform_6, window_bounds = array<i64: 64, 9>}, {pipeline_mode = #tpu.pipeline_mode<synchronous>, transform_indices = @transform_7, window_bounds = array<i64: 1, 9>}, {transform_indices = @transform_8, window_bounds = array<i64: 256, 128>}]} {
    %c0 = arith.constant 0 : index
    %c0_0 = arith.constant 0 : index
    %0 = vector.load %arg1[%c0, %c0_0] : memref<256x16xf32, #tpu.memory_space<vmem>>, vector<256x16xf32>
    %c0_1 = arith.constant 0 : index
    %c0_2 = arith.constant 0 : index
    %1 = vector.load %arg3[%c0_1, %c0_2] : memref<16x64xf32, #tpu.memory_space<vmem>>, vector<16x64xf32>
    %cst = arith.constant dense<0.000000e+00> : vector<256x64xf32>
    %2 = tpu.matmul %0, %1, %cst {dimension_numbers = #tpu.dot_dimension_numbers<[1], [0], [0], [1], [0, 0, 1, 1], [], []>} : vector<256x16xf32>, vector<16x64xf32>, vector<256x64xf32> -> vector<256x64xf32>
    %c0_3 = arith.constant 0 : index
    %c0_4 = arith.constant 0 : index
    %3 = vector.load %arg4[%c0_3, %c0_4] : memref<1x64xf32, #tpu.memory_space<vmem>>, vector<1x64xf32>
    %4 = vector.broadcast %3 : vector<1x64xf32> to vector<256x64xf32>
    %5 = arith.addf %2, %4 : vector<256x64xf32>
    %cst_5 = arith.constant 0.000000e+00 : f32
    %6 = vector.broadcast %cst_5 : f32 to vector<256x64xf32>
    %7 = arith.maximumf %5, %6 : vector<256x64xf32>
    %c0_6 = arith.constant 0 : index
    %c0_7 = arith.constant 0 : index
    %8 = vector.load %arg5[%c0_6, %c0_7] : memref<64x64xf32, #tpu.memory_space<vmem>>, vector<64x64xf32>
    %cst_8 = arith.constant dense<0.000000e+00> : vector<256x64xf32>
    %9 = tpu.matmul %7, %8, %cst_8 {dimension_numbers = #tpu.dot_dimension_numbers<[1], [0], [0], [1], [0, 0, 1, 1], [], []>} : vector<256x64xf32>, vector<64x64xf32>, vector<256x64xf32> -> vector<256x64xf32>
    %c0_9 = arith.constant 0 : index
    %c0_10 = arith.constant 0 : index
    %10 = vector.load %arg6[%c0_9, %c0_10] : memref<1x64xf32, #tpu.memory_space<vmem>>, vector<1x64xf32>
    %11 = vector.broadcast %10 : vector<1x64xf32> to vector<256x64xf32>
    %12 = arith.addf %9, %11 : vector<256x64xf32>
    %cst_11 = arith.constant 0.000000e+00 : f32
    %13 = vector.broadcast %cst_11 : f32 to vector<256x64xf32>
    %14 = arith.maximumf %12, %13 : vector<256x64xf32>
    %c0_12 = arith.constant 0 : index
    %c0_13 = arith.constant 0 : index
    %15 = vector.load %arg7[%c0_12, %c0_13] : memref<64x9xf32, #tpu.memory_space<vmem>>, vector<64x9xf32>
    %cst_14 = arith.constant dense<0.000000e+00> : vector<256x9xf32>
    %16 = tpu.matmul %14, %15, %cst_14 {dimension_numbers = #tpu.dot_dimension_numbers<[1], [0], [0], [1], [0, 0, 1, 1], [], []>} : vector<256x64xf32>, vector<64x9xf32>, vector<256x9xf32> -> vector<256x9xf32>
    %c0_15 = arith.constant 0 : index
    %c0_16 = arith.constant 0 : index
    %17 = vector.load %arg8[%c0_15, %c0_16] : memref<1x9xf32, #tpu.memory_space<vmem>>, vector<1x9xf32>
    %18 = vector.broadcast %17 : vector<1x9xf32> to vector<256x9xf32>
    %19 = arith.addf %16, %18 : vector<256x9xf32>
    %20 = vector.extract_strided_slice %19 {offsets = [0, 0], sizes = [256, 8], strides = [1, 1]} : vector<256x9xf32> to vector<256x8xf32>
    %21 = vector.extract_strided_slice %19 {offsets = [0, 8], sizes = [256, 1], strides = [1, 1]} : vector<256x9xf32> to vector<256x1xf32>
    %cst_17 = arith.constant dense<0xFF800000> : vector<256xf32>
    %22 = vector.multi_reduction <maximumf>, %20, %cst_17 [1] : vector<256x8xf32> to vector<256xf32>
    %23 = vector.shape_cast %22 : vector<256xf32> to vector<256x1xf32>
    %24 = vector.broadcast %23 : vector<256x1xf32> to vector<256x8xf32>
    %25 = arith.subf %20, %24 : vector<256x8xf32>
    %26 = math.exp %25 : vector<256x8xf32>
    %cst_18 = arith.constant dense<0.000000e+00> : vector<256xf32>
    %27 = vector.multi_reduction <add>, %26, %cst_18 [1] : vector<256x8xf32> to vector<256xf32>
    %28 = vector.shape_cast %27 : vector<256xf32> to vector<256x1xf32>
    %29 = vector.broadcast %28 : vector<256x1xf32> to vector<256x8xf32>
    %30 = arith.divf %26, %29 : vector<256x8xf32>
    %31 = vector.broadcast %23 : vector<256x1xf32> to vector<256x8xf32>
    %32 = arith.subf %20, %31 : vector<256x8xf32>
    %33 = math.log %28 : vector<256x1xf32>
    %34 = vector.broadcast %33 : vector<256x1xf32> to vector<256x8xf32>
    %35 = arith.subf %32, %34 : vector<256x8xf32>
    %c0_19 = arith.constant 0 : index
    %c0_20 = arith.constant 0 : index
    %36 = vector.load %arg2[%c0_19, %c0_20] : memref<256x1xi32, #tpu.memory_space<vmem>>, vector<256x1xi32>
    %37 = tpu.iota {dimensions = array<i32: 1>} : vector<256x8xi32>
    %38 = vector.broadcast %36 : vector<256x1xi32> to vector<256x8xi32>
    %39 = arith.cmpi eq, %37, %38 : vector<256x8xi32>
    %40 = arith.extui %39 : vector<256x8xi1> to vector<256x8xi32>
    %41 = arith.sitofp %40 : vector<256x8xi32> to vector<256x8xf32>
    %42 = arith.mulf %41, %35 : vector<256x8xf32>
    %cst_21 = arith.constant dense<0.000000e+00> : vector<256xf32>
    %43 = vector.multi_reduction <add>, %42, %cst_21 [1] : vector<256x8xf32> to vector<256xf32>
    %44 = vector.shape_cast %43 : vector<256xf32> to vector<256x1xf32>
    %45 = arith.mulf %30, %35 : vector<256x8xf32>
    %cst_22 = arith.constant dense<0.000000e+00> : vector<256xf32>
    %46 = vector.multi_reduction <add>, %45, %cst_22 [1] : vector<256x8xf32> to vector<256xf32>
    %47 = vector.shape_cast %46 : vector<256xf32> to vector<256x1xf32>
    %cst_23 = arith.constant 0.000000e+00 : f32
    %48 = vector.broadcast %cst_23 : f32 to vector<256x1xf32>
    %49 = arith.subf %48, %47 : vector<256x1xf32>
    %50 = tpu.iota {dimensions = array<i32: 1>} : vector<256x128xi32>
    %c0_i32 = arith.constant 0 : i32
    %51 = vector.broadcast %c0_i32 : i32 to vector<256x128xi32>
    %52 = arith.cmpi eq, %50, %51 : vector<256x128xi32>
    %c1_i32 = arith.constant 1 : i32
    %53 = vector.broadcast %c1_i32 : i32 to vector<256x128xi32>
    %54 = arith.cmpi eq, %50, %53 : vector<256x128xi32>
    %c2_i32 = arith.constant 2 : i32
    %55 = vector.broadcast %c2_i32 : i32 to vector<256x128xi32>
    %56 = arith.cmpi eq, %50, %55 : vector<256x128xi32>
    %cst_24 = arith.constant 0.000000e+00 : f32
    %57 = vector.shape_cast %49 : vector<256x1xf32> to vector<256x1xf32>
    %58 = vector.broadcast %57 : vector<256x1xf32> to vector<256x128xf32>
    %59 = vector.broadcast %cst_24 : f32 to vector<256x128xf32>
    %60 = arith.select %56, %58, %59 : vector<256x128xi1>, vector<256x128xf32>
    %61 = vector.shape_cast %21 : vector<256x1xf32> to vector<256x1xf32>
    %62 = vector.broadcast %61 : vector<256x1xf32> to vector<256x128xf32>
    %63 = arith.select %54, %62, %60 : vector<256x128xi1>, vector<256x128xf32>
    %64 = vector.shape_cast %44 : vector<256x1xf32> to vector<256x1xf32>
    %65 = vector.broadcast %64 : vector<256x1xf32> to vector<256x128xf32>
    %66 = arith.select %52, %65, %63 : vector<256x128xi1>, vector<256x128xf32>
    %c0_25 = arith.constant 0 : index
    %c0_26 = arith.constant 0 : index
    %67 = vector.load %arg9[%c0_25, %c0_26] : memref<256x128xf32, #tpu.memory_space<vmem>>, vector<256x128xf32>
    tpu.vector_store %arg9[%c0_25, %c0_26], %66 {strides = array<i32>} : memref<256x128xf32, #tpu.memory_space<vmem>>, vector<256x128xf32>,
    return
  }
  func.func @transform_0(%arg0: i32) -> (i32, i32) {
    %c0_i32 = arith.constant 0 : i32
    %c0_i32_0 = arith.constant 0 : i32
    return %arg0, %c0_i32 : i32, i32
  }
  func.func @transform_1(%arg0: i32) -> (i32, i32) {
    %c0_i32 = arith.constant 0 : i32
    %c0_i32_0 = arith.constant 0 : i32
    return %arg0, %c0_i32 : i32, i32
  }
  func.func @transform_2(%arg0: i32) -> (i32, i32) {
    %c0_i32 = arith.constant 0 : i32
    %c0_i32_0 = arith.constant 0 : i32
    %c0_i32_1 = arith.constant 0 : i32
    return %c0_i32, %c0_i32_0 : i32, i32
  }
  func.func @transform_3(%arg0: i32) -> (i32, i32) {
    %c0_i32 = arith.constant 0 : i32
    %c0_i32_0 = arith.constant 0 : i32
    %c0_i32_1 = arith.constant 0 : i32
    return %c0_i32, %c0_i32_0 : i32, i32
  }
  func.func @transform_4(%arg0: i32) -> (i32, i32) {
    %c0_i32 = arith.constant 0 : i32
    %c0_i32_0 = arith.constant 0 : i32
    %c0_i32_1 = arith.constant 0 : i32
    return %c0_i32, %c0_i32_0 : i32, i32
  }
  func.func @transform_5(%arg0: i32) -> (i32, i32) {
    %c0_i32 = arith.constant 0 : i32
    %c0_i32_0 = arith.constant 0 : i32
    %c0_i32_1 = arith.constant 0 : i32
    return %c0_i32, %c0_i32_0 : i32, i32
  }
  func.func @transform_6(%arg0: i32) -> (i32, i32) {
    %c0_i32 = arith.constant 0 : i32
    %c0_i32_0 = arith.constant 0 : i32
    %c0_i32_1 = arith.constant 0 : i32
    return %c0_i32, %c0_i32_0 : i32, i32
  }
  func.func @transform_7(%arg0: i32) -> (i32, i32) {
    %c0_i32 = arith.constant 0 : i32
    %c0_i32_0 = arith.constant 0 : i32
    %c0_i32_1 = arith.constant 0 : i32
    return %c0_i32, %c0_i32_0 : i32, i32
  }
  func.func @transform_8(%arg0: i32) -> (i32, i32) {
    %c0_i32 = arith.constant 0 : i32
    %c0_i32_0 = arith.constant 0 : i32
    return %arg0, %c0_i32 : i32, i32
  }
}

</mosaic_0001>

<llo_original>
// kernel: tpu_custom_call.1
$region0: #{tpu_custom_call.1}
  #allocation0 [shape = 'u32[]', space=smem, size = 0x4, offset = 0x4, fixed_abs, tag = 'smem constant byte address 0x4 - core index']
  #allocation1 [shape = 'u32[144,128]{1,0:T(1,128)}', space=vmem, size = 0x12000, scoped, tag = 'internal scratch']
  %s0 = inlined_call_operand.vmem [shape: f32[256,16], index: 0, kind: input, shape index: {}]
  %s1 = inlined_call_operand.vmem [shape: s32[256,1], index: 1, kind: input, shape index: {}]
  %s2 = inlined_call_operand.vmem [shape: f32[16,64], index: 2, kind: input, shape index: {}]
  %s3 = inlined_call_operand.vmem [shape: f32[1,64], index: 3, kind: input, shape index: {}]
  %s4 = inlined_call_operand.vmem [shape: f32[64,64], index: 4, kind: input, shape index: {}]
  %s5 = inlined_call_operand.vmem [shape: f32[1,64], index: 5, kind: input, shape index: {}]
  %s6 = inlined_call_operand.vmem [shape: f32[64,9], index: 6, kind: input, shape index: {}]
  %s7 = inlined_call_operand.vmem [shape: f32[1,9], index: 7, kind: input, shape index: {}]
  %s8 = inlined_call_operand.hbm [shape: f32[256,128], index: 8, kind: output, shape index: {}]
  %s9 = sld [smem:[#allocation0]]
  $region42: #{tpu_custom_call.1} parent=0
    _
  %s11 = ssub.s32 1, %s9
  %s12 = scalar_select 0, %s11, %s9
  $region1: #{tpu_custom_call.1} parent=0
    #allocation2 [shape = 'u8[131072]{0}', space=vmem, size = 0x20000, scoped, tag = 'output window, operand 0, single buffered']
    #allocation3 [shape = 's32[1]{0}', space=sflag, size = 0x4, scoped, tag = 'scoped memory for tpu_custom_call.1']
    %13 = vsyncpa [#allocation3], 0
    // Predicated region
    $region2: #{tpu_custom_call.1} parent=1 // pred_check
      _
    $region3: #{tpu_custom_call.1} parent=1 // pred_check_branch
      %15 = sbr.rel (0) target = $region5
    $region4: #{tpu_custom_call.1} parent=1 // pred_region
      _
    $region5: #{tpu_custom_call.1} parent=1 // pred_fallthru
      _
    // Predicated region
    $region6: #{tpu_custom_call.1} parent=1 // pred_check
      _
    $region7: #{tpu_custom_call.1} parent=1 // pred_check_branch
      %17 = sbr.rel (0) target = $region9
    $region8: #{tpu_custom_call.1} parent=1 // pred_region
      _
    $region9: #{tpu_custom_call.1} parent=1 // pred_fallthru
      _
    // Predicated region
    $region10: #{tpu_custom_call.1} parent=1 // pred_check
      _
    $region11: #{tpu_custom_call.1} parent=1 // pred_check_branch
      %19 = sbr.rel (0) target = $region13
    $region12: #{tpu_custom_call.1} parent=1 // pred_region
      _
    $region13: #{tpu_custom_call.1} parent=1 // pred_fallthru
      _
    // Predicated region
    $region14: #{tpu_custom_call.1} parent=1 // pred_check
      _
    $region15: #{tpu_custom_call.1} parent=1 // pred_check_branch
      %21 = sbr.rel (0) target = $region17
    $region16: #{tpu_custom_call.1} parent=1 // pred_region
      _
    $region17: #{tpu_custom_call.1} parent=1 // pred_fallthru
      _
    // Predicated region
    $region18: #{tpu_custom_call.1} parent=1 // pred_check
      _
    $region19: #{tpu_custom_call.1} parent=1 // pred_check_branch
      %23 = sbr.rel (0) target = $region21
    $region20: #{tpu_custom_call.1} parent=1 // pred_region
      _
    $region21: #{tpu_custom_call.1} parent=1 // pred_fallthru
      _
    // Predicated region
    $region22: #{tpu_custom_call.1} parent=1 // pred_check
      _
    $region23: #{tpu_custom_call.1} parent=1 // pred_check_branch
      %25 = sbr.rel (0) target = $region25
    $region24: #{tpu_custom_call.1} parent=1 // pred_region
      _
    $region25: #{tpu_custom_call.1} parent=1 // pred_fallthru
      _
    // Predicated region
    $region26: #{tpu_custom_call.1} parent=1 // pred_check
      _
    $region27: #{tpu_custom_call.1} parent=1 // pred_check_branch
      %27 = sbr.rel (0) target = $region29
    $region28: #{tpu_custom_call.1} parent=1 // pred_region
      _
    $region29: #{tpu_custom_call.1} parent=1 // pred_fallthru
      _
    // Predicated region
    $region30: #{tpu_custom_call.1} parent=1 // pred_check
      _
    $region31: #{tpu_custom_call.1} parent=1 // pred_check_branch
      %29 = sbr.rel (0) target = $region33
    $region32: #{tpu_custom_call.1} parent=1 // pred_region
      _
    $region33: #{tpu_custom_call.1} parent=1 // pred_fallthru
      _
    %v30 = vld [vmem:[%s0] sm:$0xff]
    %v31 = vld [vmem:[%s0 + $0x8] sm:$0xff]
    %v32 = vld [vmem:[%s0 + $0x10] sm:$0xff]
    %v33 = vld [vmem:[%s0 + $0x18] sm:$0xff]
    %v34 = vld [vmem:[%s0 + $0x20] sm:$0xff]
    %v35 = vld [vmem:[%s0 + $0x28] sm:$0xff]
    %v36 = vld [vmem:[%s0 + $0x30] sm:$0xff]
    %v37 = vld [vmem:[%s0 + $0x38] sm:$0xff]
    %v38 = vld [vmem:[%s0 + $0x40] sm:$0xff]
    %v39 = vld [vmem:[%s0 + $0x48] sm:$0xff]
    %v40 = vld [vmem:[%s0 + $0x50] sm:$0xff]
    %v41 = vld [vmem:[%s0 + $0x58] sm:$0xff]
    %v42 = vld [vmem:[%s0 + $0x60] sm:$0xff]
    %v43 = vld [vmem:[%s0 + $0x68] sm:$0xff]
    %v44 = vld [vmem:[%s0 + $0x70] sm:$0xff]
    %v45 = vld [vmem:[%s0 + $0x78] sm:$0xff]
    %v46 = vld [vmem:[%s0 + $0x80] sm:$0xff]
    %v47 = vld [vmem:[%s0 + $0x88] sm:$0xff]
    %v48 = vld [vmem:[%s0 + $0x90] sm:$0xff]
    %v49 = vld [vmem:[%s0 + $0x98] sm:$0xff]
    %v50 = vld [vmem:[%s0 + $0xa0] sm:$0xff]
    %v51 = vld [vmem:[%s0 + $0xa8] sm:$0xff]
    %v52 = vld [vmem:[%s0 + $0xb0] sm:$0xff]
    %v53 = vld [vmem:[%s0 + $0xb8] sm:$0xff]
    %v54 = vld [vmem:[%s0 + $0xc0] sm:$0xff]
    %v55 = vld [vmem:[%s0 + $0xc8] sm:$0xff]
    %v56 = vld [vmem:[%s0 + $0xd0] sm:$0xff]
    %v57 = vld [vmem:[%s0 + $0xd8] sm:$0xff]
    %v58 = vld [vmem:[%s0 + $0xe0] sm:$0xff]
    %v59 = vld [vmem:[%s0 + $0xe8] sm:$0xff]
    %v60 = vld [vmem:[%s0 + $0xf0] sm:$0xff]
    %v61 = vld [vmem:[%s0 + $0xf8] sm:$0xff]
    %v62 = vld [vmem:[%s2] sm:$0xff]
    %v63 = vld [vmem:[%s2 + $0x8] sm:$0xff]
    %v64 = vld [vmem:[%s3] sm:$0x1]
    %v66 = vlaneseq
    %v67 = vshrl.u32 %v66, 7
    %v68 = vsub.s32 0, %v67
    %v69 = vrot.slane %v64, %v68
    %vm71 = vcmask 130048
    %v73 = vsel %vm71, %v30, 0
    %v76 = vsel %vm71, %v31, 0
    %v79 = vsel %vm71, %v32, 0
    %v82 = vsel %vm71, %v33, 0
    %v85 = vsel %vm71, %v34, 0
    %v88 = vsel %vm71, %v35, 0
    %v91 = vsel %vm71, %v36, 0
    %v94 = vsel %vm71, %v37, 0
    %v97 = vsel %vm71, %v38, 0
    %v100 = vsel %vm71, %v39, 0
    %v103 = vsel %vm71, %v40, 0
    %v106 = vsel %vm71, %v41, 0
    %v109 = vsel %vm71, %v42, 0
    %v112 = vsel %vm71, %v43, 0
    %v115 = vsel %vm71, %v44, 0
    %v118 = vsel %vm71, %v45, 0
    %v121 = vsel %vm71, %v46, 0
    %v124 = vsel %vm71, %v47, 0
    %v127 = vsel %vm71, %v48, 0
    %v130 = vsel %vm71, %v49, 0
    %v133 = vsel %vm71, %v50, 0
    %v136 = vsel %vm71, %v51, 0
    %v139 = vsel %vm71, %v52, 0
    %v142 = vsel %vm71, %v53, 0
    %v145 = vsel %vm71, %v54, 0
    %v148 = vsel %vm71, %v55, 0
    %v151 = vsel %vm71, %v56, 0
    %v154 = vsel %vm71, %v57, 0
    %v157 = vsel %vm71, %v58, 0
    %v160 = vsel %vm71, %v59, 0
    %v163 = vsel %vm71, %v60, 0
    %v166 = vsel %vm71, %v61, 0
    %168 = vmatprep.subr.mxu0 0.0
    %169 = vmatpush1.msra.mxu0 %v62
    %170 = vmatprep.subr.mxu0 0.0
    %171 = vmatpush1.msra.mxu0 %v63
    %172 = vmatprep.subr.mxu0 0.0
    %173 = vmatpush1.msra.mxu0 0.0
    %174 = vmatprep.subr.mxu0 0.0
    %175 = vmatpush1.msra.mxu0 0.0
    %176 = vmatprep.subr.mxu0 0.0
    %177 = vmatpush1.msra.mxu0 0.0
    %178 = vmatprep.subr.mxu0 0.0
    %179 = vmatpush1.msra.mxu0 0.0
    %180 = vmatprep.subr.mxu0 0.0
    %181 = vmatpush1.msra.mxu0 0.0
    %182 = vmatprep.subr.mxu0 0.0
    %183 = vmatpush1.msra.mxu0 0.0
    %184 = vmatprep.subr.mxu0 0.0
    %185 = vmatpush1.msra.mxu0 0.0
    %186 = vmatprep.subr.mxu0 0.0
    %187 = vmatpush1.msra.mxu0 0.0
    %188 = vmatprep.subr.mxu0 0.0
    %189 = vmatpush1.msra.mxu0 0.0
    %190 = vmatprep.subr.mxu0 0.0
    %191 = vmatpush1.msra.mxu0 0.0
    %192 = vmatprep.subr.mxu0 0.0
    %193 = vmatpush1.msra.mxu0 0.0
    %194 = vmatprep.subr.mxu0 0.0
    %195 = vmatpush1.msra.mxu0 0.0
    %196 = vmatprep.subr.mxu0 0.0
    %197 = vmatpush1.msra.mxu0 0.0
    %198 = vmatprep.subr.mxu0 0.0
    %199 = vmatpush1.msra.mxu0 0.0
    %200 = vmatprep.subr.mxu0 0.0
    %201 = vmatpush1.msra.mxu0 0.0
    %202 = vmatprep.subr.mxu0 0.0
    %203 = vmatpush1.msra.mxu0 0.0
    %204 = vmatprep.subr.mxu0 0.0
    %205 = vmatpush1.msra.mxu0 0.0
    %206 = vmatprep.subr.mxu0 0.0
    %207 = vmatpush1.msra.mxu0 0.0
    %208 = vmatprep.subr.mxu0 0.0
    %209 = vmatpush1.msra.mxu0 0.0
    %210 = vmatprep.subr.mxu0 0.0
    %211 = vmatpush1.msra.mxu0 0.0
    %212 = vmatprep.subr.mxu0 0.0
    %213 = vmatpush1.msra.mxu0 0.0
    %214 = vmatprep.subr.mxu0 0.0
    %215 = vmatpush1.msra.mxu0 0.0
    %216 = vmatprep.subr.mxu0 0.0
    %217 = vmatpush1.msra.mxu0 0.0
    %218 = vmatprep.subr.mxu0 0.0
    %219 = vmatpush1.msra.mxu0 0.0
    %220 = vmatprep.subr.mxu0 0.0
    %221 = vmatpush1.msra.mxu0 0.0
    %222 = vmatprep.subr.mxu0 0.0
    %223 = vmatpush1.msra.mxu0 0.0
    %224 = vmatprep.subr.mxu0 0.0
    %225 = vmatpush1.msra.mxu0 0.0
    %226 = vmatprep.subr.mxu0 0.0
    %227 = vmatpush1.msra.mxu0 0.0
    %228 = vmatprep.subr.mxu0 0.0
    %229 = vmatpush1.msra.mxu0 0.0
    %230 = vmatprep.subr.mxu0 0.0
    %231 = vmatpush1.msra.mxu0 0.0
    %232 = vmatprep.mubr.f32.mxu0 0.0
    %233 = vmatmul.mubr.f32.gmra.mrb[0].mxu0 %v73
    %v234 = vpop.f32.mrb[0].mxu0
    %v235 = vadd.f32 %v69, %v234
    %v236 = vpop.f32.mrb[0].mxu0
    %237 = vmatprep.mubr.f32.mxu0 0.0
    %238 = vmatmul.mubr.f32.gmra.mrb[0].mxu0 %v76
    %v239 = vpop.f32.mrb[0].mxu0
    %v240 = vadd.f32 %v69, %v239
    %v241 = vpop.f32.mrb[0].mxu0
    %242 = vmatprep.mubr.f32.mxu0 0.0
    %243 = vmatmul.mubr.f32.gmra.mrb[0].mxu0 %v79
    %v244 = vpop.f32.mrb[0].mxu0
    %v245 = vadd.f32 %v69, %v244
    %v246 = vpop.f32.mrb[0].mxu0
    %247 = vmatprep.mubr.f32.mxu0 0.0
    %248 = vmatmul.mubr.f32.gmra.mrb[0].mxu0 %v82
    %v249 = vpop.f32.mrb[0].mxu0
    %v250 = vadd.f32 %v69, %v249
    %v251 = vpop.f32.mrb[0].mxu0
    %252 = vmatprep.mubr.f32.mxu0 0.0
    %253 = vmatmul.mubr.f32.gmra.mrb[0].mxu0 %v85
    %v254 = vpop.f32.mrb[0].mxu0
    %v255 = vadd.f32 %v69, %v254
    %v256 = vpop.f32.mrb[0].mxu0
    %257 = vmatprep.mubr.f32.mxu0 0.0
    %258 = vmatmul.mubr.f32.gmra.mrb[0].mxu0 %v88
    %v259 = vpop.f32.mrb[0].mxu0
    %v260 = vadd.f32 %v69, %v259
    %v261 = vpop.f32.mrb[0].mxu0
    %262 = vmatprep.mubr.f32.mxu0 0.0
    %263 = vmatmul.mubr.f32.gmra.mrb[0].mxu0 %v91
    %v264 = vpop.f32.mrb[0].mxu0
    %v265 = vadd.f32 %v69, %v264
    %v266 = vpop.f32.mrb[0].mxu0
    %267 = vmatprep.mubr.f32.mxu0 0.0
    %268 = vmatmul.mubr.f32.gmra.mrb[0].mxu0 %v94
    %v269 = vpop.f32.mrb[0].mxu0
    %v270 = vadd.f32 %v69, %v269
    %v271 = vpop.f32.mrb[0].mxu0
    %272 = vmatprep.mubr.f32.mxu0 0.0
    %273 = vmatmul.mubr.f32.gmra.mrb[0].mxu0 %v97
    %v274 = vpop.f32.mrb[0].mxu0
    %v275 = vadd.f32 %v69, %v274
    %v276 = vpop.f32.mrb[0].mxu0
    %277 = vmatprep.mubr.f32.mxu0 0.0
    %278 = vmatmul.mubr.f32.gmra.mrb[0].mxu0 %v100
    %v279 = vpop.f32.mrb[0].mxu0
    %v280 = vadd.f32 %v69, %v279
    %v281 = vpop.f32.mrb[0].mxu0
    %282 = vmatprep.mubr.f32.mxu0 0.0
    %283 = vmatmul.mubr.f32.gmra.mrb[0].mxu0 %v103
    %v284 = vpop.f32.mrb[0].mxu0
    %v285 = vadd.f32 %v69, %v284
    %v286 = vpop.f32.mrb[0].mxu0
    %287 = vmatprep.mubr.f32.mxu0 0.0
    %288 = vmatmul.mubr.f32.gmra.mrb[0].mxu0 %v106
    %v289 = vpop.f32.mrb[0].mxu0
    %v290 = vadd.f32 %v69, %v289
    %v291 = vpop.f32.mrb[0].mxu0
    %292 = vmatprep.mubr.f32.mxu0 0.0
    %293 = vmatmul.mubr.f32.gmra.mrb[0].mxu0 %v109
    %v294 = vpop.f32.mrb[0].mxu0
    %v295 = vadd.f32 %v69, %v294
    %v296 = vpop.f32.mrb[0].mxu0
    %297 = vmatprep.mubr.f32.mxu0 0.0
    %298 = vmatmul.mubr.f32.gmra.mrb[0].mxu0 %v112
    %v299 = vpop.f32.mrb[0].mxu0
    %v300 = vadd.f32 %v69, %v299
    %v301 = vpop.f32.mrb[0].mxu0
    %302 = vmatprep.mubr.f32.mxu0 0.0
    %303 = vmatmul.mubr.f32.gmra.mrb[0].mxu0 %v115
    %v304 = vpop.f32.mrb[0].mxu0
    %v305 = vadd.f32 %v69, %v304
    %v306 = vpop.f32.mrb[0].mxu0
    %307 = vmatprep.mubr.f32.mxu0 0.0
    %308 = vmatmul.mubr.f32.gmra.mrb[0].mxu0 %v118
    %v309 = vpop.f32.mrb[0].mxu0
    %v310 = vadd.f32 %v69, %v309
    %v311 = vpop.f32.mrb[0].mxu0
    %312 = vmatprep.mubr.f32.mxu0 0.0
    %313 = vmatmul.mubr.f32.gmra.mrb[0].mxu0 %v121
    %v314 = vpop.f32.mrb[0].mxu0
    %v315 = vadd.f32 %v69, %v314
    %v316 = vpop.f32.mrb[0].mxu0
    %317 = vmatprep.mubr.f32.mxu0 0.0
    %318 = vmatmul.mubr.f32.gmra.mrb[0].mxu0 %v124
    %v319 = vpop.f32.mrb[0].mxu0
    %v320 = vadd.f32 %v69, %v319
    %v321 = vpop.f32.mrb[0].mxu0
    %322 = vmatprep.mubr.f32.mxu0 0.0
    %323 = vmatmul.mubr.f32.gmra.mrb[0].mxu0 %v127
    %v324 = vpop.f32.mrb[0].mxu0
    %v325 = vadd.f32 %v69, %v324
    %v326 = vpop.f32.mrb[0].mxu0
    %327 = vmatprep.mubr.f32.mxu0 0.0
    %328 = vmatmul.mubr.f32.gmra.mrb[0].mxu0 %v130
    %v329 = vpop.f32.mrb[0].mxu0
    %v330 = vadd.f32 %v69, %v329
    %v331 = vpop.f32.mrb[0].mxu0
    %332 = vmatprep.mubr.f32.mxu0 0.0
    %333 = vmatmul.mubr.f32.gmra.mrb[0].mxu0 %v133
    %v334 = vpop.f32.mrb[0].mxu0
    %v335 = vadd.f32 %v69, %v334
    %v336 = vpop.f32.mrb[0].mxu0
    %337 = vmatprep.mubr.f32.mxu0 0.0
    %338 = vmatmul.mubr.f32.gmra.mrb[0].mxu0 %v136
    %v339 = vpop.f32.mrb[0].mxu0
    %v340 = vadd.f32 %v69, %v339
    %v341 = vpop.f32.mrb[0].mxu0
    %342 = vmatprep.mubr.f32.mxu0 0.0
    %343 = vmatmul.mubr.f32.gmra.mrb[0].mxu0 %v139
    %v344 = vpop.f32.mrb[0].mxu0
    %v345 = vadd.f32 %v69, %v344
    %v346 = vpop.f32.mrb[0].mxu0
    %347 = vmatprep.mubr.f32.mxu0 0.0
    %348 = vmatmul.mubr.f32.gmra.mrb[0].mxu0 %v142
    %v349 = vpop.f32.mrb[0].mxu0
    %v350 = vadd.f32 %v69, %v349
    %v351 = vpop.f32.mrb[0].mxu0
    %352 = vmatprep.mubr.f32.mxu0 0.0
    %353 = vmatmul.mubr.f32.gmra.mrb[0].mxu0 %v145
    %v354 = vpop.f32.mrb[0].mxu0
    %v355 = vadd.f32 %v69, %v354
    %v356 = vpop.f32.mrb[0].mxu0
    %357 = vmatprep.mubr.f32.mxu0 0.0
    %358 = vmatmul.mubr.f32.gmra.mrb[0].mxu0 %v148
    %v359 = vpop.f32.mrb[0].mxu0
    %v360 = vadd.f32 %v69, %v359
    %v361 = vpop.f32.mrb[0].mxu0
    %362 = vmatprep.mubr.f32.mxu0 0.0
    %363 = vmatmul.mubr.f32.gmra.mrb[0].mxu0 %v151
    %v364 = vpop.f32.mrb[0].mxu0
    %v365 = vadd.f32 %v69, %v364
    %v366 = vpop.f32.mrb[0].mxu0
    %367 = vmatprep.mubr.f32.mxu0 0.0
    %368 = vmatmul.mubr.f32.gmra.mrb[0].mxu0 %v154
    %v369 = vpop.f32.mrb[0].mxu0
    %v370 = vadd.f32 %v69, %v369
    %v371 = vpop.f32.mrb[0].mxu0
    %372 = vmatprep.mubr.f32.mxu0 0.0
    %373 = vmatmul.mubr.f32.gmra.mrb[0].mxu0 %v157
    %v374 = vpop.f32.mrb[0].mxu0
    %v375 = vadd.f32 %v69, %v374
    %v376 = vpop.f32.mrb[0].mxu0
    %377 = vmatprep.mubr.f32.mxu0 0.0
    %378 = vmatmul.mubr.f32.gmra.mrb[0].mxu0 %v160
    %v379 = vpop.f32.mrb[0].mxu0
    %v380 = vadd.f32 %v69, %v379
    %v381 = vpop.f32.mrb[0].mxu0
    %382 = vmatprep.mubr.f32.mxu0 0.0
    %383 = vmatmul.mubr.f32.gmra.mrb[0].mxu0 %v163
    %v384 = vpop.f32.mrb[0].mxu0
    %v385 = vadd.f32 %v69, %v384
    %v386 = vpop.f32.mrb[0].mxu0
    %387 = vmatprep.mubr.f32.mxu0 0.0
    %388 = vmatmul.mubr.f32.gmra.mrb[0].mxu0 %v166
    %v389 = vpop.f32.mrb[0].mxu0
    %v390 = vadd.f32 %v69, %v389
    %v391 = vpop.f32.mrb[0].mxu0
    %392 = vdwg.mxu0
    %v393 = vmax.f32 %v235, 0.0
    %v394 = vmax.f32 %v240, 0.0
    %v395 = vmax.f32 %v245, 0.0
    %v396 = vmax.f32 %v250, 0.0
    %v397 = vmax.f32 %v255, 0.0
    %v398 = vmax.f32 %v260, 0.0
    %v399 = vmax.f32 %v265, 0.0
    %v400 = vmax.f32 %v270, 0.0
    %v401 = vmax.f32 %v275, 0.0
    %v402 = vmax.f32 %v280, 0.0
    %v403 = vmax.f32 %v285, 0.0
    %v404 = vmax.f32 %v290, 0.0
    %v405 = vmax.f32 %v295, 0.0
    %v406 = vmax.f32 %v300, 0.0
    %v407 = vmax.f32 %v305, 0.0
    %v408 = vmax.f32 %v310, 0.0
    %v409 = vmax.f32 %v315, 0.0
    %v410 = vmax.f32 %v320, 0.0
    %v411 = vmax.f32 %v325, 0.0
    %v412 = vmax.f32 %v330, 0.0
    %v413 = vmax.f32 %v335, 0.0
    %v414 = vmax.f32 %v340, 0.0
    %v415 = vmax.f32 %v345, 0.0
    %v416 = vmax.f32 %v350, 0.0
    %v417 = vmax.f32 %v355, 0.0
    %v418 = vmax.f32 %v360, 0.0
    %v419 = vmax.f32 %v365, 0.0
    %v420 = vmax.f32 %v370, 0.0
    %v421 = vmax.f32 %v375, 0.0
    %v422 = vmax.f32 %v380, 0.0
    %v423 = vmax.f32 %v385, 0.0
    %v424 = vmax.f32 %v390, 0.0
    %v425 = vld [vmem:[%s4] sm:$0xff]
    %v426 = vld [vmem:[%s4 + $0x8] sm:$0xff]
    %v427 = vld [vmem:[%s4 + $0x10] sm:$0xff]
    %v428 = vld [vmem:[%s4 + $0x18] sm:$0xff]
    %v429 = vld [vmem:[%s4 + $0x20] sm:$0xff]
    %v430 = vld [vmem:[%s4 + $0x28] sm:$0xff]
    %v431 = vld [vmem:[%s4 + $0x30] sm:$0xff]
    %v432 = vld [vmem:[%s4 + $0x38] sm:$0xff]
    %v433 = vld [vmem:[%s5] sm:$0x1]
    %v435 = vlaneseq
    %v436 = vshrl.u32 %v435, 7
    %v437 = vsub.s32 0, %v436
    %v438 = vrot.slane %v433, %v437
    %vm440 = vcmask 523264
    %v442 = vsel %vm440, %v393, 0
    %v445 = vsel %vm440, %v394, 0
    %v448 = vsel %vm440, %v395, 0
    %v451 = vsel %vm440, %v396, 0
    %v454 = vsel %vm440, %v397, 0
    %v457 = vsel %vm440, %v398, 0
    %v460 = vsel %vm440, %v399, 0
    %v463 = vsel %vm440, %v400, 0
    %v466 = vsel %vm440, %v401, 0
    %v469 = vsel %vm440, %v402, 0
    %v472 = vsel %vm440, %v403, 0
    %v475 = vsel %vm440, %v404, 0
    %v478 = vsel %vm440, %v405, 0
    %v481 = vsel %vm440, %v406, 0
    %v484 = vsel %vm440, %v407, 0
    %v487 = vsel %vm440, %v408, 0
    %v490 = vsel %vm440, %v409, 0
    %v493 = vsel %vm440, %v410, 0
    %v496 = vsel %vm440, %v411, 0
    %v499 = vsel %vm440, %v412, 0
    %v502 = vsel %vm440, %v413, 0
    %v505 = vsel %vm440, %v414, 0
    %v508 = vsel %vm440, %v415, 0
    %v511 = vsel %vm440, %v416, 0
    %v514 = vsel %vm440, %v417, 0
    %v517 = vsel %vm440, %v418, 0
    %v520 = vsel %vm440, %v419, 0
    %v523 = vsel %vm440, %v420, 0
    %v526 = vsel %vm440, %v421, 0
    %v529 = vsel %vm440, %v422, 0
    %v532 = vsel %vm440, %v423, 0
    %v535 = vsel %vm440, %v424, 0
    %537 = vmatprep.subr.mxu0 0.0
    %538 = vmatpush1.msra.mxu0 %v425
    %539 = vmatprep.subr.mxu0 0.0
    %540 = vmatpush1.msra.mxu0 %v426
    %541 = vmatprep.subr.mxu0 0.0
    %542 = vmatpush1.msra.mxu0 %v427
    %543 = vmatprep.subr.mxu0 0.0
    %544 = vmatpush1.msra.mxu0 %v428
    %545 = vmatprep.subr.mxu0 0.0
    %546 = vmatpush1.msra.mxu0 %v429
    %547 = vmatprep.subr.mxu0 0.0
    %548 = vmatpush1.msra.mxu0 %v430
    %549 = vmatprep.subr.mxu0 0.0
    %550 = vmatpush1.msra.mxu0 %v431
    %551 = vmatprep.subr.mxu0 0.0
    %552 = vmatpush1.msra.mxu0 %v432
    %553 = vmatprep.subr.mxu0 0.0
    %554 = vmatpush1.msra.mxu0 0.0
    %555 = vmatprep.subr.mxu0 0.0
    %556 = vmatpush1.msra.mxu0 0.0
    %557 = vmatprep.subr.mxu0 0.0
    %558 = vmatpush1.msra.mxu0 0.0
    %559 = vmatprep.subr.mxu0 0.0
    %560 = vmatpush1.msra.mxu0 0.0
    %561 = vmatprep.subr.mxu0 0.0
    %562 = vmatpush1.msra.mxu0 0.0
    %563 = vmatprep.subr.mxu0 0.0
    %564 = vmatpush1.msra.mxu0 0.0
    %565 = vmatprep.subr.mxu0 0.0
    %566 = vmatpush1.msra.mxu0 0.0
    %567 = vmatprep.subr.mxu0 0.0
    %568 = vmatpush1.msra.mxu0 0.0
    %569 = vmatprep.subr.mxu0 0.0
    %570 = vmatpush1.msra.mxu0 0.0
    %571 = vmatprep.subr.mxu0 0.0
    %572 = vmatpush1.msra.mxu0 0.0
    %573 = vmatprep.subr.mxu0 0.0
    %574 = vmatpush1.msra.mxu0 0.0
    %575 = vmatprep.subr.mxu0 0.0
    %576 = vmatpush1.msra.mxu0 0.0
    %577 = vmatprep.subr.mxu0 0.0
    %578 = vmatpush1.msra.mxu0 0.0
    %579 = vmatprep.subr.mxu0 0.0
    %580 = vmatpush1.msra.mxu0 0.0
    %581 = vmatprep.subr.mxu0 0.0
    %582 = vmatpush1.msra.mxu0 0.0
    %583 = vmatprep.subr.mxu0 0.0
    %584 = vmatpush1.msra.mxu0 0.0
    %585 = vmatprep.subr.mxu0 0.0
    %586 = vmatpush1.msra.mxu0 0.0
    %587 = vmatprep.subr.mxu0 0.0
    %588 = vmatpush1.msra.mxu0 0.0
    %589 = vmatprep.subr.mxu0 0.0
    %590 = vmatpush1.msra.mxu0 0.0
    %591 = vmatprep.subr.mxu0 0.0
    %592 = vmatpush1.msra.mxu0 0.0
    %593 = vmatprep.subr.mxu0 0.0
    %594 = vmatpush1.msra.mxu0 0.0
    %595 = vmatprep.subr.mxu0 0.0
    %596 = vmatpush1.msra.mxu0 0.0
    %597 = vmatprep.subr.mxu0 0.0
    %598 = vmatpush1.msra.mxu0 0.0
    %599 = vmatprep.subr.mxu0 0.0
    %600 = vmatpush1.msra.mxu0 0.0
    %601 = vmatprep.mubr.f32.mxu0 0.0
    %602 = vmatmul.mubr.f32.gmra.mrb[0].mxu0 %v442
    %v603 = vpop.f32.mrb[0].mxu0
    %v604 = vadd.f32 %v438, %v603
    %v605 = vpop.f32.mrb[0].mxu0
    %606 = vmatprep.mubr.f32.mxu0 0.0
    %607 = vmatmul.mubr.f32.gmra.mrb[0].mxu0 %v445
    %v608 = vpop.f32.mrb[0].mxu0
    %v609 = vadd.f32 %v438, %v608
    %v610 = vpop.f32.mrb[0].mxu0
    %611 = vmatprep.mubr.f32.mxu0 0.0
    %612 = vmatmul.mubr.f32.gmra.mrb[0].mxu0 %v448
    %v613 = vpop.f32.mrb[0].mxu0
    %v614 = vadd.f32 %v438, %v613
    %v615 = vpop.f32.mrb[0].mxu0
    %616 = vmatprep.mubr.f32.mxu0 0.0
    %617 = vmatmul.mubr.f32.gmra.mrb[0].mxu0 %v451
    %v618 = vpop.f32.mrb[0].mxu0
    %v619 = vadd.f32 %v438, %v618
    %v620 = vpop.f32.mrb[0].mxu0
    %621 = vmatprep.mubr.f32.mxu0 0.0
    %622 = vmatmul.mubr.f32.gmra.mrb[0].mxu0 %v454
    %v623 = vpop.f32.mrb[0].mxu0
    %v624 = vadd.f32 %v438, %v623
    %v625 = vpop.f32.mrb[0].mxu0
    %626 = vmatprep.mubr.f32.mxu0 0.0
    %627 = vmatmul.mubr.f32.gmra.mrb[0].mxu0 %v457
    %v628 = vpop.f32.mrb[0].mxu0
    %v629 = vadd.f32 %v438, %v628
    %v630 = vpop.f32.mrb[0].mxu0
    %631 = vmatprep.mubr.f32.mxu0 0.0
    %632 = vmatmul.mubr.f32.gmra.mrb[0].mxu0 %v460
    %v633 = vpop.f32.mrb[0].mxu0
    %v634 = vadd.f32 %v438, %v633
    %v635 = vpop.f32.mrb[0].mxu0
    %636 = vmatprep.mubr.f32.mxu0 0.0
    %637 = vmatmul.mubr.f32.gmra.mrb[0].mxu0 %v463
    %v638 = vpop.f32.mrb[0].mxu0
    %v639 = vadd.f32 %v438, %v638
    %v640 = vpop.f32.mrb[0].mxu0
    %641 = vmatprep.mubr.f32.mxu0 0.0
    %642 = vmatmul.mubr.f32.gmra.mrb[0].mxu0 %v466
    %v643 = vpop.f32.mrb[0].mxu0
    %v644 = vadd.f32 %v438, %v643
    %v645 = vpop.f32.mrb[0].mxu0
    %646 = vmatprep.mubr.f32.mxu0 0.0
    %647 = vmatmul.mubr.f32.gmra.mrb[0].mxu0 %v469
    %v648 = vpop.f32.mrb[0].mxu0
    %v649 = vadd.f32 %v438, %v648
    %v650 = vpop.f32.mrb[0].mxu0
    %651 = vmatprep.mubr.f32.mxu0 0.0
    %652 = vmatmul.mubr.f32.gmra.mrb[0].mxu0 %v472
    %v653 = vpop.f32.mrb[0].mxu0
    %v654 = vadd.f32 %v438, %v653
    %v655 = vpop.f32.mrb[0].mxu0
    %656 = vmatprep.mubr.f32.mxu0 0.0
    %657 = vmatmul.mubr.f32.gmra.mrb[0].mxu0 %v475
    %v658 = vpop.f32.mrb[0].mxu0
    %v659 = vadd.f32 %v438, %v658
    %v660 = vpop.f32.mrb[0].mxu0
    %661 = vmatprep.mubr.f32.mxu0 0.0
    %662 = vmatmul.mubr.f32.gmra.mrb[0].mxu0 %v478
    %v663 = vpop.f32.mrb[0].mxu0
    %v664 = vadd.f32 %v438, %v663
    %v665 = vpop.f32.mrb[0].mxu0
    %666 = vmatprep.mubr.f32.mxu0 0.0
    %667 = vmatmul.mubr.f32.gmra.mrb[0].mxu0 %v481
    %v668 = vpop.f32.mrb[0].mxu0
    %v669 = vadd.f32 %v438, %v668
    %v670 = vpop.f32.mrb[0].mxu0
    %671 = vmatprep.mubr.f32.mxu0 0.0
    %672 = vmatmul.mubr.f32.gmra.mrb[0].mxu0 %v484
    %v673 = vpop.f32.mrb[0].mxu0
    %v674 = vadd.f32 %v438, %v673
    %v675 = vpop.f32.mrb[0].mxu0
    %676 = vmatprep.mubr.f32.mxu0 0.0
    %677 = vmatmul.mubr.f32.gmra.mrb[0].mxu0 %v487
    %v678 = vpop.f32.mrb[0].mxu0
    %v679 = vadd.f32 %v438, %v678
    %v680 = vpop.f32.mrb[0].mxu0
    %681 = vmatprep.mubr.f32.mxu0 0.0
    %682 = vmatmul.mubr.f32.gmra.mrb[0].mxu0 %v490
    %v683 = vpop.f32.mrb[0].mxu0
    %v684 = vadd.f32 %v438, %v683
    %v685 = vpop.f32.mrb[0].mxu0
    %686 = vmatprep.mubr.f32.mxu0 0.0
    %687 = vmatmul.mubr.f32.gmra.mrb[0].mxu0 %v493
    %v688 = vpop.f32.mrb[0].mxu0
    %v689 = vadd.f32 %v438, %v688
    %v690 = vpop.f32.mrb[0].mxu0
    %691 = vmatprep.mubr.f32.mxu0 0.0
    %692 = vmatmul.mubr.f32.gmra.mrb[0].mxu0 %v496
    %v693 = vpop.f32.mrb[0].mxu0
    %v694 = vadd.f32 %v438, %v693
    %v695 = vpop.f32.mrb[0].mxu0
    %696 = vmatprep.mubr.f32.mxu0 0.0
    %697 = vmatmul.mubr.f32.gmra.mrb[0].mxu0 %v499
    %v698 = vpop.f32.mrb[0].mxu0
    %v699 = vadd.f32 %v438, %v698
    %v700 = vpop.f32.mrb[0].mxu0
    %701 = vmatprep.mubr.f32.mxu0 0.0
    %702 = vmatmul.mubr.f32.gmra.mrb[0].mxu0 %v502
    %v703 = vpop.f32.mrb[0].mxu0
    %v704 = vadd.f32 %v438, %v703
    %v705 = vpop.f32.mrb[0].mxu0
    %706 = vmatprep.mubr.f32.mxu0 0.0
    %707 = vmatmul.mubr.f32.gmra.mrb[0].mxu0 %v505
    %v708 = vpop.f32.mrb[0].mxu0
    %v709 = vadd.f32 %v438, %v708
    %v710 = vpop.f32.mrb[0].mxu0
    %711 = vmatprep.mubr.f32.mxu0 0.0
    %712 = vmatmul.mubr.f32.gmra.mrb[0].mxu0 %v508
    %v713 = vpop.f32.mrb[0].mxu0
    %v714 = vadd.f32 %v438, %v713
    %v715 = vpop.f32.mrb[0].mxu0
    %716 = vmatprep.mubr.f32.mxu0 0.0
    %717 = vmatmul.mubr.f32.gmra.mrb[0].mxu0 %v511
    %v718 = vpop.f32.mrb[0].mxu0
    %v719 = vadd.f32 %v438, %v718
    %v720 = vpop.f32.mrb[0].mxu0
    %721 = vmatprep.mubr.f32.mxu0 0.0
    %722 = vmatmul.mubr.f32.gmra.mrb[0].mxu0 %v514
    %v723 = vpop.f32.mrb[0].mxu0
    %v724 = vadd.f32 %v438, %v723
    %v725 = vpop.f32.mrb[0].mxu0
    %726 = vmatprep.mubr.f32.mxu0 0.0
    %727 = vmatmul.mubr.f32.gmra.mrb[0].mxu0 %v517
    %v728 = vpop.f32.mrb[0].mxu0
    %v729 = vadd.f32 %v438, %v728
    %v730 = vpop.f32.mrb[0].mxu0
    %731 = vmatprep.mubr.f32.mxu0 0.0
    %732 = vmatmul.mubr.f32.gmra.mrb[0].mxu0 %v520
    %v733 = vpop.f32.mrb[0].mxu0
    %v734 = vadd.f32 %v438, %v733
    %v735 = vpop.f32.mrb[0].mxu0
    %736 = vmatprep.mubr.f32.mxu0 0.0
    %737 = vmatmul.mubr.f32.gmra.mrb[0].mxu0 %v523
    %v738 = vpop.f32.mrb[0].mxu0
    %v739 = vadd.f32 %v438, %v738
    %v740 = vpop.f32.mrb[0].mxu0
    %741 = vmatprep.mubr.f32.mxu0 0.0
    %742 = vmatmul.mubr.f32.gmra.mrb[0].mxu0 %v526
    %v743 = vpop.f32.mrb[0].mxu0
    %v744 = vadd.f32 %v438, %v743
    %v745 = vpop.f32.mrb[0].mxu0
    %746 = vmatprep.mubr.f32.mxu0 0.0
    %747 = vmatmul.mubr.f32.gmra.mrb[0].mxu0 %v529
    %v748 = vpop.f32.mrb[0].mxu0
    %v749 = vadd.f32 %v438, %v748
    %v750 = vpop.f32.mrb[0].mxu0
    %751 = vmatprep.mubr.f32.mxu0 0.0
    %752 = vmatmul.mubr.f32.gmra.mrb[0].mxu0 %v532
    %v753 = vpop.f32.mrb[0].mxu0
    %v754 = vadd.f32 %v438, %v753
    %v755 = vpop.f32.mrb[0].mxu0
    %756 = vmatprep.mubr.f32.mxu0 0.0
    %757 = vmatmul.mubr.f32.gmra.mrb[0].mxu0 %v535
    %v758 = vpop.f32.mrb[0].mxu0
    %v759 = vadd.f32 %v438, %v758
    %v760 = vpop.f32.mrb[0].mxu0
    %761 = vdwg.mxu0
    %v762 = vmax.f32 %v604, 0.0
    %v763 = vmax.f32 %v609, 0.0
    %v764 = vmax.f32 %v614, 0.0
    %v765 = vmax.f32 %v619, 0.0
    %v766 = vmax.f32 %v624, 0.0
    %v767 = vmax.f32 %v629, 0.0
    %v768 = vmax.f32 %v634, 0.0
    %v769 = vmax.f32 %v639, 0.0
    %v770 = vmax.f32 %v644, 0.0
    %v771 = vmax.f32 %v649, 0.0
    %v772 = vmax.f32 %v654, 0.0
    %v773 = vmax.f32 %v659, 0.0
    %v774 = vmax.f32 %v664, 0.0
    %v775 = vmax.f32 %v669, 0.0
    %v776 = vmax.f32 %v674, 0.0
    %v777 = vmax.f32 %v679, 0.0
    %v778 = vmax.f32 %v684, 0.0
    %v779 = vmax.f32 %v689, 0.0
    %v780 = vmax.f32 %v694, 0.0
    %v781 = vmax.f32 %v699, 0.0
    %v782 = vmax.f32 %v704, 0.0
    %v783 = vmax.f32 %v709, 0.0
    %v784 = vmax.f32 %v714, 0.0
    %v785 = vmax.f32 %v719, 0.0
    %v786 = vmax.f32 %v724, 0.0
    %v787 = vmax.f32 %v729, 0.0
    %v788 = vmax.f32 %v734, 0.0
    %v789 = vmax.f32 %v739, 0.0
    %v790 = vmax.f32 %v744, 0.0
    %v791 = vmax.f32 %v749, 0.0
    %v792 = vmax.f32 %v754, 0.0
    %v793 = vmax.f32 %v759, 0.0
    %v794 = vld [vmem:[%s6] sm:$0xff]
    %v795 = vld [vmem:[%s6 + $0x8] sm:$0xff]
    %v796 = vld [vmem:[%s6 + $0x10] sm:$0xff]
    %v797 = vld [vmem:[%s6 + $0x18] sm:$0xff]
    %v798 = vld [vmem:[%s6 + $0x20] sm:$0xff]
    %v799 = vld [vmem:[%s6 + $0x28] sm:$0xff]
    %v800 = vld [vmem:[%s6 + $0x30] sm:$0xff]
    %v801 = vld [vmem:[%s6 + $0x38] sm:$0xff]
    %v802 = vld [vmem:[%s7] sm:$0x1]
    %v804 = vlaneseq
    %v805 = vshrl.u32 %v804, 7
    %v806 = vsub.s32 0, %v805
    %v807 = vrot.slane %v802, %v806
    %v810 = vsel %vm440, %v762, 0
    %v813 = vsel %vm440, %v763, 0
    %v816 = vsel %vm440, %v764, 0
    %v819 = vsel %vm440, %v765, 0
    %v822 = vsel %vm440, %v766, 0
    %v825 = vsel %vm440, %v767, 0
    %v828 = vsel %vm440, %v768, 0
    %v831 = vsel %vm440, %v769, 0
    %v834 = vsel %vm440, %v770, 0
    %v837 = vsel %vm440, %v771, 0
    %v840 = vsel %vm440, %v772, 0
    %v843 = vsel %vm440, %v773, 0
    %v846 = vsel %vm440, %v774, 0
    %v849 = vsel %vm440, %v775, 0
    %v852 = vsel %vm440, %v776, 0
    %v855 = vsel %vm440, %v777, 0
    %v858 = vsel %vm440, %v778, 0
    %v861 = vsel %vm440, %v779, 0
    %v864 = vsel %vm440, %v780, 0
    %v867 = vsel %vm440, %v781, 0
    %v870 = vsel %vm440, %v782, 0
    %v873 = vsel %vm440, %v783, 0
    %v876 = vsel %vm440, %v784, 0
    %v879 = vsel %vm440, %v785, 0
    %v882 = vsel %vm440, %v786, 0
    %v885 = vsel %vm440, %v787, 0
    %v888 = vsel %vm440, %v788, 0
    %v891 = vsel %vm440, %v789, 0
    %v894 = vsel %vm440, %v790, 0
    %v897 = vsel %vm440, %v791, 0
    %v900 = vsel %vm440, %v792, 0
    %v903 = vsel %vm440, %v793, 0
    %905 = vmatprep.subr.mxu0 0.0
    %906 = vmatpush1.msra.mxu0 %v794
    %907 = vmatprep.subr.mxu0 0.0
    %908 = vmatpush1.msra.mxu0 %v795
    %909 = vmatprep.subr.mxu0 0.0
    %910 = vmatpush1.msra.mxu0 %v796
    %911 = vmatprep.subr.mxu0 0.0
    %912 = vmatpush1.msra.mxu0 %v797
    %913 = vmatprep.subr.mxu0 0.0
    %914 = vmatpush1.msra.mxu0 %v798
    %915 = vmatprep.subr.mxu0 0.0
    %916 = vmatpush1.msra.mxu0 %v799
    %917 = vmatprep.subr.mxu0 0.0
    %918 = vmatpush1.msra.mxu0 %v800
    %919 = vmatprep.subr.mxu0 0.0
    %920 = vmatpush1.msra.mxu0 %v801
    %921 = vmatprep.subr.mxu0 0.0
    %922 = vmatpush1.msra.mxu0 0.0
    %923 = vmatprep.subr.mxu0 0.0
    %924 = vmatpush1.msra.mxu0 0.0
    %925 = vmatprep.subr.mxu0 0.0
    %926 = vmatpush1.msra.mxu0 0.0
    %927 = vmatprep.subr.mxu0 0.0
    %928 = vmatpush1.msra.mxu0 0.0
    %929 = vmatprep.subr.mxu0 0.0
    %930 = vmatpush1.msra.mxu0 0.0
    %931 = vmatprep.subr.mxu0 0.0
    %932 = vmatpush1.msra.mxu0 0.0
    %933 = vmatprep.subr.mxu0 0.0
    %934 = vmatpush1.msra.mxu0 0.0
    %935 = vmatprep.subr.mxu0 0.0
    %936 = vmatpush1.msra.mxu0 0.0
    %937 = vmatprep.subr.mxu0 0.0
    %938 = vmatpush1.msra.mxu0 0.0
    %939 = vmatprep.subr.mxu0 0.0
    %940 = vmatpush1.msra.mxu0 0.0
    %941 = vmatprep.subr.mxu0 0.0
    %942 = vmatpush1.msra.mxu0 0.0
    %943 = vmatprep.subr.mxu0 0.0
    %944 = vmatpush1.msra.mxu0 0.0
    %945 = vmatprep.subr.mxu0 0.0
    %946 = vmatpush1.msra.mxu0 0.0
    %947 = vmatprep.subr.mxu0 0.0
    %948 = vmatpush1.msra.mxu0 0.0
    %949 = vmatprep.subr.mxu0 0.0
    %950 = vmatpush1.msra.mxu0 0.0
    %951 = vmatprep.subr.mxu0 0.0
    %952 = vmatpush1.msra.mxu0 0.0
    %953 = vmatprep.subr.mxu0 0.0
    %954 = vmatpush1.msra.mxu0 0.0
    %955 = vmatprep.subr.mxu0 0.0
    %956 = vmatpush1.msra.mxu0 0.0
    %957 = vmatprep.subr.mxu0 0.0
    %958 = vmatpush1.msra.mxu0 0.0
    %959 = vmatprep.subr.mxu0 0.0
    %960 = vmatpush1.msra.mxu0 0.0
    %961 = vmatprep.subr.mxu0 0.0
    %962 = vmatpush1.msra.mxu0 0.0
    %963 = vmatprep.subr.mxu0 0.0
    %964 = vmatpush1.msra.mxu0 0.0
    %965 = vmatprep.subr.mxu0 0.0
    %966 = vmatpush1.msra.mxu0 0.0
    %967 = vmatprep.subr.mxu0 0.0
    %968 = vmatpush1.msra.mxu0 0.0
    %969 = vmatprep.mubr.f32.mxu0 0.0
    %970 = vmatmul.mubr.f32.gmra.mrb[0].mxu0 %v810
    %v971 = vpop.f32.mrb[0].mxu0
    %v972 = vadd.f32 %v807, %v971
    %v973 = vpop.f32.mrb[0].mxu0
    %974 = vmatprep.mubr.f32.mxu0 0.0
    %975 = vmatmul.mubr.f32.gmra.mrb[0].mxu0 %v813
    %v976 = vpop.f32.mrb[0].mxu0
    %v977 = vadd.f32 %v807, %v976
    %v978 = vpop.f32.mrb[0].mxu0
    %979 = vmatprep.mubr.f32.mxu0 0.0
    %980 = vmatmul.mubr.f32.gmra.mrb[0].mxu0 %v816
    %v981 = vpop.f32.mrb[0].mxu0
    %v982 = vadd.f32 %v807, %v981
    %v983 = vpop.f32.mrb[0].mxu0
    %984 = vmatprep.mubr.f32.mxu0 0.0
    %985 = vmatmul.mubr.f32.gmra.mrb[0].mxu0 %v819
    %v986 = vpop.f32.mrb[0].mxu0
    %v987 = vadd.f32 %v807, %v986
    %v988 = vpop.f32.mrb[0].mxu0
    %989 = vmatprep.mubr.f32.mxu0 0.0
    %990 = vmatmul.mubr.f32.gmra.mrb[0].mxu0 %v822
    %v991 = vpop.f32.mrb[0].mxu0
    %v992 = vadd.f32 %v807, %v991
    %v993 = vpop.f32.mrb[0].mxu0
    %994 = vmatprep.mubr.f32.mxu0 0.0
    %995 = vmatmul.mubr.f32.gmra.mrb[0].mxu0 %v825
    %v996 = vpop.f32.mrb[0].mxu0
    %v997 = vadd.f32 %v807, %v996
    %v998 = vpop.f32.mrb[0].mxu0
    %999 = vmatprep.mubr.f32.mxu0 0.0
    %1000 = vmatmul.mubr.f32.gmra.mrb[0].mxu0 %v828
    %v1001 = vpop.f32.mrb[0].mxu0
    %v1002 = vadd.f32 %v807, %v1001
    %v1003 = vpop.f32.mrb[0].mxu0
    %1004 = vmatprep.mubr.f32.mxu0 0.0
    %1005 = vmatmul.mubr.f32.gmra.mrb[0].mxu0 %v831
    %v1006 = vpop.f32.mrb[0].mxu0
    %v1007 = vadd.f32 %v807, %v1006
    %v1008 = vpop.f32.mrb[0].mxu0
    %1009 = vmatprep.mubr.f32.mxu0 0.0
    %1010 = vmatmul.mubr.f32.gmra.mrb[0].mxu0 %v834
    %v1011 = vpop.f32.mrb[0].mxu0
    %v1012 = vadd.f32 %v807, %v1011
    %v1013 = vpop.f32.mrb[0].mxu0
    %1014 = vmatprep.mubr.f32.mxu0 0.0
    %1015 = vmatmul.mubr.f32.gmra.mrb[0].mxu0 %v837
    %v1016 = vpop.f32.mrb[0].mxu0
    %v1017 = vadd.f32 %v807, %v1016
    %v1018 = vpop.f32.mrb[0].mxu0
    %1019 = vmatprep.mubr.f32.mxu0 0.0
    %1020 = vmatmul.mubr.f32.gmra.mrb[0].mxu0 %v840
    %v1021 = vpop.f32.mrb[0].mxu0
    %v1022 = vadd.f32 %v807, %v1021
    %v1023 = vpop.f32.mrb[0].mxu0
    %1024 = vmatprep.mubr.f32.mxu0 0.0
    %1025 = vmatmul.mubr.f32.gmra.mrb[0].mxu0 %v843
    %v1026 = vpop.f32.mrb[0].mxu0
    %v1027 = vadd.f32 %v807, %v1026
    %v1028 = vpop.f32.mrb[0].mxu0
    %1029 = vmatprep.mubr.f32.mxu0 0.0
    %1030 = vmatmul.mubr.f32.gmra.mrb[0].mxu0 %v846
    %v1031 = vpop.f32.mrb[0].mxu0
    %v1032 = vadd.f32 %v807, %v1031
    %v1033 = vpop.f32.mrb[0].mxu0
    %1034 = vmatprep.mubr.f32.mxu0 0.0
    %1035 = vmatmul.mubr.f32.gmra.mrb[0].mxu0 %v849
    %v1036 = vpop.f32.mrb[0].mxu0
    %v1037 = vadd.f32 %v807, %v1036
    %v1038 = vpop.f32.mrb[0].mxu0
    %1039 = vmatprep.mubr.f32.mxu0 0.0
    %1040 = vmatmul.mubr.f32.gmra.mrb[0].mxu0 %v852
    %v1041 = vpop.f32.mrb[0].mxu0
    %v1042 = vadd.f32 %v807, %v1041
    %v1043 = vpop.f32.mrb[0].mxu0
    %1044 = vmatprep.mubr.f32.mxu0 0.0
    %1045 = vmatmul.mubr.f32.gmra.mrb[0].mxu0 %v855
    %v1046 = vpop.f32.mrb[0].mxu0
    %v1047 = vadd.f32 %v807, %v1046
    %v1048 = vpop.f32.mrb[0].mxu0
    %1049 = vmatprep.mubr.f32.mxu0 0.0
    %1050 = vmatmul.mubr.f32.gmra.mrb[0].mxu0 %v858
    %v1051 = vpop.f32.mrb[0].mxu0
    %v1052 = vadd.f32 %v807, %v1051
    %v1053 = vpop.f32.mrb[0].mxu0
    %1054 = vmatprep.mubr.f32.mxu0 0.0
    %1055 = vmatmul.mubr.f32.gmra.mrb[0].mxu0 %v861
    %v1056 = vpop.f32.mrb[0].mxu0
    %v1057 = vadd.f32 %v807, %v1056
    %v1058 = vpop.f32.mrb[0].mxu0
    %1059 = vmatprep.mubr.f32.mxu0 0.0
    %1060 = vmatmul.mubr.f32.gmra.mrb[0].mxu0 %v864
    %v1061 = vpop.f32.mrb[0].mxu0
    %v1062 = vadd.f32 %v807, %v1061
    %v1063 = vpop.f32.mrb[0].mxu0
    %1064 = vmatprep.mubr.f32.mxu0 0.0
    %1065 = vmatmul.mubr.f32.gmra.mrb[0].mxu0 %v867
    %v1066 = vpop.f32.mrb[0].mxu0
    %v1067 = vadd.f32 %v807, %v1066
    %v1068 = vpop.f32.mrb[0].mxu0
    %1069 = vmatprep.mubr.f32.mxu0 0.0
    %1070 = vmatmul.mubr.f32.gmra.mrb[0].mxu0 %v870
    %v1071 = vpop.f32.mrb[0].mxu0
    %v1072 = vadd.f32 %v807, %v1071
    %v1073 = vpop.f32.mrb[0].mxu0
    %1074 = vmatprep.mubr.f32.mxu0 0.0
    %1075 = vmatmul.mubr.f32.gmra.mrb[0].mxu0 %v873
    %v1076 = vpop.f32.mrb[0].mxu0
    %v1077 = vadd.f32 %v807, %v1076
    %v1078 = vpop.f32.mrb[0].mxu0
    %1079 = vmatprep.mubr.f32.mxu0 0.0
    %1080 = vmatmul.mubr.f32.gmra.mrb[0].mxu0 %v876
    %v1081 = vpop.f32.mrb[0].mxu0
    %v1082 = vadd.f32 %v807, %v1081
    %v1083 = vpop.f32.mrb[0].mxu0
    %1084 = vmatprep.mubr.f32.mxu0 0.0
    %1085 = vmatmul.mubr.f32.gmra.mrb[0].mxu0 %v879
    %v1086 = vpop.f32.mrb[0].mxu0
    %v1087 = vadd.f32 %v807, %v1086
    %v1088 = vpop.f32.mrb[0].mxu0
    %1089 = vmatprep.mubr.f32.mxu0 0.0
    %1090 = vmatmul.mubr.f32.gmra.mrb[0].mxu0 %v882
    %v1091 = vpop.f32.mrb[0].mxu0
    %v1092 = vadd.f32 %v807, %v1091
    %v1093 = vpop.f32.mrb[0].mxu0
    %1094 = vmatprep.mubr.f32.mxu0 0.0
    %1095 = vmatmul.mubr.f32.gmra.mrb[0].mxu0 %v885
    %v1096 = vpop.f32.mrb[0].mxu0
    %v1097 = vadd.f32 %v807, %v1096
    %v1098 = vpop.f32.mrb[0].mxu0
    %1099 = vmatprep.mubr.f32.mxu0 0.0
    %1100 = vmatmul.mubr.f32.gmra.mrb[0].mxu0 %v888
    %v1101 = vpop.f32.mrb[0].mxu0
    %v1102 = vadd.f32 %v807, %v1101
    %v1103 = vpop.f32.mrb[0].mxu0
    %1104 = vmatprep.mubr.f32.mxu0 0.0
    %1105 = vmatmul.mubr.f32.gmra.mrb[0].mxu0 %v891
    %v1106 = vpop.f32.mrb[0].mxu0
    %v1107 = vadd.f32 %v807, %v1106
    %v1108 = vpop.f32.mrb[0].mxu0
    %1109 = vmatprep.mubr.f32.mxu0 0.0
    %1110 = vmatmul.mubr.f32.gmra.mrb[0].mxu0 %v894
    %v1111 = vpop.f32.mrb[0].mxu0
    %v1112 = vadd.f32 %v807, %v1111
    %v1113 = vpop.f32.mrb[0].mxu0
    %1114 = vmatprep.mubr.f32.mxu0 0.0
    %1115 = vmatmul.mubr.f32.gmra.mrb[0].mxu0 %v897
    %v1116 = vpop.f32.mrb[0].mxu0
    %v1117 = vadd.f32 %v807, %v1116
    %v1118 = vpop.f32.mrb[0].mxu0
    %1119 = vmatprep.mubr.f32.mxu0 0.0
    %1120 = vmatmul.mubr.f32.gmra.mrb[0].mxu0 %v900
    %v1121 = vpop.f32.mrb[0].mxu0
    %v1122 = vadd.f32 %v807, %v1121
    %v1123 = vpop.f32.mrb[0].mxu0
    %1124 = vmatprep.mubr.f32.mxu0 0.0
    %1125 = vmatmul.mubr.f32.gmra.mrb[0].mxu0 %v903
    %v1126 = vpop.f32.mrb[0].mxu0
    %v1127 = vadd.f32 %v807, %v1126
    %v1128 = vpop.f32.mrb[0].mxu0
    %1129 = vdwg.mxu0
    %vm1130 = vcmask 64512
    %v1131 = vsel %vm1130, %v972, -inf
    %1132 = vmax.xlane.f32.xlu0 %v1131
    %v1133 = vpop.xlane.xlu0 %1132
    %v1134 = vsel %vm1130, %v977, -inf
    %1135 = vmax.xlane.f32.xlu0 %v1134
    %v1136 = vpop.xlane.xlu0 %1135
    %v1137 = vsel %vm1130, %v982, -inf
    %1138 = vmax.xlane.f32.xlu0 %v1137
    %v1139 = vpop.xlane.xlu0 %1138
    %v1140 = vsel %vm1130, %v987, -inf
    %1141 = vmax.xlane.f32.xlu0 %v1140
    %v1142 = vpop.xlane.xlu0 %1141
    %v1143 = vsel %vm1130, %v992, -inf
    %1144 = vmax.xlane.f32.xlu0 %v1143
    %v1145 = vpop.xlane.xlu0 %1144
    %v1146 = vsel %vm1130, %v997, -inf
    %1147 = vmax.xlane.f32.xlu0 %v1146
    %v1148 = vpop.xlane.xlu0 %1147
    %v1149 = vsel %vm1130, %v1002, -inf
    %1150 = vmax.xlane.f32.xlu0 %v1149
    %v1151 = vpop.xlane.xlu0 %1150
    %v1152 = vsel %vm1130, %v1007, -inf
    %1153 = vmax.xlane.f32.xlu0 %v1152
    %v1154 = vpop.xlane.xlu0 %1153
    %v1155 = vsel %vm1130, %v1012, -inf
    %1156 = vmax.xlane.f32.xlu0 %v1155
    %v1157 = vpop.xlane.xlu0 %1156
    %v1158 = vsel %vm1130, %v1017, -inf
    %1159 = vmax.xlane.f32.xlu0 %v1158
    %v1160 = vpop.xlane.xlu0 %1159
    %v1161 = vsel %vm1130, %v1022, -inf
    %1162 = vmax.xlane.f32.xlu0 %v1161
    %v1163 = vpop.xlane.xlu0 %1162
    %v1164 = vsel %vm1130, %v1027, -inf
    %1165 = vmax.xlane.f32.xlu0 %v1164
    %v1166 = vpop.xlane.xlu0 %1165
    %v1167 = vsel %vm1130, %v1032, -inf
    %1168 = vmax.xlane.f32.xlu0 %v1167
    %v1169 = vpop.xlane.xlu0 %1168
    %v1170 = vsel %vm1130, %v1037, -inf
    %1171 = vmax.xlane.f32.xlu0 %v1170
    %v1172 = vpop.xlane.xlu0 %1171
    %v1173 = vsel %vm1130, %v1042, -inf
    %1174 = vmax.xlane.f32.xlu0 %v1173
    %v1175 = vpop.xlane.xlu0 %1174
    %v1176 = vsel %vm1130, %v1047, -inf
    %1177 = vmax.xlane.f32.xlu0 %v1176
    %v1178 = vpop.xlane.xlu0 %1177
    %v1179 = vsel %vm1130, %v1052, -inf
    %1180 = vmax.xlane.f32.xlu0 %v1179
    %v1181 = vpop.xlane.xlu0 %1180
    %v1182 = vsel %vm1130, %v1057, -inf
    %1183 = vmax.xlane.f32.xlu0 %v1182
    %v1184 = vpop.xlane.xlu0 %1183
    %v1185 = vsel %vm1130, %v1062, -inf
    %1186 = vmax.xlane.f32.xlu0 %v1185
    %v1187 = vpop.xlane.xlu0 %1186
    %v1188 = vsel %vm1130, %v1067, -inf
    %1189 = vmax.xlane.f32.xlu0 %v1188
    %v1190 = vpop.xlane.xlu0 %1189
    %v1191 = vsel %vm1130, %v1072, -inf
    %1192 = vmax.xlane.f32.xlu0 %v1191
    %v1193 = vpop.xlane.xlu0 %1192
    %v1194 = vsel %vm1130, %v1077, -inf
    %1195 = vmax.xlane.f32.xlu0 %v1194
    %v1196 = vpop.xlane.xlu0 %1195
    %v1197 = vsel %vm1130, %v1082, -inf
    %1198 = vmax.xlane.f32.xlu0 %v1197
    %v1199 = vpop.xlane.xlu0 %1198
    %v1200 = vsel %vm1130, %v1087, -inf
    %1201 = vmax.xlane.f32.xlu0 %v1200
    %v1202 = vpop.xlane.xlu0 %1201
    %v1203 = vsel %vm1130, %v1092, -inf
    %1204 = vmax.xlane.f32.xlu0 %v1203
    %v1205 = vpop.xlane.xlu0 %1204
    %v1206 = vsel %vm1130, %v1097, -inf
    %1207 = vmax.xlane.f32.xlu0 %v1206
    %v1208 = vpop.xlane.xlu0 %1207
    %v1209 = vsel %vm1130, %v1102, -inf
    %1210 = vmax.xlane.f32.xlu0 %v1209
    %v1211 = vpop.xlane.xlu0 %1210
    %v1212 = vsel %vm1130, %v1107, -inf
    %1213 = vmax.xlane.f32.xlu0 %v1212
    %v1214 = vpop.xlane.xlu0 %1213
    %v1215 = vsel %vm1130, %v1112, -inf
    %1216 = vmax.xlane.f32.xlu0 %v1215
    %v1217 = vpop.xlane.xlu0 %1216
    %v1218 = vsel %vm1130, %v1117, -inf
    %1219 = vmax.xlane.f32.xlu0 %v1218
    %v1220 = vpop.xlane.xlu0 %1219
    %v1221 = vsel %vm1130, %v1122, -inf
    %1222 = vmax.xlane.f32.xlu0 %v1221
    %v1223 = vpop.xlane.xlu0 %1222
    %v1224 = vsel %vm1130, %v1127, -inf
    %1225 = vmax.xlane.f32.xlu0 %v1224
    %v1226 = vpop.xlane.xlu0 %1225
    %v1227 = vsub.f32 %v972, %v1133
    %v1228 = vsub.f32 %v977, %v1136
    %v1229 = vsub.f32 %v982, %v1139
    %v1230 = vsub.f32 %v987, %v1142
    %v1231 = vsub.f32 %v992, %v1145
    %v1232 = vsub.f32 %v997, %v1148
    %v1233 = vsub.f32 %v1002, %v1151
    %v1234 = vsub.f32 %v1007, %v1154
    %v1235 = vsub.f32 %v1012, %v1157
    %v1236 = vsub.f32 %v1017, %v1160
    %v1237 = vsub.f32 %v1022, %v1163
    %v1238 = vsub.f32 %v1027, %v1166
    %v1239 = vsub.f32 %v1032, %v1169
    %v1240 = vsub.f32 %v1037, %v1172
    %v1241 = vsub.f32 %v1042, %v1175
    %v1242 = vsub.f32 %v1047, %v1178
    %v1243 = vsub.f32 %v1052, %v1181
    %v1244 = vsub.f32 %v1057, %v1184
    %v1245 = vsub.f32 %v1062, %v1187
    %v1246 = vsub.f32 %v1067, %v1190
    %v1247 = vsub.f32 %v1072, %v1193
    %v1248 = vsub.f32 %v1077, %v1196
    %v1249 = vsub.f32 %v1082, %v1199
    %v1250 = vsub.f32 %v1087, %v1202
    %v1251 = vsub.f32 %v1092, %v1205
    %v1252 = vsub.f32 %v1097, %v1208
    %v1253 = vsub.f32 %v1102, %v1211
    %v1254 = vsub.f32 %v1107, %v1214
    %v1255 = vsub.f32 %v1112, %v1217
    %v1256 = vsub.f32 %v1117, %v1220
    %v1257 = vsub.f32 %v1122, %v1223
    %v1258 = vsub.f32 %v1127, %v1226
    %v1259 = vmul.f32 %v1227, 1.442695
    %v1260 = vpow.pop %v1259
    %v1261 = vmul.f32 %v1228, 1.442695
    %v1262 = vpow.pop %v1261
    %v1263 = vmul.f32 %v1229, 1.442695
    %v1264 = vpow.pop %v1263
    %v1265 = vmul.f32 %v1230, 1.442695
    %v1266 = vpow.pop %v1265
    %v1267 = vmul.f32 %v1231, 1.442695
    %v1268 = vpow.pop %v1267
    %v1269 = vmul.f32 %v1232, 1.442695
    %v1270 = vpow.pop %v1269
    %v1271 = vmul.f32 %v1233, 1.442695
    %v1272 = vpow.pop %v1271
    %v1273 = vmul.f32 %v1234, 1.442695
    %v1274 = vpow.pop %v1273
    %v1275 = vmul.f32 %v1235, 1.442695
    %v1276 = vpow.pop %v1275
    %v1277 = vmul.f32 %v1236, 1.442695
    %v1278 = vpow.pop %v1277
    %v1279 = vmul.f32 %v1237, 1.442695
    %v1280 = vpow.pop %v1279
    %v1281 = vmul.f32 %v1238, 1.442695
    %v1282 = vpow.pop %v1281
    %v1283 = vmul.f32 %v1239, 1.442695
    %v1284 = vpow.pop %v1283
    %v1285 = vmul.f32 %v1240, 1.442695
    %v1286 = vpow.pop %v1285
    %v1287 = vmul.f32 %v1241, 1.442695
    %v1288 = vpow.pop %v1287
    %v1289 = vmul.f32 %v1242, 1.442695
    %v1290 = vpow.pop %v1289
    %v1291 = vmul.f32 %v1243, 1.442695
    %v1292 = vpow.pop %v1291
    %v1293 = vmul.f32 %v1244, 1.442695
    %v1294 = vpow.pop %v1293
    %v1295 = vmul.f32 %v1245, 1.442695
    %v1296 = vpow.pop %v1295
    %v1297 = vmul.f32 %v1246, 1.442695
    %v1298 = vpow.pop %v1297
    %v1299 = vmul.f32 %v1247, 1.442695
    %v1300 = vpow.pop %v1299
    %v1301 = vmul.f32 %v1248, 1.442695
    %v1302 = vpow.pop %v1301
    %v1303 = vmul.f32 %v1249, 1.442695
    %v1304 = vpow.pop %v1303
    %v1305 = vmul.f32 %v1250, 1.442695
    %v1306 = vpow.pop %v1305
    %v1307 = vmul.f32 %v1251, 1.442695
    %v1308 = vpow.pop %v1307
    %v1309 = vmul.f32 %v1252, 1.442695
    %v1310 = vpow.pop %v1309
    %v1311 = vmul.f32 %v1253, 1.442695
    %v1312 = vpow.pop %v1311
    %v1313 = vmul.f32 %v1254, 1.442695
    %v1314 = vpow.pop %v1313
    %v1315 = vmul.f32 %v1255, 1.442695
    %v1316 = vpow.pop %v1315
    %v1317 = vmul.f32 %v1256, 1.442695
    %v1318 = vpow.pop %v1317
    %v1319 = vmul.f32 %v1257, 1.442695
    %v1320 = vpow.pop %v1319
    %v1321 = vmul.f32 %v1258, 1.442695
    %v1322 = vpow.pop %v1321
    %v1323 = vsel %vm1130, %v1260, 0.0
    %1324 = vadd.xlane.f32.xlu0 %v1323
    %v1325 = vpop.xlane.xlu0 %1324
    %v1326 = vsel %vm1130, %v1262, 0.0
    %1327 = vadd.xlane.f32.xlu0 %v1326
    %v1328 = vpop.xlane.xlu0 %1327
    %v1329 = vsel %vm1130, %v1264, 0.0
    %1330 = vadd.xlane.f32.xlu0 %v1329
    %v1331 = vpop.xlane.xlu0 %1330
    %v1332 = vsel %vm1130, %v1266, 0.0
    %1333 = vadd.xlane.f32.xlu0 %v1332
    %v1334 = vpop.xlane.xlu0 %1333
    %v1335 = vsel %vm1130, %v1268, 0.0
    %1336 = vadd.xlane.f32.xlu0 %v1335
    %v1337 = vpop.xlane.xlu0 %1336
    %v1338 = vsel %vm1130, %v1270, 0.0
    %1339 = vadd.xlane.f32.xlu0 %v1338
    %v1340 = vpop.xlane.xlu0 %1339
    %v1341 = vsel %vm1130, %v1272, 0.0
    %1342 = vadd.xlane.f32.xlu0 %v1341
    %v1343 = vpop.xlane.xlu0 %1342
    %v1344 = vsel %vm1130, %v1274, 0.0
    %1345 = vadd.xlane.f32.xlu0 %v1344
    %v1346 = vpop.xlane.xlu0 %1345
    %v1347 = vsel %vm1130, %v1276, 0.0
    %1348 = vadd.xlane.f32.xlu0 %v1347
    %v1349 = vpop.xlane.xlu0 %1348
    %v1350 = vsel %vm1130, %v1278, 0.0
    %1351 = vadd.xlane.f32.xlu0 %v1350
    %v1352 = vpop.xlane.xlu0 %1351
    %v1353 = vsel %vm1130, %v1280, 0.0
    %1354 = vadd.xlane.f32.xlu0 %v1353
    %v1355 = vpop.xlane.xlu0 %1354
    %v1356 = vsel %vm1130, %v1282, 0.0
    %1357 = vadd.xlane.f32.xlu0 %v1356
    %v1358 = vpop.xlane.xlu0 %1357
    %v1359 = vsel %vm1130, %v1284, 0.0
    %1360 = vadd.xlane.f32.xlu0 %v1359
    %v1361 = vpop.xlane.xlu0 %1360
    %v1362 = vsel %vm1130, %v1286, 0.0
    %1363 = vadd.xlane.f32.xlu0 %v1362
    %v1364 = vpop.xlane.xlu0 %1363
    %v1365 = vsel %vm1130, %v1288, 0.0
    %1366 = vadd.xlane.f32.xlu0 %v1365
    %v1367 = vpop.xlane.xlu0 %1366
    %v1368 = vsel %vm1130, %v1290, 0.0
    %1369 = vadd.xlane.f32.xlu0 %v1368
    %v1370 = vpop.xlane.xlu0 %1369
    %v1371 = vsel %vm1130, %v1292, 0.0
    %1372 = vadd.xlane.f32.xlu0 %v1371
    %v1373 = vpop.xlane.xlu0 %1372
    %v1374 = vsel %vm1130, %v1294, 0.0
    %1375 = vadd.xlane.f32.xlu0 %v1374
    %v1376 = vpop.xlane.xlu0 %1375
    %v1377 = vsel %vm1130, %v1296, 0.0
    %1378 = vadd.xlane.f32.xlu0 %v1377
    %v1379 = vpop.xlane.xlu0 %1378
    %v1380 = vsel %vm1130, %v1298, 0.0
    %1381 = vadd.xlane.f32.xlu0 %v1380
    %v1382 = vpop.xlane.xlu0 %1381
    %v1383 = vsel %vm1130, %v1300, 0.0
    %1384 = vadd.xlane.f32.xlu0 %v1383
    %v1385 = vpop.xlane.xlu0 %1384
    %v1386 = vsel %vm1130, %v1302, 0.0
    %1387 = vadd.xlane.f32.xlu0 %v1386
    %v1388 = vpop.xlane.xlu0 %1387
    %v1389 = vsel %vm1130, %v1304, 0.0
    %1390 = vadd.xlane.f32.xlu0 %v1389
    %v1391 = vpop.xlane.xlu0 %1390
    %v1392 = vsel %vm1130, %v1306, 0.0
    %1393 = vadd.xlane.f32.xlu0 %v1392
    %v1394 = vpop.xlane.xlu0 %1393
    %v1395 = vsel %vm1130, %v1308, 0.0
    %1396 = vadd.xlane.f32.xlu0 %v1395
    %v1397 = vpop.xlane.xlu0 %1396
    %v1398 = vsel %vm1130, %v1310, 0.0
    %1399 = vadd.xlane.f32.xlu0 %v1398
    %v1400 = vpop.xlane.xlu0 %1399
    %v1401 = vsel %vm1130, %v1312, 0.0
    %1402 = vadd.xlane.f32.xlu0 %v1401
    %v1403 = vpop.xlane.xlu0 %1402
    %v1404 = vsel %vm1130, %v1314, 0.0
    %1405 = vadd.xlane.f32.xlu0 %v1404
    %v1406 = vpop.xlane.xlu0 %1405
    %v1407 = vsel %vm1130, %v1316, 0.0
    %1408 = vadd.xlane.f32.xlu0 %v1407
    %v1409 = vpop.xlane.xlu0 %1408
    %v1410 = vsel %vm1130, %v1318, 0.0
    %1411 = vadd.xlane.f32.xlu0 %v1410
    %v1412 = vpop.xlane.xlu0 %1411
    %v1413 = vsel %vm1130, %v1320, 0.0
    %1414 = vadd.xlane.f32.xlu0 %v1413
    %v1415 = vpop.xlane.xlu0 %1414
    %v1416 = vsel %vm1130, %v1322, 0.0
    %1417 = vadd.xlane.f32.xlu0 %v1416
    %v1418 = vpop.xlane.xlu0 %1417
    %v1419 = vrcp.pop %v1325
    %v1420 = vmul.f32 %v1260, %v1419
    %v1421 = vrcp.pop %v1328
    %v1422 = vmul.f32 %v1262, %v1421
    %v1423 = vrcp.pop %v1331
    %v1424 = vmul.f32 %v1264, %v1423
    %v1425 = vrcp.pop %v1334
    %v1426 = vmul.f32 %v1266, %v1425
    %v1427 = vrcp.pop %v1337
    %v1428 = vmul.f32 %v1268, %v1427
    %v1429 = vrcp.pop %v1340
    %v1430 = vmul.f32 %v1270, %v1429
    %v1431 = vrcp.pop %v1343
    %v1432 = vmul.f32 %v1272, %v1431
    %v1433 = vrcp.pop %v1346
    %v1434 = vmul.f32 %v1274, %v1433
    %v1435 = vrcp.pop %v1349
    %v1436 = vmul.f32 %v1276, %v1435
    %v1437 = vrcp.pop %v1352
    %v1438 = vmul.f32 %v1278, %v1437
    %v1439 = vrcp.pop %v1355
    %v1440 = vmul.f32 %v1280, %v1439
    %v1441 = vrcp.pop %v1358
    %v1442 = vmul.f32 %v1282, %v1441
    %v1443 = vrcp.pop %v1361
    %v1444 = vmul.f32 %v1284, %v1443
    %v1445 = vrcp.pop %v1364
    %v1446 = vmul.f32 %v1286, %v1445
    %v1447 = vrcp.pop %v1367
    %v1448 = vmul.f32 %v1288, %v1447
    %v1449 = vrcp.pop %v1370
    %v1450 = vmul.f32 %v1290, %v1449
    %v1451 = vrcp.pop %v1373
    %v1452 = vmul.f32 %v1292, %v1451
    %v1453 = vrcp.pop %v1376
    %v1454 = vmul.f32 %v1294, %v1453
    %v1455 = vrcp.pop %v1379
    %v1456 = vmul.f32 %v1296, %v1455
    %v1457 = vrcp.pop %v1382
    %v1458 = vmul.f32 %v1298, %v1457
    %v1459 = vrcp.pop %v1385
    %v1460 = vmul.f32 %v1300, %v1459
    %v1461 = vrcp.pop %v1388
    %v1462 = vmul.f32 %v1302, %v1461
    %v1463 = vrcp.pop %v1391
    %v1464 = vmul.f32 %v1304, %v1463
    %v1465 = vrcp.pop %v1394
    %v1466 = vmul.f32 %v1306, %v1465
    %v1467 = vrcp.pop %v1397
    %v1468 = vmul.f32 %v1308, %v1467
    %v1469 = vrcp.pop %v1400
    %v1470 = vmul.f32 %v1310, %v1469
    %v1471 = vrcp.pop %v1403
    %v1472 = vmul.f32 %v1312, %v1471
    %v1473 = vrcp.pop %v1406
    %v1474 = vmul.f32 %v1314, %v1473
    %v1475 = vrcp.pop %v1409
    %v1476 = vmul.f32 %v1316, %v1475
    %v1477 = vrcp.pop %v1412
    %v1478 = vmul.f32 %v1318, %v1477
    %v1479 = vrcp.pop %v1415
    %v1480 = vmul.f32 %v1320, %v1479
    %v1481 = vrcp.pop %v1418
    %v1482 = vmul.f32 %v1322, %v1481
    %v1483 = vlog2.pop %v1325
    %v1484 = vmul.f32 %v1483, 0.6931472
    %v1485 = vlog2.pop %v1328
    %v1486 = vmul.f32 %v1485, 0.6931472
    %v1487 = vlog2.pop %v1331
    %v1488 = vmul.f32 %v1487, 0.6931472
    %v1489 = vlog2.pop %v1334
    %v1490 = vmul.f32 %v1489, 0.6931472
    %v1491 = vlog2.pop %v1337
    %v1492 = vmul.f32 %v1491, 0.6931472
    %v1493 = vlog2.pop %v1340
    %v1494 = vmul.f32 %v1493, 0.6931472
    %v1495 = vlog2.pop %v1343
    %v1496 = vmul.f32 %v1495, 0.6931472
    %v1497 = vlog2.pop %v1346
    %v1498 = vmul.f32 %v1497, 0.6931472
    %v1499 = vlog2.pop %v1349
    %v1500 = vmul.f32 %v1499, 0.6931472
    %v1501 = vlog2.pop %v1352
    %v1502 = vmul.f32 %v1501, 0.6931472
    %v1503 = vlog2.pop %v1355
    %v1504 = vmul.f32 %v1503, 0.6931472
    %v1505 = vlog2.pop %v1358
    %v1506 = vmul.f32 %v1505, 0.6931472
    %v1507 = vlog2.pop %v1361
    %v1508 = vmul.f32 %v1507, 0.6931472
    %v1509 = vlog2.pop %v1364
    %v1510 = vmul.f32 %v1509, 0.6931472
    %v1511 = vlog2.pop %v1367
    %v1512 = vmul.f32 %v1511, 0.6931472
    %v1513 = vlog2.pop %v1370
    %v1514 = vmul.f32 %v1513, 0.6931472
    %v1515 = vlog2.pop %v1373
    %v1516 = vmul.f32 %v1515, 0.6931472
    %v1517 = vlog2.pop %v1376
    %v1518 = vmul.f32 %v1517, 0.6931472
    %v1519 = vlog2.pop %v1379
    %v1520 = vmul.f32 %v1519, 0.6931472
    %v1521 = vlog2.pop %v1382
    %v1522 = vmul.f32 %v1521, 0.6931472
    %v1523 = vlog2.pop %v1385
    %v1524 = vmul.f32 %v1523, 0.6931472
    %v1525 = vlog2.pop %v1388
    %v1526 = vmul.f32 %v1525, 0.6931472
    %v1527 = vlog2.pop %v1391
    %v1528 = vmul.f32 %v1527, 0.6931472
    %v1529 = vlog2.pop %v1394
    %v1530 = vmul.f32 %v1529, 0.6931472
    %v1531 = vlog2.pop %v1397
    %v1532 = vmul.f32 %v1531, 0.6931472
    %v1533 = vlog2.pop %v1400
    %v1534 = vmul.f32 %v1533, 0.6931472
    %v1535 = vlog2.pop %v1403
    %v1536 = vmul.f32 %v1535, 0.6931472
    %v1537 = vlog2.pop %v1406
    %v1538 = vmul.f32 %v1537, 0.6931472
    %v1539 = vlog2.pop %v1409
    %v1540 = vmul.f32 %v1539, 0.6931472
    %v1541 = vlog2.pop %v1412
    %v1542 = vmul.f32 %v1541, 0.6931472
    %v1543 = vlog2.pop %v1415
    %v1544 = vmul.f32 %v1543, 0.6931472
    %v1545 = vlog2.pop %v1418
    %v1546 = vmul.f32 %v1545, 0.6931472
    %v1547 = vsub.f32 %v1227, %v1484
    %v1548 = vsub.f32 %v1228, %v1486
    %v1549 = vsub.f32 %v1229, %v1488
    %v1550 = vsub.f32 %v1230, %v1490
    %v1551 = vsub.f32 %v1231, %v1492
    %v1552 = vsub.f32 %v1232, %v1494
    %v1553 = vsub.f32 %v1233, %v1496
    %v1554 = vsub.f32 %v1234, %v1498
    %v1555 = vsub.f32 %v1235, %v1500
    %v1556 = vsub.f32 %v1236, %v1502
    %v1557 = vsub.f32 %v1237, %v1504
    %v1558 = vsub.f32 %v1238, %v1506
    %v1559 = vsub.f32 %v1239, %v1508
    %v1560 = vsub.f32 %v1240, %v1510
    %v1561 = vsub.f32 %v1241, %v1512
    %v1562 = vsub.f32 %v1242, %v1514
    %v1563 = vsub.f32 %v1243, %v1516
    %v1564 = vsub.f32 %v1244, %v1518
    %v1565 = vsub.f32 %v1245, %v1520
    %v1566 = vsub.f32 %v1246, %v1522
    %v1567 = vsub.f32 %v1247, %v1524
    %v1568 = vsub.f32 %v1248, %v1526
    %v1569 = vsub.f32 %v1249, %v1528
    %v1570 = vsub.f32 %v1250, %v1530
    %v1571 = vsub.f32 %v1251, %v1532
    %v1572 = vsub.f32 %v1252, %v1534
    %v1573 = vsub.f32 %v1253, %v1536
    %v1574 = vsub.f32 %v1254, %v1538
    %v1575 = vsub.f32 %v1255, %v1540
    %v1576 = vsub.f32 %v1256, %v1542
    %v1577 = vsub.f32 %v1257, %v1544
    %v1578 = vsub.f32 %v1258, %v1546
    %v1579 = vld [vmem:[%s1] sm:$0xff]
    %v1580 = vld [vmem:[%s1 + $0x8] sm:$0xff]
    %v1581 = vld [vmem:[%s1 + $0x10] sm:$0xff]
    %v1582 = vld [vmem:[%s1 + $0x18] sm:$0xff]
    %v1583 = vld [vmem:[%s1 + $0x20] sm:$0xff]
    %v1584 = vld [vmem:[%s1 + $0x28] sm:$0xff]
    %v1585 = vld [vmem:[%s1 + $0x30] sm:$0xff]
    %v1586 = vld [vmem:[%s1 + $0x38] sm:$0xff]
    %v1587 = vld [vmem:[%s1 + $0x40] sm:$0xff]
    %v1588 = vld [vmem:[%s1 + $0x48] sm:$0xff]
    %v1589 = vld [vmem:[%s1 + $0x50] sm:$0xff]
    %v1590 = vld [vmem:[%s1 + $0x58] sm:$0xff]
    %v1591 = vld [vmem:[%s1 + $0x60] sm:$0xff]
    %v1592 = vld [vmem:[%s1 + $0x68] sm:$0xff]
    %v1593 = vld [vmem:[%s1 + $0x70] sm:$0xff]
    %v1594 = vld [vmem:[%s1 + $0x78] sm:$0xff]
    %v1595 = vld [vmem:[%s1 + $0x80] sm:$0xff]
    %v1596 = vld [vmem:[%s1 + $0x88] sm:$0xff]
    %v1597 = vld [vmem:[%s1 + $0x90] sm:$0xff]
    %v1598 = vld [vmem:[%s1 + $0x98] sm:$0xff]
    %v1599 = vld [vmem:[%s1 + $0xa0] sm:$0xff]
    %v1600 = vld [vmem:[%s1 + $0xa8] sm:$0xff]
    %v1601 = vld [vmem:[%s1 + $0xb0] sm:$0xff]
    %v1602 = vld [vmem:[%s1 + $0xb8] sm:$0xff]
    %v1603 = vld [vmem:[%s1 + $0xc0] sm:$0xff]
    %v1604 = vld [vmem:[%s1 + $0xc8] sm:$0xff]
    %v1605 = vld [vmem:[%s1 + $0xd0] sm:$0xff]
    %v1606 = vld [vmem:[%s1 + $0xd8] sm:$0xff]
    %v1607 = vld [vmem:[%s1 + $0xe0] sm:$0xff]
    %v1608 = vld [vmem:[%s1 + $0xe8] sm:$0xff]
    %v1609 = vld [vmem:[%s1 + $0xf0] sm:$0xff]
    %v1610 = vld [vmem:[%s1 + $0xf8] sm:$0xff]
    %v1611 = vlaneseq
    %v1612 = vand.u32 %v1611, 127
    %1613 = vset.pattern.permute.xlu0 0
    %1614 = vperm.xlu0 %1613, %v1579
    %v1615 = vpop.permute.xlu0 %1614
    %1616 = vset.pattern.permute.xlu0 0
    %1617 = vperm.xlu0 %1616, %v1580
    %v1618 = vpop.permute.xlu0 %1617
    %1619 = vset.pattern.permute.xlu0 0
    %1620 = vperm.xlu0 %1619, %v1581
    %v1621 = vpop.permute.xlu0 %1620
    %1622 = vset.pattern.permute.xlu0 0
    %1623 = vperm.xlu0 %1622, %v1582
    %v1624 = vpop.permute.xlu0 %1623
    %1625 = vset.pattern.permute.xlu0 0
    %1626 = vperm.xlu0 %1625, %v1583
    %v1627 = vpop.permute.xlu0 %1626
    %1628 = vset.pattern.permute.xlu0 0
    %1629 = vperm.xlu0 %1628, %v1584
    %v1630 = vpop.permute.xlu0 %1629
    %1631 = vset.pattern.permute.xlu0 0
    %1632 = vperm.xlu0 %1631, %v1585
    %v1633 = vpop.permute.xlu0 %1632
    %1634 = vset.pattern.permute.xlu0 0
    %1635 = vperm.xlu0 %1634, %v1586
    %v1636 = vpop.permute.xlu0 %1635
    %1637 = vset.pattern.permute.xlu0 0
    %1638 = vperm.xlu0 %1637, %v1587
    %v1639 = vpop.permute.xlu0 %1638
    %1640 = vset.pattern.permute.xlu0 0
    %1641 = vperm.xlu0 %1640, %v1588
    %v1642 = vpop.permute.xlu0 %1641
    %1643 = vset.pattern.permute.xlu0 0
    %1644 = vperm.xlu0 %1643, %v1589
    %v1645 = vpop.permute.xlu0 %1644
    %1646 = vset.pattern.permute.xlu0 0
    %1647 = vperm.xlu0 %1646, %v1590
    %v1648 = vpop.permute.xlu0 %1647
    %1649 = vset.pattern.permute.xlu0 0
    %1650 = vperm.xlu0 %1649, %v1591
    %v1651 = vpop.permute.xlu0 %1650
    %1652 = vset.pattern.permute.xlu0 0
    %1653 = vperm.xlu0 %1652, %v1592
    %v1654 = vpop.permute.xlu0 %1653
    %1655 = vset.pattern.permute.xlu0 0
    %1656 = vperm.xlu0 %1655, %v1593
    %v1657 = vpop.permute.xlu0 %1656
    %1658 = vset.pattern.permute.xlu0 0
    %1659 = vperm.xlu0 %1658, %v1594
    %v1660 = vpop.permute.xlu0 %1659
    %1661 = vset.pattern.permute.xlu0 0
    %1662 = vperm.xlu0 %1661, %v1595
    %v1663 = vpop.permute.xlu0 %1662
    %1664 = vset.pattern.permute.xlu0 0
    %1665 = vperm.xlu0 %1664, %v1596
    %v1666 = vpop.permute.xlu0 %1665
    %1667 = vset.pattern.permute.xlu0 0
    %1668 = vperm.xlu0 %1667, %v1597
    %v1669 = vpop.permute.xlu0 %1668
    %1670 = vset.pattern.permute.xlu0 0
    %1671 = vperm.xlu0 %1670, %v1598
    %v1672 = vpop.permute.xlu0 %1671
    %1673 = vset.pattern.permute.xlu0 0
    %1674 = vperm.xlu0 %1673, %v1599
    %v1675 = vpop.permute.xlu0 %1674
    %1676 = vset.pattern.permute.xlu0 0
    %1677 = vperm.xlu0 %1676, %v1600
    %v1678 = vpop.permute.xlu0 %1677
    %1679 = vset.pattern.permute.xlu0 0
    %1680 = vperm.xlu0 %1679, %v1601
    %v1681 = vpop.permute.xlu0 %1680
    %1682 = vset.pattern.permute.xlu0 0
    %1683 = vperm.xlu0 %1682, %v1602
    %v1684 = vpop.permute.xlu0 %1683
    %1685 = vset.pattern.permute.xlu0 0
    %1686 = vperm.xlu0 %1685, %v1603
    %v1687 = vpop.permute.xlu0 %1686
    %1688 = vset.pattern.permute.xlu0 0
    %1689 = vperm.xlu0 %1688, %v1604
    %v1690 = vpop.permute.xlu0 %1689
    %1691 = vset.pattern.permute.xlu0 0
    %1692 = vperm.xlu0 %1691, %v1605
    %v1693 = vpop.permute.xlu0 %1692
    %1694 = vset.pattern.permute.xlu0 0
    %1695 = vperm.xlu0 %1694, %v1606
    %v1696 = vpop.permute.xlu0 %1695
    %1697 = vset.pattern.permute.xlu0 0
    %1698 = vperm.xlu0 %1697, %v1607
    %v1699 = vpop.permute.xlu0 %1698
    %1700 = vset.pattern.permute.xlu0 0
    %1701 = vperm.xlu0 %1700, %v1608
    %v1702 = vpop.permute.xlu0 %1701
    %1703 = vset.pattern.permute.xlu0 0
    %1704 = vperm.xlu0 %1703, %v1609
    %v1705 = vpop.permute.xlu0 %1704
    %1706 = vset.pattern.permute.xlu0 0
    %1707 = vperm.xlu0 %1706, %v1610
    %v1708 = vpop.permute.xlu0 %1707
    %vm1709 = vcmp.eq.s32.totalorder %v1612, %v1615
    %vm1710 = vcmp.eq.s32.totalorder %v1612, %v1618
    %vm1711 = vcmp.eq.s32.totalorder %v1612, %v1621
    %vm1712 = vcmp.eq.s32.totalorder %v1612, %v1624
    %vm1713 = vcmp.eq.s32.totalorder %v1612, %v1627
    %vm1714 = vcmp.eq.s32.totalorder %v1612, %v1630
    %vm1715 = vcmp.eq.s32.totalorder %v1612, %v1633
    %vm1716 = vcmp.eq.s32.totalorder %v1612, %v1636
    %vm1717 = vcmp.eq.s32.totalorder %v1612, %v1639
    %vm1718 = vcmp.eq.s32.totalorder %v1612, %v1642
    %vm1719 = vcmp.eq.s32.totalorder %v1612, %v1645
    %vm1720 = vcmp.eq.s32.totalorder %v1612, %v1648
    %vm1721 = vcmp.eq.s32.totalorder %v1612, %v1651
    %vm1722 = vcmp.eq.s32.totalorder %v1612, %v1654
    %vm1723 = vcmp.eq.s32.totalorder %v1612, %v1657
    %vm1724 = vcmp.eq.s32.totalorder %v1612, %v1660
    %vm1725 = vcmp.eq.s32.totalorder %v1612, %v1663
    %vm1726 = vcmp.eq.s32.totalorder %v1612, %v1666
    %vm1727 = vcmp.eq.s32.totalorder %v1612, %v1669
    %vm1728 = vcmp.eq.s32.totalorder %v1612, %v1672
    %vm1729 = vcmp.eq.s32.totalorder %v1612, %v1675
    %vm1730 = vcmp.eq.s32.totalorder %v1612, %v1678
    %vm1731 = vcmp.eq.s32.totalorder %v1612, %v1681
    %vm1732 = vcmp.eq.s32.totalorder %v1612, %v1684
    %vm1733 = vcmp.eq.s32.totalorder %v1612, %v1687
    %vm1734 = vcmp.eq.s32.totalorder %v1612, %v1690
    %vm1735 = vcmp.eq.s32.totalorder %v1612, %v1693
    %vm1736 = vcmp.eq.s32.totalorder %v1612, %v1696
    %vm1737 = vcmp.eq.s32.totalorder %v1612, %v1699
    %vm1738 = vcmp.eq.s32.totalorder %v1612, %v1702
    %vm1739 = vcmp.eq.s32.totalorder %v1612, %v1705
    %vm1740 = vcmp.eq.s32.totalorder %v1612, %v1708
    %v1741 = vsel %vm1709, 1, 0
    %v1742 = vsel %vm1710, 1, 0
    %v1743 = vsel %vm1711, 1, 0
    %v1744 = vsel %vm1712, 1, 0
    %v1745 = vsel %vm1713, 1, 0
    %v1746 = vsel %vm1714, 1, 0
    %v1747 = vsel %vm1715, 1, 0
    %v1748 = vsel %vm1716, 1, 0
    %v1749 = vsel %vm1717, 1, 0
    %v1750 = vsel %vm1718, 1, 0
    %v1751 = vsel %vm1719, 1, 0
    %v1752 = vsel %vm1720, 1, 0
    %v1753 = vsel %vm1721, 1, 0
    %v1754 = vsel %vm1722, 1, 0
    %v1755 = vsel %vm1723, 1, 0
    %v1756 = vsel %vm1724, 1, 0
    %v1757 = vsel %vm1725, 1, 0
    %v1758 = vsel %vm1726, 1, 0
    %v1759 = vsel %vm1727, 1, 0
    %v1760 = vsel %vm1728, 1, 0
    %v1761 = vsel %vm1729, 1, 0
    %v1762 = vsel %vm1730, 1, 0
    %v1763 = vsel %vm1731, 1, 0
    %v1764 = vsel %vm1732, 1, 0
    %v1765 = vsel %vm1733, 1, 0
    %v1766 = vsel %vm1734, 1, 0
    %v1767 = vsel %vm1735, 1, 0
    %v1768 = vsel %vm1736, 1, 0
    %v1769 = vsel %vm1737, 1, 0
    %v1770 = vsel %vm1738, 1, 0
    %v1771 = vsel %vm1739, 1, 0
    %v1772 = vsel %vm1740, 1, 0
    %v1773 = vcvt.s32.f32 %v1741
    %v1774 = vcvt.s32.f32 %v1742
    %v1775 = vcvt.s32.f32 %v1743
    %v1776 = vcvt.s32.f32 %v1744
    %v1777 = vcvt.s32.f32 %v1745
    %v1778 = vcvt.s32.f32 %v1746
    %v1779 = vcvt.s32.f32 %v1747
    %v1780 = vcvt.s32.f32 %v1748
    %v1781 = vcvt.s32.f32 %v1749
    %v1782 = vcvt.s32.f32 %v1750
    %v1783 = vcvt.s32.f32 %v1751
    %v1784 = vcvt.s32.f32 %v1752
    %v1785 = vcvt.s32.f32 %v1753
    %v1786 = vcvt.s32.f32 %v1754
    %v1787 = vcvt.s32.f32 %v1755
    %v1788 = vcvt.s32.f32 %v1756
    %v1789 = vcvt.s32.f32 %v1757
    %v1790 = vcvt.s32.f32 %v1758
    %v1791 = vcvt.s32.f32 %v1759
    %v1792 = vcvt.s32.f32 %v1760
    %v1793 = vcvt.s32.f32 %v1761
    %v1794 = vcvt.s32.f32 %v1762
    %v1795 = vcvt.s32.f32 %v1763
    %v1796 = vcvt.s32.f32 %v1764
    %v1797 = vcvt.s32.f32 %v1765
    %v1798 = vcvt.s32.f32 %v1766
    %v1799 = vcvt.s32.f32 %v1767
    %v1800 = vcvt.s32.f32 %v1768
    %v1801 = vcvt.s32.f32 %v1769
    %v1802 = vcvt.s32.f32 %v1770
    %v1803 = vcvt.s32.f32 %v1771
    %v1804 = vcvt.s32.f32 %v1772
    %v1805 = vmul.f32 %v1773, %v1547
    %v1806 = vmul.f32 %v1774, %v1548
    %v1807 = vmul.f32 %v1775, %v1549
    %v1808 = vmul.f32 %v1776, %v1550
    %v1809 = vmul.f32 %v1777, %v1551
    %v1810 = vmul.f32 %v1778, %v1552
    %v1811 = vmul.f32 %v1779, %v1553
    %v1812 = vmul.f32 %v1780, %v1554
    %v1813 = vmul.f32 %v1781, %v1555
    %v1814 = vmul.f32 %v1782, %v1556
    %v1815 = vmul.f32 %v1783, %v1557
    %v1816 = vmul.f32 %v1784, %v1558
    %v1817 = vmul.f32 %v1785, %v1559
    %v1818 = vmul.f32 %v1786, %v1560
    %v1819 = vmul.f32 %v1787, %v1561
    %v1820 = vmul.f32 %v1788, %v1562
    %v1821 = vmul.f32 %v1789, %v1563
    %v1822 = vmul.f32 %v1790, %v1564
    %v1823 = vmul.f32 %v1791, %v1565
    %v1824 = vmul.f32 %v1792, %v1566
    %v1825 = vmul.f32 %v1793, %v1567
    %v1826 = vmul.f32 %v1794, %v1568
    %v1827 = vmul.f32 %v1795, %v1569
    %v1828 = vmul.f32 %v1796, %v1570
    %v1829 = vmul.f32 %v1797, %v1571
    %v1830 = vmul.f32 %v1798, %v1572
    %v1831 = vmul.f32 %v1799, %v1573
    %v1832 = vmul.f32 %v1800, %v1574
    %v1833 = vmul.f32 %v1801, %v1575
    %v1834 = vmul.f32 %v1802, %v1576
    %v1835 = vmul.f32 %v1803, %v1577
    %v1836 = vmul.f32 %v1804, %v1578
    %v1837 = vsel %vm1130, %v1805, 0.0
    %1838 = vadd.xlane.f32.xlu0 %v1837
    %v1839 = vpop.xlane.xlu0 %1838
    %v1840 = vsel %vm1130, %v1806, 0.0
    %1841 = vadd.xlane.f32.xlu0 %v1840
    %v1842 = vpop.xlane.xlu0 %1841
    %v1843 = vsel %vm1130, %v1807, 0.0
    %1844 = vadd.xlane.f32.xlu0 %v1843
    %v1845 = vpop.xlane.xlu0 %1844
    %v1846 = vsel %vm1130, %v1808, 0.0
    %1847 = vadd.xlane.f32.xlu0 %v1846
    %v1848 = vpop.xlane.xlu0 %1847
    %v1849 = vsel %vm1130, %v1809, 0.0
    %1850 = vadd.xlane.f32.xlu0 %v1849
    %v1851 = vpop.xlane.xlu0 %1850
    %v1852 = vsel %vm1130, %v1810, 0.0
    %1853 = vadd.xlane.f32.xlu0 %v1852
    %v1854 = vpop.xlane.xlu0 %1853
    %v1855 = vsel %vm1130, %v1811, 0.0
    %1856 = vadd.xlane.f32.xlu0 %v1855
    %v1857 = vpop.xlane.xlu0 %1856
    %v1858 = vsel %vm1130, %v1812, 0.0
    %1859 = vadd.xlane.f32.xlu0 %v1858
    %v1860 = vpop.xlane.xlu0 %1859
    %v1861 = vsel %vm1130, %v1813, 0.0
    %1862 = vadd.xlane.f32.xlu0 %v1861
    %v1863 = vpop.xlane.xlu0 %1862
    %v1864 = vsel %vm1130, %v1814, 0.0
    %1865 = vadd.xlane.f32.xlu0 %v1864
    %v1866 = vpop.xlane.xlu0 %1865
    %v1867 = vsel %vm1130, %v1815, 0.0
    %1868 = vadd.xlane.f32.xlu0 %v1867
    %v1869 = vpop.xlane.xlu0 %1868
    %v1870 = vsel %vm1130, %v1816, 0.0
    %1871 = vadd.xlane.f32.xlu0 %v1870
    %v1872 = vpop.xlane.xlu0 %1871
    %v1873 = vsel %vm1130, %v1817, 0.0
    %1874 = vadd.xlane.f32.xlu0 %v1873
    %v1875 = vpop.xlane.xlu0 %1874
    %v1876 = vsel %vm1130, %v1818, 0.0
    %1877 = vadd.xlane.f32.xlu0 %v1876
    %v1878 = vpop.xlane.xlu0 %1877
    %v1879 = vsel %vm1130, %v1819, 0.0
    %1880 = vadd.xlane.f32.xlu0 %v1879
    %v1881 = vpop.xlane.xlu0 %1880
    %v1882 = vsel %vm1130, %v1820, 0.0
    %1883 = vadd.xlane.f32.xlu0 %v1882
    %v1884 = vpop.xlane.xlu0 %1883
    %v1885 = vsel %vm1130, %v1821, 0.0
    %1886 = vadd.xlane.f32.xlu0 %v1885
    %v1887 = vpop.xlane.xlu0 %1886
    %v1888 = vsel %vm1130, %v1822, 0.0
    %1889 = vadd.xlane.f32.xlu0 %v1888
    %v1890 = vpop.xlane.xlu0 %1889
    %v1891 = vsel %vm1130, %v1823, 0.0
    %1892 = vadd.xlane.f32.xlu0 %v1891
    %v1893 = vpop.xlane.xlu0 %1892
    %v1894 = vsel %vm1130, %v1824, 0.0
    %1895 = vadd.xlane.f32.xlu0 %v1894
    %v1896 = vpop.xlane.xlu0 %1895
    %v1897 = vsel %vm1130, %v1825, 0.0
    %1898 = vadd.xlane.f32.xlu0 %v1897
    %v1899 = vpop.xlane.xlu0 %1898
    %v1900 = vsel %vm1130, %v1826, 0.0
    %1901 = vadd.xlane.f32.xlu0 %v1900
    %v1902 = vpop.xlane.xlu0 %1901
    %v1903 = vsel %vm1130, %v1827, 0.0
    %1904 = vadd.xlane.f32.xlu0 %v1903
    %v1905 = vpop.xlane.xlu0 %1904
    %v1906 = vsel %vm1130, %v1828, 0.0
    %1907 = vadd.xlane.f32.xlu0 %v1906
    %v1908 = vpop.xlane.xlu0 %1907
    %v1909 = vsel %vm1130, %v1829, 0.0
    %1910 = vadd.xlane.f32.xlu0 %v1909
    %v1911 = vpop.xlane.xlu0 %1910
    %v1912 = vsel %vm1130, %v1830, 0.0
    %1913 = vadd.xlane.f32.xlu0 %v1912
    %v1914 = vpop.xlane.xlu0 %1913
    %v1915 = vsel %vm1130, %v1831, 0.0
    %1916 = vadd.xlane.f32.xlu0 %v1915
    %v1917 = vpop.xlane.xlu0 %1916
    %v1918 = vsel %vm1130, %v1832, 0.0
    %1919 = vadd.xlane.f32.xlu0 %v1918
    %v1920 = vpop.xlane.xlu0 %1919
    %v1921 = vsel %vm1130, %v1833, 0.0
    %1922 = vadd.xlane.f32.xlu0 %v1921
    %v1923 = vpop.xlane.xlu0 %1922
    %v1924 = vsel %vm1130, %v1834, 0.0
    %1925 = vadd.xlane.f32.xlu0 %v1924
    %v1926 = vpop.xlane.xlu0 %1925
    %v1927 = vsel %vm1130, %v1835, 0.0
    %1928 = vadd.xlane.f32.xlu0 %v1927
    %v1929 = vpop.xlane.xlu0 %1928
    %v1930 = vsel %vm1130, %v1836, 0.0
    %1931 = vadd.xlane.f32.xlu0 %v1930
    %v1932 = vpop.xlane.xlu0 %1931
    %v1933 = vmul.f32 %v1420, %v1547
    %v1934 = vmul.f32 %v1422, %v1548
    %v1935 = vmul.f32 %v1424, %v1549
    %v1936 = vmul.f32 %v1426, %v1550
    %v1937 = vmul.f32 %v1428, %v1551
    %v1938 = vmul.f32 %v1430, %v1552
    %v1939 = vmul.f32 %v1432, %v1553
    %v1940 = vmul.f32 %v1434, %v1554
    %v1941 = vmul.f32 %v1436, %v1555
    %v1942 = vmul.f32 %v1438, %v1556
    %v1943 = vmul.f32 %v1440, %v1557
    %v1944 = vmul.f32 %v1442, %v1558
    %v1945 = vmul.f32 %v1444, %v1559
    %v1946 = vmul.f32 %v1446, %v1560
    %v1947 = vmul.f32 %v1448, %v1561
    %v1948 = vmul.f32 %v1450, %v1562
    %v1949 = vmul.f32 %v1452, %v1563
    %v1950 = vmul.f32 %v1454, %v1564
    %v1951 = vmul.f32 %v1456, %v1565
    %v1952 = vmul.f32 %v1458, %v1566
    %v1953 = vmul.f32 %v1460, %v1567
    %v1954 = vmul.f32 %v1462, %v1568
    %v1955 = vmul.f32 %v1464, %v1569
    %v1956 = vmul.f32 %v1466, %v1570
    %v1957 = vmul.f32 %v1468, %v1571
    %v1958 = vmul.f32 %v1470, %v1572
    %v1959 = vmul.f32 %v1472, %v1573
    %v1960 = vmul.f32 %v1474, %v1574
    %v1961 = vmul.f32 %v1476, %v1575
    %v1962 = vmul.f32 %v1478, %v1576
    %v1963 = vmul.f32 %v1480, %v1577
    %v1964 = vmul.f32 %v1482, %v1578
    %v1965 = vsel %vm1130, %v1933, 0.0
    %1966 = vadd.xlane.f32.xlu0 %v1965
    %v1967 = vpop.xlane.xlu0 %1966
    %v1968 = vsel %vm1130, %v1934, 0.0
    %1969 = vadd.xlane.f32.xlu0 %v1968
    %v1970 = vpop.xlane.xlu0 %1969
    %v1971 = vsel %vm1130, %v1935, 0.0
    %1972 = vadd.xlane.f32.xlu0 %v1971
    %v1973 = vpop.xlane.xlu0 %1972
    %v1974 = vsel %vm1130, %v1936, 0.0
    %1975 = vadd.xlane.f32.xlu0 %v1974
    %v1976 = vpop.xlane.xlu0 %1975
    %v1977 = vsel %vm1130, %v1937, 0.0
    %1978 = vadd.xlane.f32.xlu0 %v1977
    %v1979 = vpop.xlane.xlu0 %1978
    %v1980 = vsel %vm1130, %v1938, 0.0
    %1981 = vadd.xlane.f32.xlu0 %v1980
    %v1982 = vpop.xlane.xlu0 %1981
    %v1983 = vsel %vm1130, %v1939, 0.0
    %1984 = vadd.xlane.f32.xlu0 %v1983
    %v1985 = vpop.xlane.xlu0 %1984
    %v1986 = vsel %vm1130, %v1940, 0.0
    %1987 = vadd.xlane.f32.xlu0 %v1986
    %v1988 = vpop.xlane.xlu0 %1987
    %v1989 = vsel %vm1130, %v1941, 0.0
    %1990 = vadd.xlane.f32.xlu0 %v1989
    %v1991 = vpop.xlane.xlu0 %1990
    %v1992 = vsel %vm1130, %v1942, 0.0
    %1993 = vadd.xlane.f32.xlu0 %v1992
    %v1994 = vpop.xlane.xlu0 %1993
    %v1995 = vsel %vm1130, %v1943, 0.0
    %1996 = vadd.xlane.f32.xlu0 %v1995
    %v1997 = vpop.xlane.xlu0 %1996
    %v1998 = vsel %vm1130, %v1944, 0.0
    %1999 = vadd.xlane.f32.xlu0 %v1998
    %v2000 = vpop.xlane.xlu0 %1999
    %v2001 = vsel %vm1130, %v1945, 0.0
    %2002 = vadd.xlane.f32.xlu0 %v2001
    %v2003 = vpop.xlane.xlu0 %2002
    %v2004 = vsel %vm1130, %v1946, 0.0
    %2005 = vadd.xlane.f32.xlu0 %v2004
    %v2006 = vpop.xlane.xlu0 %2005
    %v2007 = vsel %vm1130, %v1947, 0.0
    %2008 = vadd.xlane.f32.xlu0 %v2007
    %v2009 = vpop.xlane.xlu0 %2008
    %v2010 = vsel %vm1130, %v1948, 0.0
    %2011 = vadd.xlane.f32.xlu0 %v2010
    %v2012 = vpop.xlane.xlu0 %2011
    %v2013 = vsel %vm1130, %v1949, 0.0
    %2014 = vadd.xlane.f32.xlu0 %v2013
    %v2015 = vpop.xlane.xlu0 %2014
    %v2016 = vsel %vm1130, %v1950, 0.0
    %2017 = vadd.xlane.f32.xlu0 %v2016
    %v2018 = vpop.xlane.xlu0 %2017
    %v2019 = vsel %vm1130, %v1951, 0.0
    %2020 = vadd.xlane.f32.xlu0 %v2019
    %v2021 = vpop.xlane.xlu0 %2020
    %v2022 = vsel %vm1130, %v1952, 0.0
    %2023 = vadd.xlane.f32.xlu0 %v2022
    %v2024 = vpop.xlane.xlu0 %2023
    %v2025 = vsel %vm1130, %v1953, 0.0
    %2026 = vadd.xlane.f32.xlu0 %v2025
    %v2027 = vpop.xlane.xlu0 %2026
    %v2028 = vsel %vm1130, %v1954, 0.0
    %2029 = vadd.xlane.f32.xlu0 %v2028
    %v2030 = vpop.xlane.xlu0 %2029
    %v2031 = vsel %vm1130, %v1955, 0.0
    %2032 = vadd.xlane.f32.xlu0 %v2031
    %v2033 = vpop.xlane.xlu0 %2032
    %v2034 = vsel %vm1130, %v1956, 0.0
    %2035 = vadd.xlane.f32.xlu0 %v2034
    %v2036 = vpop.xlane.xlu0 %2035
    %v2037 = vsel %vm1130, %v1957, 0.0
    %2038 = vadd.xlane.f32.xlu0 %v2037
    %v2039 = vpop.xlane.xlu0 %2038
    %v2040 = vsel %vm1130, %v1958, 0.0
    %2041 = vadd.xlane.f32.xlu0 %v2040
    %v2042 = vpop.xlane.xlu0 %2041
    %v2043 = vsel %vm1130, %v1959, 0.0
    %2044 = vadd.xlane.f32.xlu0 %v2043
    %v2045 = vpop.xlane.xlu0 %2044
    %v2046 = vsel %vm1130, %v1960, 0.0
    %2047 = vadd.xlane.f32.xlu0 %v2046
    %v2048 = vpop.xlane.xlu0 %2047
    %v2049 = vsel %vm1130, %v1961, 0.0
    %2050 = vadd.xlane.f32.xlu0 %v2049
    %v2051 = vpop.xlane.xlu0 %2050
    %v2052 = vsel %vm1130, %v1962, 0.0
    %2053 = vadd.xlane.f32.xlu0 %v2052
    %v2054 = vpop.xlane.xlu0 %2053
    %v2055 = vsel %vm1130, %v1963, 0.0
    %2056 = vadd.xlane.f32.xlu0 %v2055
    %v2057 = vpop.xlane.xlu0 %2056
    %v2058 = vsel %vm1130, %v1964, 0.0
    %2059 = vadd.xlane.f32.xlu0 %v2058
    %v2060 = vpop.xlane.xlu0 %2059
    %v2061 = vsub.f32 0.0, %v1967
    %v2062 = vsub.f32 0.0, %v1970
    %v2063 = vsub.f32 0.0, %v1973
    %v2064 = vsub.f32 0.0, %v1976
    %v2065 = vsub.f32 0.0, %v1979
    %v2066 = vsub.f32 0.0, %v1982
    %v2067 = vsub.f32 0.0, %v1985
    %v2068 = vsub.f32 0.0, %v1988
    %v2069 = vsub.f32 0.0, %v1991
    %v2070 = vsub.f32 0.0, %v1994
    %v2071 = vsub.f32 0.0, %v1997
    %v2072 = vsub.f32 0.0, %v2000
    %v2073 = vsub.f32 0.0, %v2003
    %v2074 = vsub.f32 0.0, %v2006
    %v2075 = vsub.f32 0.0, %v2009
    %v2076 = vsub.f32 0.0, %v2012
    %v2077 = vsub.f32 0.0, %v2015
    %v2078 = vsub.f32 0.0, %v2018
    %v2079 = vsub.f32 0.0, %v2021
    %v2080 = vsub.f32 0.0, %v2024
    %v2081 = vsub.f32 0.0, %v2027
    %v2082 = vsub.f32 0.0, %v2030
    %v2083 = vsub.f32 0.0, %v2033
    %v2084 = vsub.f32 0.0, %v2036
    %v2085 = vsub.f32 0.0, %v2039
    %v2086 = vsub.f32 0.0, %v2042
    %v2087 = vsub.f32 0.0, %v2045
    %v2088 = vsub.f32 0.0, %v2048
    %v2089 = vsub.f32 0.0, %v2051
    %v2090 = vsub.f32 0.0, %v2054
    %v2091 = vsub.f32 0.0, %v2057
    %v2092 = vsub.f32 0.0, %v2060
    %vm2093 = vcmp.eq.s32.totalorder %v1612, 0
    %vm2094 = vcmp.eq.s32.totalorder %v1612, 1
    %vm2095 = vcmp.eq.s32.totalorder %v1612, 2
    %v2096 = vsel %vm2095, %v2061, 0.0
    %v2097 = vsel %vm2095, %v2062, 0.0
    %v2098 = vsel %vm2095, %v2063, 0.0
    %v2099 = vsel %vm2095, %v2064, 0.0
    %v2100 = vsel %vm2095, %v2065, 0.0
    %v2101 = vsel %vm2095, %v2066, 0.0
    %v2102 = vsel %vm2095, %v2067, 0.0
    %v2103 = vsel %vm2095, %v2068, 0.0
    %v2104 = vsel %vm2095, %v2069, 0.0
    %v2105 = vsel %vm2095, %v2070, 0.0
    %v2106 = vsel %vm2095, %v2071, 0.0
    %v2107 = vsel %vm2095, %v2072, 0.0
    %v2108 = vsel %vm2095, %v2073, 0.0
    %v2109 = vsel %vm2095, %v2074, 0.0
    %v2110 = vsel %vm2095, %v2075, 0.0
    %v2111 = vsel %vm2095, %v2076, 0.0
    %v2112 = vsel %vm2095, %v2077, 0.0
    %v2113 = vsel %vm2095, %v2078, 0.0
    %v2114 = vsel %vm2095, %v2079, 0.0
    %v2115 = vsel %vm2095, %v2080, 0.0
    %v2116 = vsel %vm2095, %v2081, 0.0
    %v2117 = vsel %vm2095, %v2082, 0.0
    %v2118 = vsel %vm2095, %v2083, 0.0
    %v2119 = vsel %vm2095, %v2084, 0.0
    %v2120 = vsel %vm2095, %v2085, 0.0
    %v2121 = vsel %vm2095, %v2086, 0.0
    %v2122 = vsel %vm2095, %v2087, 0.0
    %v2123 = vsel %vm2095, %v2088, 0.0
    %v2124 = vsel %vm2095, %v2089, 0.0
    %v2125 = vsel %vm2095, %v2090, 0.0
    %v2126 = vsel %vm2095, %v2091, 0.0
    %v2127 = vsel %vm2095, %v2092, 0.0
    %2129 = vset.pattern.permute.xlu0 8
    %2130 = vperm.xlu0 %2129, %v972
    %v2131 = vpop.permute.xlu0 %2130
    %2134 = vset.pattern.permute.xlu0 8
    %2135 = vperm.xlu0 %2134, %v977
    %v2136 = vpop.permute.xlu0 %2135
    %2139 = vset.pattern.permute.xlu0 8
    %2140 = vperm.xlu0 %2139, %v982
    %v2141 = vpop.permute.xlu0 %2140
    %2144 = vset.pattern.permute.xlu0 8
    %2145 = vperm.xlu0 %2144, %v987
    %v2146 = vpop.permute.xlu0 %2145
    %2149 = vset.pattern.permute.xlu0 8
    %2150 = vperm.xlu0 %2149, %v992
    %v2151 = vpop.permute.xlu0 %2150
    %2154 = vset.pattern.permute.xlu0 8
    %2155 = vperm.xlu0 %2154, %v997
    %v2156 = vpop.permute.xlu0 %2155
    %2159 = vset.pattern.permute.xlu0 8
    %2160 = vperm.xlu0 %2159, %v1002
    %v2161 = vpop.permute.xlu0 %2160
    %2164 = vset.pattern.permute.xlu0 8
    %2165 = vperm.xlu0 %2164, %v1007
    %v2166 = vpop.permute.xlu0 %2165
    %2169 = vset.pattern.permute.xlu0 8
    %2170 = vperm.xlu0 %2169, %v1012
    %v2171 = vpop.permute.xlu0 %2170
    %2174 = vset.pattern.permute.xlu0 8
    %2175 = vperm.xlu0 %2174, %v1017
    %v2176 = vpop.permute.xlu0 %2175
    %2179 = vset.pattern.permute.xlu0 8
    %2180 = vperm.xlu0 %2179, %v1022
    %v2181 = vpop.permute.xlu0 %2180
    %2184 = vset.pattern.permute.xlu0 8
    %2185 = vperm.xlu0 %2184, %v1027
    %v2186 = vpop.permute.xlu0 %2185
    %2189 = vset.pattern.permute.xlu0 8
    %2190 = vperm.xlu0 %2189, %v1032
    %v2191 = vpop.permute.xlu0 %2190
    %2194 = vset.pattern.permute.xlu0 8
    %2195 = vperm.xlu0 %2194, %v1037
    %v2196 = vpop.permute.xlu0 %2195
    %2199 = vset.pattern.permute.xlu0 8
    %2200 = vperm.xlu0 %2199, %v1042
    %v2201 = vpop.permute.xlu0 %2200
    %2204 = vset.pattern.permute.xlu0 8
    %2205 = vperm.xlu0 %2204, %v1047
    %v2206 = vpop.permute.xlu0 %2205
    %2209 = vset.pattern.permute.xlu0 8
    %2210 = vperm.xlu0 %2209, %v1052
    %v2211 = vpop.permute.xlu0 %2210
    %2214 = vset.pattern.permute.xlu0 8
    %2215 = vperm.xlu0 %2214, %v1057
    %v2216 = vpop.permute.xlu0 %2215
    %2219 = vset.pattern.permute.xlu0 8
    %2220 = vperm.xlu0 %2219, %v1062
    %v2221 = vpop.permute.xlu0 %2220
    %2224 = vset.pattern.permute.xlu0 8
    %2225 = vperm.xlu0 %2224, %v1067
    %v2226 = vpop.permute.xlu0 %2225
    %2229 = vset.pattern.permute.xlu0 8
    %2230 = vperm.xlu0 %2229, %v1072
    %v2231 = vpop.permute.xlu0 %2230
    %2234 = vset.pattern.permute.xlu0 8
    %2235 = vperm.xlu0 %2234, %v1077
    %v2236 = vpop.permute.xlu0 %2235
    %2239 = vset.pattern.permute.xlu0 8
    %2240 = vperm.xlu0 %2239, %v1082
    %v2241 = vpop.permute.xlu0 %2240
    %2244 = vset.pattern.permute.xlu0 8
    %2245 = vperm.xlu0 %2244, %v1087
    %v2246 = vpop.permute.xlu0 %2245
    %2249 = vset.pattern.permute.xlu0 8
    %2250 = vperm.xlu0 %2249, %v1092
    %v2251 = vpop.permute.xlu0 %2250
    %2254 = vset.pattern.permute.xlu0 8
    %2255 = vperm.xlu0 %2254, %v1097
    %v2256 = vpop.permute.xlu0 %2255
    %2259 = vset.pattern.permute.xlu0 8
    %2260 = vperm.xlu0 %2259, %v1102
    %v2261 = vpop.permute.xlu0 %2260
    %2264 = vset.pattern.permute.xlu0 8
    %2265 = vperm.xlu0 %2264, %v1107
    %v2266 = vpop.permute.xlu0 %2265
    %2269 = vset.pattern.permute.xlu0 8
    %2270 = vperm.xlu0 %2269, %v1112
    %v2271 = vpop.permute.xlu0 %2270
    %2274 = vset.pattern.permute.xlu0 8
    %2275 = vperm.xlu0 %2274, %v1117
    %v2276 = vpop.permute.xlu0 %2275
    %2279 = vset.pattern.permute.xlu0 8
    %2280 = vperm.xlu0 %2279, %v1122
    %v2281 = vpop.permute.xlu0 %2280
    %2284 = vset.pattern.permute.xlu0 8
    %2285 = vperm.xlu0 %2284, %v1127
    %v2286 = vpop.permute.xlu0 %2285
    %v2288 = vsel %vm2094, %v2131, %v2096
    %v2289 = vsel %vm2094, %v2136, %v2097
    %v2290 = vsel %vm2094, %v2141, %v2098
    %v2291 = vsel %vm2094, %v2146, %v2099
    %v2292 = vsel %vm2094, %v2151, %v2100
    %v2293 = vsel %vm2094, %v2156, %v2101
    %v2294 = vsel %vm2094, %v2161, %v2102
    %v2295 = vsel %vm2094, %v2166, %v2103
    %v2296 = vsel %vm2094, %v2171, %v2104
    %v2297 = vsel %vm2094, %v2176, %v2105
    %v2298 = vsel %vm2094, %v2181, %v2106
    %v2299 = vsel %vm2094, %v2186, %v2107
    %v2300 = vsel %vm2094, %v2191, %v2108
    %v2301 = vsel %vm2094, %v2196, %v2109
    %v2302 = vsel %vm2094, %v2201, %v2110
    %v2303 = vsel %vm2094, %v2206, %v2111
    %v2304 = vsel %vm2094, %v2211, %v2112
    %v2305 = vsel %vm2094, %v2216, %v2113
    %v2306 = vsel %vm2094, %v2221, %v2114
    %v2307 = vsel %vm2094, %v2226, %v2115
    %v2308 = vsel %vm2094, %v2231, %v2116
    %v2309 = vsel %vm2094, %v2236, %v2117
    %v2310 = vsel %vm2094, %v2241, %v2118
    %v2311 = vsel %vm2094, %v2246, %v2119
    %v2312 = vsel %vm2094, %v2251, %v2120
    %v2313 = vsel %vm2094, %v2256, %v2121
    %v2314 = vsel %vm2094, %v2261, %v2122
    %v2315 = vsel %vm2094, %v2266, %v2123
    %v2316 = vsel %vm2094, %v2271, %v2124
    %v2317 = vsel %vm2094, %v2276, %v2125
    %v2318 = vsel %vm2094, %v2281, %v2126
    %v2319 = vsel %vm2094, %v2286, %v2127
    %v2320 = vsel %vm2093, %v1839, %v2288
    %v2321 = vsel %vm2093, %v1842, %v2289
    %v2322 = vsel %vm2093, %v1845, %v2290
    %v2323 = vsel %vm2093, %v1848, %v2291
    %v2324 = vsel %vm2093, %v1851, %v2292
    %v2325 = vsel %vm2093, %v1854, %v2293
    %v2326 = vsel %vm2093, %v1857, %v2294
    %v2327 = vsel %vm2093, %v1860, %v2295
    %v2328 = vsel %vm2093, %v1863, %v2296
    %v2329 = vsel %vm2093, %v1866, %v2297
    %v2330 = vsel %vm2093, %v1869, %v2298
    %v2331 = vsel %vm2093, %v1872, %v2299
    %v2332 = vsel %vm2093, %v1875, %v2300
    %v2333 = vsel %vm2093, %v1878, %v2301
    %v2334 = vsel %vm2093, %v1881, %v2302
    %v2335 = vsel %vm2093, %v1884, %v2303
    %v2336 = vsel %vm2093, %v1887, %v2304
    %v2337 = vsel %vm2093, %v1890, %v2305
    %v2338 = vsel %vm2093, %v1893, %v2306
    %v2339 = vsel %vm2093, %v1896, %v2307
    %v2340 = vsel %vm2093, %v1899, %v2308
    %v2341 = vsel %vm2093, %v1902, %v2309
    %v2342 = vsel %vm2093, %v1905, %v2310
    %v2343 = vsel %vm2093, %v1908, %v2311
    %v2344 = vsel %vm2093, %v1911, %v2312
    %v2345 = vsel %vm2093, %v1914, %v2313
    %v2346 = vsel %vm2093, %v1917, %v2314
    %v2347 = vsel %vm2093, %v1920, %v2315
    %v2348 = vsel %vm2093, %v1923, %v2316
    %v2349 = vsel %vm2093, %v1926, %v2317
    %v2350 = vsel %vm2093, %v1929, %v2318
    %v2351 = vsel %vm2093, %v1932, %v2319
    %2352 = vst [vmem:[#allocation2] sm:$0xff] %v2320
    %2353 = vst [vmem:[#allocation2 + $0x8] sm:$0xff] %v2321
    %2354 = vst [vmem:[#allocation2 + $0x10] sm:$0xff] %v2322
    %2355 = vst [vmem:[#allocation2 + $0x18] sm:$0xff] %v2323
    %2356 = vst [vmem:[#allocation2 + $0x20] sm:$0xff] %v2324
    %2357 = vst [vmem:[#allocation2 + $0x28] sm:$0xff] %v2325
    %2358 = vst [vmem:[#allocation2 + $0x30] sm:$0xff] %v2326
    %2359 = vst [vmem:[#allocation2 + $0x38] sm:$0xff] %v2327
    %2360 = vst [vmem:[#allocation2 + $0x40] sm:$0xff] %v2328
    %2361 = vst [vmem:[#allocation2 + $0x48] sm:$0xff] %v2329
    %2362 = vst [vmem:[#allocation2 + $0x50] sm:$0xff] %v2330
    %2363 = vst [vmem:[#allocation2 + $0x58] sm:$0xff] %v2331
    %2364 = vst [vmem:[#allocation2 + $0x60] sm:$0xff] %v2332
    %2365 = vst [vmem:[#allocation2 + $0x68] sm:$0xff] %v2333
    %2366 = vst [vmem:[#allocation2 + $0x70] sm:$0xff] %v2334
    %2367 = vst [vmem:[#allocation2 + $0x78] sm:$0xff] %v2335
    %2368 = vst [vmem:[#allocation2 + $0x80] sm:$0xff] %v2336
    %2369 = vst [vmem:[#allocation2 + $0x88] sm:$0xff] %v2337
    %2370 = vst [vmem:[#allocation2 + $0x90] sm:$0xff] %v2338
    %2371 = vst [vmem:[#allocation2 + $0x98] sm:$0xff] %v2339
    %2372 = vst [vmem:[#allocation2 + $0xa0] sm:$0xff] %v2340
    %2373 = vst [vmem:[#allocation2 + $0xa8] sm:$0xff] %v2341
    %2374 = vst [vmem:[#allocation2 + $0xb0] sm:$0xff] %v2342
    %2375 = vst [vmem:[#allocation2 + $0xb8] sm:$0xff] %v2343
    %2376 = vst [vmem:[#allocation2 + $0xc0] sm:$0xff] %v2344
    %2377 = vst [vmem:[#allocation2 + $0xc8] sm:$0xff] %v2345
    %2378 = vst [vmem:[#allocation2 + $0xd0] sm:$0xff] %v2346
    %2379 = vst [vmem:[#allocation2 + $0xd8] sm:$0xff] %v2347
    %2380 = vst [vmem:[#allocation2 + $0xe0] sm:$0xff] %v2348
    %2381 = vst [vmem:[#allocation2 + $0xe8] sm:$0xff] %v2349
    %2382 = vst [vmem:[#allocation2 + $0xf0] sm:$0xff] %v2350
    %2383 = vst [vmem:[#allocation2 + $0xf8] sm:$0xff] %v2351
    // Predicated region
    $region34: #{tpu_custom_call.1} parent=1 // pred_check
      _
    $region35: #{tpu_custom_call.1} parent=1 // pred_check_branch
      %2385 = sbr.rel (0) target = $region37
    $region36: #{tpu_custom_call.1} parent=1 // pred_region
      %s2387 = ssub.s32 4096, 4096
      %2388 = vsyncadd [#allocation3], %s2387
      %s2389 = sshll.u32 [#allocation2], 4
      %s2390 = int_to_ptr.vmem [resolvable:$true] %s2389
      %2395 = dma.vmem_to_hbm [thread:$0]  %s2390, 4096, %s8, [#allocation3], 128, 128, 8
    $region37: #{tpu_custom_call.1} parent=1 // pred_fallthru
      _
    // Predicated region
    $region38: #{tpu_custom_call.1} parent=1 // pred_check
      _
    $region39: #{tpu_custom_call.1} parent=1 // pred_check_branch
      %2397 = sbr.rel (0) target = $region41
    $region40: #{tpu_custom_call.1} parent=1 // pred_region
      %2398 = dma.done [#allocation3], 4096
    $region41: #{tpu_custom_call.1} parent=1 // pred_fallthru
      _
    %2399 = vsyncpa [#allocation3], 1

// kernel: tpu_custom_call.1
$region0: #{tpu_custom_call.1}
  #allocation0 [shape = 'u32[]', space=smem, size = 0x4, offset = 0x4, fixed_abs, tag = 'smem constant byte address 0x4 - core index']
  #allocation1 [shape = 'u32[144,128]{1,0:T(1,128)}', space=vmem, size = 0x12000, scoped, tag = 'internal scratch']
  %s0 = inlined_call_operand.vmem [shape: f32[256,16], index: 0, kind: input, shape index: {}]
  %s1 = inlined_call_operand.vmem [shape: s32[256,1], index: 1, kind: input, shape index: {}]
  %s2 = inlined_call_operand.vmem [shape: f32[16,64], index: 2, kind: input, shape index: {}]
  %s3 = inlined_call_operand.vmem [shape: f32[1,64], index: 3, kind: input, shape index: {}]
  %s4 = inlined_call_operand.vmem [shape: f32[64,64], index: 4, kind: input, shape index: {}]
  %s5 = inlined_call_operand.vmem [shape: f32[1,64], index: 5, kind: input, shape index: {}]
  %s6 = inlined_call_operand.vmem [shape: f32[64,9], index: 6, kind: input, shape index: {}]
  %s7 = inlined_call_operand.vmem [shape: f32[1,9], index: 7, kind: input, shape index: {}]
  %s8 = inlined_call_operand.hbm [shape: f32[256,128], index: 8, kind: output, shape index: {}]
  %s9 = sld [smem:[#allocation0]]
  $region42: #{tpu_custom_call.1} parent=0
    _
  %s11 = ssub.s32 1, %s9
  %s12 = scalar_select 0, %s11, %s9
  $region1: #{tpu_custom_call.1} parent=0
    #allocation2 [shape = 'u8[131072]{0}', space=vmem, size = 0x20000, scoped, tag = 'output window, operand 0, single buffered']
    #allocation3 [shape = 's32[1]{0}', space=sflag, size = 0x4, scoped, tag = 'scoped memory for tpu_custom_call.1']
    %13 = vsyncpa [#allocation3], 0
    // Predicated region
    $region2: #{tpu_custom_call.1} parent=1 // pred_check
      _
    $region3: #{tpu_custom_call.1} parent=1 // pred_check_branch
      %15 = sbr.rel (0) target = $region5
    $region4: #{tpu_custom_call.1} parent=1 // pred_region
      _
    $region5: #{tpu_custom_call.1} parent=1 // pred_fallthru
      _
    // Predicated region
    $region6: #{tpu_custom_call.1} parent=1 // pred_check
      _
    $region7: #{tpu_custom_call.1} parent=1 // pred_check_branch
      %17 = sbr.rel (0) target = $region9
    $region8: #{tpu_custom_call.1} parent=1 // pred_region
      _
    $region9: #{tpu_custom_call.1} parent=1 // pred_fallthru
      _
    // Predicated region
    $region10: #{tpu_custom_call.1} parent=1 // pred_check
      _
    $region11: #{tpu_custom_call.1} parent=1 // pred_check_branch
      %19 = sbr.rel (0) target = $region13
    $region12: #{tpu_custom_call.1} parent=1 // pred_region
      _
    $region13: #{tpu_custom_call.1} parent=1 // pred_fallthru
      _
    // Predicated region
    $region14: #{tpu_custom_call.1} parent=1 // pred_check
      _
    $region15: #{tpu_custom_call.1} parent=1 // pred_check_branch
      %21 = sbr.rel (0) target = $region17
    $region16: #{tpu_custom_call.1} parent=1 // pred_region
      _
    $region17: #{tpu_custom_call.1} parent=1 // pred_fallthru
      _
    // Predicated region
    $region18: #{tpu_custom_call.1} parent=1 // pred_check
      _
    $region19: #{tpu_custom_call.1} parent=1 // pred_check_branch
      %23 = sbr.rel (0) target = $region21
    $region20: #{tpu_custom_call.1} parent=1 // pred_region
      _
    $region21: #{tpu_custom_call.1} parent=1 // pred_fallthru
      _
    // Predicated region
    $region22: #{tpu_custom_call.1} parent=1 // pred_check
      _
    $region23: #{tpu_custom_call.1} parent=1 // pred_check_branch
      %25 = sbr.rel (0) target = $region25
    $region24: #{tpu_custom_call.1} parent=1 // pred_region
      _
    $region25: #{tpu_custom_call.1} parent=1 // pred_fallthru
      _
    // Predicated region
    $region26: #{tpu_custom_call.1} parent=1 // pred_check
      _
    $region27: #{tpu_custom_call.1} parent=1 // pred_check_branch
      %27 = sbr.rel (0) target = $region29
    $region28: #{tpu_custom_call.1} parent=1 // pred_region
      _
    $region29: #{tpu_custom_call.1} parent=1 // pred_fallthru
      _
    // Predicated region
    $region30: #{tpu_custom_call.1} parent=1 // pred_check
      _
    $region31: #{tpu_custom_call.1} parent=1 // pred_check_branch
      %29 = sbr.rel (0) target = $region33
    $region32: #{tpu_custom_call.1} parent=1 // pred_region
      _
    $region33: #{tpu_custom_call.1} parent=1 // pred_fallthru
      _
    %v30 = vld [vmem:[%s0] sm:$0xff]
    %v31 = vld [vmem:[%s0 + $0x8] sm:$0xff]
    %v32 = vld [vmem:[%s0 + $0x10] sm:$0xff]
    %v33 = vld [vmem:[%s0 + $0x18] sm:$0xff]
    %v34 = vld [vmem:[%s0 + $0x20] sm:$0xff]
    %v35 = vld [vmem:[%s0 + $0x28] sm:$0xff]
    %v36 = vld [vmem:[%s0 + $0x30] sm:$0xff]
    %v37 = vld [vmem:[%s0 + $0x38] sm:$0xff]
    %v38 = vld [vmem:[%s0 + $0x40] sm:$0xff]
    %v39 = vld [vmem:[%s0 + $0x48] sm:$0xff]
    %v40 = vld [vmem:[%s0 + $0x50] sm:$0xff]
    %v41 = vld [vmem:[%s0 + $0x58] sm:$0xff]
    %v42 = vld [vmem:[%s0 + $0x60] sm:$0xff]
    %v43 = vld [vmem:[%s0 + $0x68] sm:$0xff]
    %v44 = vld [vmem:[%s0 + $0x70] sm:$0xff]
    %v45 = vld [vmem:[%s0 + $0x78] sm:$0xff]
    %v46 = vld [vmem:[%s0 + $0x80] sm:$0xff]
    %v47 = vld [vmem:[%s0 + $0x88] sm:$0xff]
    %v48 = vld [vmem:[%s0 + $0x90] sm:$0xff]
    %v49 = vld [vmem:[%s0 + $0x98] sm:$0xff]
    %v50 = vld [vmem:[%s0 + $0xa0] sm:$0xff]
    %v51 = vld [vmem:[%s0 + $0xa8] sm:$0xff]
    %v52 = vld [vmem:[%s0 + $0xb0] sm:$0xff]
    %v53 = vld [vmem:[%s0 + $0xb8] sm:$0xff]
    %v54 = vld [vmem:[%s0 + $0xc0] sm:$0xff]
    %v55 = vld [vmem:[%s0 + $0xc8] sm:$0xff]
    %v56 = vld [vmem:[%s0 + $0xd0] sm:$0xff]
    %v57 = vld [vmem:[%s0 + $0xd8] sm:$0xff]
    %v58 = vld [vmem:[%s0 + $0xe0] sm:$0xff]
    %v59 = vld [vmem:[%s0 + $0xe8] sm:$0xff]
    %v60 = vld [vmem:[%s0 + $0xf0] sm:$0xff]
    %v61 = vld [vmem:[%s0 + $0xf8] sm:$0xff]
    %v62 = vld [vmem:[%s2] sm:$0xff]
    %v63 = vld [vmem:[%s2 + $0x8] sm:$0xff]
    %v64 = vld [vmem:[%s3] sm:$0x1]
    %v66 = vlaneseq
    %v67 = vshrl.u32 %v66, 7
    %v68 = vsub.s32 0, %v67
    %v69 = vrot.slane %v64, %v68
    %vm71 = vcmask 130048
    %v73 = vsel %vm71, %v30, 0
    %v76 = vsel %vm71, %v31, 0
    %v79 = vsel %vm71, %v32, 0
    %v82 = vsel %vm71, %v33, 0
    %v85 = vsel %vm71, %v34, 0
    %v88 = vsel %vm71, %v35, 0
    %v91 = vsel %vm71, %v36, 0
    %v94 = vsel %vm71, %v37, 0
    %v97 = vsel %vm71, %v38, 0
    %v100 = vsel %vm71, %v39, 0
    %v103 = vsel %vm71, %v40, 0
    %v106 = vsel %vm71, %v41, 0
    %v109 = vsel %vm71, %v42, 0
    %v112 = vsel %vm71, %v43, 0
    %v115 = vsel %vm71, %v44, 0
    %v118 = vsel %vm71, %v45, 0
    %v121 = vsel %vm71, %v46, 0
    %v124 = vsel %vm71, %v47, 0
    %v127 = vsel %vm71, %v48, 0
    %v130 = vsel %vm71, %v49, 0
    %v133 = vsel %vm71, %v50, 0
    %v136 = vsel %vm71, %v51, 0
    %v139 = vsel %vm71, %v52, 0
    %v142 = vsel %vm71, %v53, 0
    %v145 = vsel %vm71, %v54, 0
    %v148 = vsel %vm71, %v55, 0
    %v151 = vsel %vm71, %v56, 0
    %v154 = vsel %vm71, %v57, 0
    %v157 = vsel %vm71, %v58, 0
    %v160 = vsel %vm71, %v59, 0
    %v163 = vsel %vm71, %v60, 0
    %v166 = vsel %vm71, %v61, 0
    %168 = vmatprep.subr.mxu0 0.0
    %169 = vmatpush1.msra.mxu0 %v62
    %170 = vmatprep.subr.mxu0 0.0
    %171 = vmatpush1.msra.mxu0 %v63
    %172 = vmatprep.subr.mxu0 0.0
    %173 = vmatpush1.msra.mxu0 0.0
    %174 = vmatprep.subr.mxu0 0.0
    %175 = vmatpush1.msra.mxu0 0.0
    %176 = vmatprep.subr.mxu0 0.0
    %177 = vmatpush1.msra.mxu0 0.0
    %178 = vmatprep.subr.mxu0 0.0
    %179 = vmatpush1.msra.mxu0 0.0
    %180 = vmatprep.subr.mxu0 0.0
    %181 = vmatpush1.msra.mxu0 0.0
    %182 = vmatprep.subr.mxu0 0.0
    %183 = vmatpush1.msra.mxu0 0.0
    %184 = vmatprep.subr.mxu0 0.0
    %185 = vmatpush1.msra.mxu0 0.0
    %186 = vmatprep.subr.mxu0 0.0
    %187 = vmatpush1.msra.mxu0 0.0
    %188 = vmatprep.subr.mxu0 0.0
    %189 = vmatpush1.msra.mxu0 0.0
    %190 = vmatprep.subr.mxu0 0.0
    %191 = vmatpush1.msra.mxu0 0.0
    %192 = vmatprep.subr.mxu0 0.0
    %193 = vmatpush1.msra.mxu0 0.0
    %194 = vmatprep.subr.mxu0 0.0
    %195 = vmatpush1.msra.mxu0 0.0
    %196 = vmatprep.subr.mxu0 0.0
    %197 = vmatpush1.msra.mxu0 0.0
    %198 = vmatprep.subr.mxu0 0.0
    %199 = vmatpush1.msra.mxu0 0.0
    %200 = vmatprep.subr.mxu0 0.0
    %201 = vmatpush1.msra.mxu0 0.0
    %202 = vmatprep.subr.mxu0 0.0
    %203 = vmatpush1.msra.mxu0 0.0
    %204 = vmatprep.subr.mxu0 0.0
    %205 = vmatpush1.msra.mxu0 0.0
    %206 = vmatprep.subr.mxu0 0.0
    %207 = vmatpush1.msra.mxu0 0.0
    %208 = vmatprep.subr.mxu0 0.0
    %209 = vmatpush1.msra.mxu0 0.0
    %210 = vmatprep.subr.mxu0 0.0
    %211 = vmatpush1.msra.mxu0 0.0
    %212 = vmatprep.subr.mxu0 0.0
    %213 = vmatpush1.msra.mxu0 0.0
    %214 = vmatprep.subr.mxu0 0.0
    %215 = vmatpush1.msra.mxu0 0.0
    %216 = vmatprep.subr.mxu0 0.0
    %217 = vmatpush1.msra.mxu0 0.0
    %218 = vmatprep.subr.mxu0 0.0
    %219 = vmatpush1.msra.mxu0 0.0
    %220 = vmatprep.subr.mxu0 0.0
    %221 = vmatpush1.msra.mxu0 0.0
    %222 = vmatprep.subr.mxu0 0.0
    %223 = vmatpush1.msra.mxu0 0.0
    %224 = vmatprep.subr.mxu0 0.0
    %225 = vmatpush1.msra.mxu0 0.0
    %226 = vmatprep.subr.mxu0 0.0
    %227 = vmatpush1.msra.mxu0 0.0
    %228 = vmatprep.subr.mxu0 0.0
    %229 = vmatpush1.msra.mxu0 0.0
    %230 = vmatprep.subr.mxu0 0.0
    %231 = vmatpush1.msra.mxu0 0.0
    %232 = vmatprep.mubr.f32.mxu0 0.0
    %233 = vmatmul.mubr.f32.gmra.mrb[0].mxu0 %v73
    %v234 = vpop.f32.mrb[0].mxu0
    %v235 = vadd.f32 %v69, %v234
    %v236 = vpop.f32.mrb[0].mxu0
    %237 = vmatprep.mubr.f32.mxu0 0.0
    %238 = vmatmul.mubr.f32.gmra.mrb[0].mxu0 %v76
    %v239 = vpop.f32.mrb[0].mxu0
    %v240 = vadd.f32 %v69, %v239
    %v241 = vpop.f32.mrb[0].mxu0
    %242 = vmatprep.mubr.f32.mxu0 0.0
    %243 = vmatmul.mubr.f32.gmra.mrb[0].mxu0 %v79
    %v244 = vpop.f32.mrb[0].mxu0
    %v245 = vadd.f32 %v69, %v244
    %v246 = vpop.f32.mrb[0].mxu0
    %247 = vmatprep.mubr.f32.mxu0 0.0
    %248 = vmatmul.mubr.f32.gmra.mrb[0].mxu0 %v82
    %v249 = vpop.f32.mrb[0].mxu0
    %v250 = vadd.f32 %v69, %v249
    %v251 = vpop.f32.mrb[0].mxu0
    %252 = vmatprep.mubr.f32.mxu0 0.0
    %253 = vmatmul.mubr.f32.gmra.mrb[0].mxu0 %v85
    %v254 = vpop.f32.mrb[0].mxu0
    %v255 = vadd.f32 %v69, %v254
    %v256 = vpop.f32.mrb[0].mxu0
    %257 = vmatprep.mubr.f32.mxu0 0.0
    %258 = vmatmul.mubr.f32.gmra.mrb[0].mxu0 %v88
    %v259 = vpop.f32.mrb[0].mxu0
    %v260 = vadd.f32 %v69, %v259
    %v261 = vpop.f32.mrb[0].mxu0
    %262 = vmatprep.mubr.f32.mxu0 0.0
    %263 = vmatmul.mubr.f32.gmra.mrb[0].mxu0 %v91
    %v264 = vpop.f32.mrb[0].mxu0
    %v265 = vadd.f32 %v69, %v264
    %v266 = vpop.f32.mrb[0].mxu0
    %267 = vmatprep.mubr.f32.mxu0 0.0
    %268 = vmatmul.mubr.f32.gmra.mrb[0].mxu0 %v94
    %v269 = vpop.f32.mrb[0].mxu0
    %v270 = vadd.f32 %v69, %v269
    %v271 = vpop.f32.mrb[0].mxu0
    %272 = vmatprep.mubr.f32.mxu0 0.0
    %273 = vmatmul.mubr.f32.gmra.mrb[0].mxu0 %v97
    %v274 = vpop.f32.mrb[0].mxu0
    %v275 = vadd.f32 %v69, %v274
    %v276 = vpop.f32.mrb[0].mxu0
    %277 = vmatprep.mubr.f32.mxu0 0.0
    %278 = vmatmul.mubr.f32.gmra.mrb[0].mxu0 %v100
    %v279 = vpop.f32.mrb[0].mxu0
    %v280 = vadd.f32 %v69, %v279
    %v281 = vpop.f32.mrb[0].mxu0
    %282 = vmatprep.mubr.f32.mxu0 0.0
    %283 = vmatmul.mubr.f32.gmra.mrb[0].mxu0 %v103
    %v284 = vpop.f32.mrb[0].mxu0
    %v285 = vadd.f32 %v69, %v284
    %v286 = vpop.f32.mrb[0].mxu0
    %287 = vmatprep.mubr.f32.mxu0 0.0
    %288 = vmatmul.mubr.f32.gmra.mrb[0].mxu0 %v106
    %v289 = vpop.f32.mrb[0].mxu0
    %v290 = vadd.f32 %v69, %v289
    %v291 = vpop.f32.mrb[0].mxu0
    %292 = vmatprep.mubr.f32.mxu0 0.0
    %293 = vmatmul.mubr.f32.gmra.mrb[0].mxu0 %v109
    %v294 = vpop.f32.mrb[0].mxu0
    %v295 = vadd.f32 %v69, %v294
    %v296 = vpop.f32.mrb[0].mxu0
    %297 = vmatprep.mubr.f32.mxu0 0.0
    %298 = vmatmul.mubr.f32.gmra.mrb[0].mxu0 %v112
    %v299 = vpop.f32.mrb[0].mxu0
    %v300 = vadd.f32 %v69, %v299
    %v301 = vpop.f32.mrb[0].mxu0
    %302 = vmatprep.mubr.f32.mxu0 0.0
    %303 = vmatmul.mubr.f32.gmra.mrb[0].mxu0 %v115
    %v304 = vpop.f32.mrb[0].mxu0
    %v305 = vadd.f32 %v69, %v304
    %v306 = vpop.f32.mrb[0].mxu0
    %307 = vmatprep.mubr.f32.mxu0 0.0
    %308 = vmatmul.mubr.f32.gmra.mrb[0].mxu0 %v118
    %v309 = vpop.f32.mrb[0].mxu0
    %v310 = vadd.f32 %v69, %v309
    %v311 = vpop.f32.mrb[0].mxu0
    %312 = vmatprep.mubr.f32.mxu0 0.0
    %313 = vmatmul.mubr.f32.gmra.mrb[0].mxu0 %v121
    %v314 = vpop.f32.mrb[0].mxu0
    %v315 = vadd.f32 %v69, %v314
    %v316 = vpop.f32.mrb[0].mxu0
    %317 = vmatprep.mubr.f32.mxu0 0.0
    %318 = vmatmul.mubr.f32.gmra.mrb[0].mxu0 %v124
    %v319 = vpop.f32.mrb[0].mxu0
    %v320 = vadd.f32 %v69, %v319
    %v321 = vpop.f32.mrb[0].mxu0
    %322 = vmatprep.mubr.f32.mxu0 0.0
    %323 = vmatmul.mubr.f32.gmra.mrb[0].mxu0 %v127
    %v324 = vpop.f32.mrb[0].mxu0
    %v325 = vadd.f32 %v69, %v324
    %v326 = vpop.f32.mrb[0].mxu0
    %327 = vmatprep.mubr.f32.mxu0 0.0
    %328 = vmatmul.mubr.f32.gmra.mrb[0].mxu0 %v130
    %v329 = vpop.f32.mrb[0].mxu0
    %v330 = vadd.f32 %v69, %v329
    %v331 = vpop.f32.mrb[0].mxu0
    %332 = vmatprep.mubr.f32.mxu0 0.0
    %333 = vmatmul.mubr.f32.gmra.mrb[0].mxu0 %v133
    %v334 = vpop.f32.mrb[0].mxu0
    %v335 = vadd.f32 %v69, %v334
    %v336 = vpop.f32.mrb[0].mxu0
    %337 = vmatprep.mubr.f32.mxu0 0.0
    %338 = vmatmul.mubr.f32.gmra.mrb[0].mxu0 %v136
    %v339 = vpop.f32.mrb[0].mxu0
    %v340 = vadd.f32 %v69, %v339
    %v341 = vpop.f32.mrb[0].mxu0
    %342 = vmatprep.mubr.f32.mxu0 0.0
    %343 = vmatmul.mubr.f32.gmra.mrb[0].mxu0 %v139
    %v344 = vpop.f32.mrb[0].mxu0
    %v345 = vadd.f32 %v69, %v344
    %v346 = vpop.f32.mrb[0].mxu0
    %347 = vmatprep.mubr.f32.mxu0 0.0
    %348 = vmatmul.mubr.f32.gmra.mrb[0].mxu0 %v142
    %v349 = vpop.f32.mrb[0].mxu0
    %v350 = vadd.f32 %v69, %v349
    %v351 = vpop.f32.mrb[0].mxu0
    %352 = vmatprep.mubr.f32.mxu0 0.0
    %353 = vmatmul.mubr.f32.gmra.mrb[0].mxu0 %v145
    %v354 = vpop.f32.mrb[0].mxu0
    %v355 = vadd.f32 %v69, %v354
    %v356 = vpop.f32.mrb[0].mxu0
    %357 = vmatprep.mubr.f32.mxu0 0.0
    %358 = vmatmul.mubr.f32.gmra.mrb[0].mxu0 %v148
    %v359 = vpop.f32.mrb[0].mxu0
    %v360 = vadd.f32 %v69, %v359
    %v361 = vpop.f32.mrb[0].mxu0
    %362 = vmatprep.mubr.f32.mxu0 0.0
    %363 = vmatmul.mubr.f32.gmra.mrb[0].mxu0 %v151
    %v364 = vpop.f32.mrb[0].mxu0
    %v365 = vadd.f32 %v69, %v364
    %v366 = vpop.f32.mrb[0].mxu0
    %367 = vmatprep.mubr.f32.mxu0 0.0
    %368 = vmatmul.mubr.f32.gmra.mrb[0].mxu0 %v154
    %v369 = vpop.f32.mrb[0].mxu0
    %v370 = vadd.f32 %v69, %v369
    %v371 = vpop.f32.mrb[0].mxu0
    %372 = vmatprep.mubr.f32.mxu0 0.0
    %373 = vmatmul.mubr.f32.gmra.mrb[0].mxu0 %v157
    %v374 = vpop.f32.mrb[0].mxu0
    %v375 = vadd.f32 %v69, %v374
    %v376 = vpop.f32.mrb[0].mxu0
    %377 = vmatprep.mubr.f32.mxu0 0.0
    %378 = vmatmul.mubr.f32.gmra.mrb[0].mxu0 %v160
    %v379 = vpop.f32.mrb[0].mxu0
    %v380 = vadd.f32 %v69, %v379
    %v381 = vpop.f32.mrb[0].mxu0
    %382 = vmatprep.mubr.f32.mxu0 0.0
    %383 = vmatmul.mubr.f32.gmra.mrb[0].mxu0 %v163
    %v384 = vpop.f32.mrb[0].mxu0
    %v385 = vadd.f32 %v69, %v384
    %v386 = vpop.f32.mrb[0].mxu0
    %387 = vmatprep.mubr.f32.mxu0 0.0
    %388 = vmatmul.mubr.f32.gmra.mrb[0].mxu0 %v166
    %v389 = vpop.f32.mrb[0].mxu0
    %v390 = vadd.f32 %v69, %v389
    %v391 = vpop.f32.mrb[0].mxu0
    %392 = vdwg.mxu0
    %v393 = vmax.f32 %v235, 0.0
    %v394 = vmax.f32 %v240, 0.0
    %v395 = vmax.f32 %v245, 0.0
    %v396 = vmax.f32 %v250, 0.0
    %v397 = vmax.f32 %v255, 0.0
    %v398 = vmax.f32 %v260, 0.0
    %v399 = vmax.f32 %v265, 0.0
    %v400 = vmax.f32 %v270, 0.0
    %v401 = vmax.f32 %v275, 0.0
    %v402 = vmax.f32 %v280, 0.0
    %v403 = vmax.f32 %v285, 0.0
    %v404 = vmax.f32 %v290, 0.0
    %v405 = vmax.f32 %v295, 0.0
    %v406 = vmax.f32 %v300, 0.0
    %v407 = vmax.f32 %v305, 0.0
    %v408 = vmax.f32 %v310, 0.0
    %v409 = vmax.f32 %v315, 0.0
    %v410 = vmax.f32 %v320, 0.0
    %v411 = vmax.f32 %v325, 0.0
    %v412 = vmax.f32 %v330, 0.0
    %v413 = vmax.f32 %v335, 0.0
    %v414 = vmax.f32 %v340, 0.0
    %v415 = vmax.f32 %v345, 0.0
    %v416 = vmax.f32 %v350, 0.0
    %v417 = vmax.f32 %v355, 0.0
    %v418 = vmax.f32 %v360, 0.0
    %v419 = vmax.f32 %v365, 0.0
    %v420 = vmax.f32 %v370, 0.0
    %v421 = vmax.f32 %v375, 0.0
    %v422 = vmax.f32 %v380, 0.0
    %v423 = vmax.f32 %v385, 0.0
    %v424 = vmax.f32 %v390, 0.0
    %v425 = vld [vmem:[%s4] sm:$0xff]
    %v426 = vld [vmem:[%s4 + $0x8] sm:$0xff]
    %v427 = vld [vmem:[%s4 + $0x10] sm:$0xff]
    %v428 = vld [vmem:[%s4 + $0x18] sm:$0xff]
    %v429 = vld [vmem:[%s4 + $0x20] sm:$0xff]
    %v430 = vld [vmem:[%s4 + $0x28] sm:$0xff]
    %v431 = vld [vmem:[%s4 + $0x30] sm:$0xff]
    %v432 = vld [vmem:[%s4 + $0x38] sm:$0xff]
    %v433 = vld [vmem:[%s5] sm:$0x1]
    %v435 = vlaneseq
    %v436 = vshrl.u32 %v435, 7
    %v437 = vsub.s32 0, %v436
    %v438 = vrot.slane %v433, %v437
    %vm440 = vcmask 523264
    %v442 = vsel %vm440, %v393, 0
    %v445 = vsel %vm440, %v394, 0
    %v448 = vsel %vm440, %v395, 0
    %v451 = vsel %vm440, %v396, 0
    %v454 = vsel %vm440, %v397, 0
    %v457 = vsel %vm440, %v398, 0
    %v460 = vsel %vm440, %v399, 0
    %v463 = vsel %vm440, %v400, 0
    %v466 = vsel %vm440, %v401, 0
    %v469 = vsel %vm440, %v402, 0
    %v472 = vsel %vm440, %v403, 0
    %v475 = vsel %vm440, %v404, 0
    %v478 = vsel %vm440, %v405, 0
    %v481 = vsel %vm440, %v406, 0
    %v484 = vsel %vm440, %v407, 0
    %v487 = vsel %vm440, %v408, 0
    %v490 = vsel %vm440, %v409, 0
    %v493 = vsel %vm440, %v410, 0
    %v496 = vsel %vm440, %v411, 0
    %v499 = vsel %vm440, %v412, 0
    %v502 = vsel %vm440, %v413, 0
    %v505 = vsel %vm440, %v414, 0
    %v508 = vsel %vm440, %v415, 0
    %v511 = vsel %vm440, %v416, 0
    %v514 = vsel %vm440, %v417, 0
    %v517 = vsel %vm440, %v418, 0
    %v520 = vsel %vm440, %v419, 0
    %v523 = vsel %vm440, %v420, 0
    %v526 = vsel %vm440, %v421, 0
    %v529 = vsel %vm440, %v422, 0
    %v532 = vsel %vm440, %v423, 0
    %v535 = vsel %vm440, %v424, 0
    %537 = vmatprep.subr.mxu0 0.0
    %538 = vmatpush1.msra.mxu0 %v425
    %539 = vmatprep.subr.mxu0 0.0
    %540 = vmatpush1.msra.mxu0 %v426
    %541 = vmatprep.subr.mxu0 0.0
    %542 = vmatpush1.msra.mxu0 %v427
    %543 = vmatprep.subr.mxu0 0.0
    %544 = vmatpush1.msra.mxu0 %v428
    %545 = vmatprep.subr.mxu0 0.0
    %546 = vmatpush1.msra.mxu0 %v429
    %547 = vmatprep.subr.mxu0 0.0
    %548 = vmatpush1.msra.mxu0 %v430
    %549 = vmatprep.subr.mxu0 0.0
    %550 = vmatpush1.msra.mxu0 %v431
    %551 = vmatprep.subr.mxu0 0.0
    %552 = vmatpush1.msra.mxu0 %v432
    %553 = vmatprep.subr.mxu0 0.0
    %554 = vmatpush1.msra.mxu0 0.0
    %555 = vmatprep.subr.mxu0 0.0
    %556 = vmatpush1.msra.mxu0 0.0
    %557 = vmatprep.subr.mxu0 0.0
    %558 = vmatpush1.msra.mxu0 0.0
    %559 = vmatprep.subr.mxu0 0.0
    %560 = vmatpush1.msra.mxu0 0.0
    %561 = vmatprep.subr.mxu0 0.0
    %562 = vmatpush1.msra.mxu0 0.0
    %563 = vmatprep.subr.mxu0 0.0
    %564 = vmatpush1.msra.mxu0 0.0
    %565 = vmatprep.subr.mxu0 0.0
    %566 = vmatpush1.msra.mxu0 0.0
    %567 = vmatprep.subr.mxu0 0.0
    %568 = vmatpush1.msra.mxu0 0.0
    %569 = vmatprep.subr.mxu0 0.0
    %570 = vmatpush1.msra.mxu0 0.0
    %571 = vmatprep.subr.mxu0 0.0
    %572 = vmatpush1.msra.mxu0 0.0
    %573 = vmatprep.subr.mxu0 0.0
    %574 = vmatpush1.msra.mxu0 0.0
    %575 = vmatprep.subr.mxu0 0.0
    %576 = vmatpush1.msra.mxu0 0.0
    %577 = vmatprep.subr.mxu0 0.0
    %578 = vmatpush1.msra.mxu0 0.0
    %579 = vmatprep.subr.mxu0 0.0
    %580 = vmatpush1.msra.mxu0 0.0
    %581 = vmatprep.subr.mxu0 0.0
    %582 = vmatpush1.msra.mxu0 0.0
    %583 = vmatprep.subr.mxu0 0.0
    %584 = vmatpush1.msra.mxu0 0.0
    %585 = vmatprep.subr.mxu0 0.0
    %586 = vmatpush1.msra.mxu0 0.0
    %587 = vmatprep.subr.mxu0 0.0
    %588 = vmatpush1.msra.mxu0 0.0
    %589 = vmatprep.subr.mxu0 0.0
    %590 = vmatpush1.msra.mxu0 0.0
    %591 = vmatprep.subr.mxu0 0.0
    %592 = vmatpush1.msra.mxu0 0.0
    %593 = vmatprep.subr.mxu0 0.0
    %594 = vmatpush1.msra.mxu0 0.0
    %595 = vmatprep.subr.mxu0 0.0
    %596 = vmatpush1.msra.mxu0 0.0
    %597 = vmatprep.subr.mxu0 0.0
    %598 = vmatpush1.msra.mxu0 0.0
    %599 = vmatprep.subr.mxu0 0.0
    %600 = vmatpush1.msra.mxu0 0.0
    %601 = vmatprep.mubr.f32.mxu0 0.0
    %602 = vmatmul.mubr.f32.gmra.mrb[0].mxu0 %v442
    %v603 = vpop.f32.mrb[0].mxu0
    %v604 = vadd.f32 %v438, %v603
    %v605 = vpop.f32.mrb[0].mxu0
    %606 = vmatprep.mubr.f32.mxu0 0.0
    %607 = vmatmul.mubr.f32.gmra.mrb[0].mxu0 %v445
    %v608 = vpop.f32.mrb[0].mxu0
    %v609 = vadd.f32 %v438, %v608
    %v610 = vpop.f32.mrb[0].mxu0
    %611 = vmatprep.mubr.f32.mxu0 0.0
    %612 = vmatmul.mubr.f32.gmra.mrb[0].mxu0 %v448
    %v613 = vpop.f32.mrb[0].mxu0
    %v614 = vadd.f32 %v438, %v613
    %v615 = vpop.f32.mrb[0].mxu0
    %616 = vmatprep.mubr.f32.mxu0 0.0
    %617 = vmatmul.mubr.f32.gmra.mrb[0].mxu0 %v451
    %v618 = vpop.f32.mrb[0].mxu0
    %v619 = vadd.f32 %v438, %v618
    %v620 = vpop.f32.mrb[0].mxu0
    %621 = vmatprep.mubr.f32.mxu0 0.0
    %622 = vmatmul.mubr.f32.gmra.mrb[0].mxu0 %v454
    %v623 = vpop.f32.mrb[0].mxu0
    %v624 = vadd.f32 %v438, %v623
    %v625 = vpop.f32.mrb[0].mxu0
    %626 = vmatprep.mubr.f32.mxu0 0.0
    %627 = vmatmul.mubr.f32.gmra.mrb[0].mxu0 %v457
    %v628 = vpop.f32.mrb[0].mxu0
    %v629 = vadd.f32 %v438, %v628
    %v630 = vpop.f32.mrb[0].mxu0
    %631 = vmatprep.mubr.f32.mxu0 0.0
    %632 = vmatmul.mubr.f32.gmra.mrb[0].mxu0 %v460
    %v633 = vpop.f32.mrb[0].mxu0
    %v634 = vadd.f32 %v438, %v633
    %v635 = vpop.f32.mrb[0].mxu0
    %636 = vmatprep.mubr.f32.mxu0 0.0
    %637 = vmatmul.mubr.f32.gmra.mrb[0].mxu0 %v463
    %v638 = vpop.f32.mrb[0].mxu0
    %v639 = vadd.f32 %v438, %v638
    %v640 = vpop.f32.mrb[0].mxu0
    %641 = vmatprep.mubr.f32.mxu0 0.0
    %642 = vmatmul.mubr.f32.gmra.mrb[0].mxu0 %v466
    %v643 = vpop.f32.mrb[0].mxu0
    %v644 = vadd.f32 %v438, %v643
    %v645 = vpop.f32.mrb[0].mxu0
    %646 = vmatprep.mubr.f32.mxu0 0.0
    %647 = vmatmul.mubr.f32.gmra.mrb[0].mxu0 %v469
    %v648 = vpop.f32.mrb[0].mxu0
    %v649 = vadd.f32 %v438, %v648
    %v650 = vpop.f32.mrb[0].mxu0
    %651 = vmatprep.mubr.f32.mxu0 0.0
    %652 = vmatmul.mubr.f32.gmra.mrb[0].mxu0 %v472
    %v653 = vpop.f32.mrb[0].mxu0
    %v654 = vadd.f32 %v438, %v653
    %v655 = vpop.f32.mrb[0].mxu0
    %656 = vmatprep.mubr.f32.mxu0 0.0
    %657 = vmatmul.mubr.f32.gmra.mrb[0].mxu0 %v475
    %v658 = vpop.f32.mrb[0].mxu0
    %v659 = vadd.f32 %v438, %v658
    %v660 = vpop.f32.mrb[0].mxu0
    %661 = vmatprep.mubr.f32.mxu0 0.0
    %662 = vmatmul.mubr.f32.gmra.mrb[0].mxu0 %v478
    %v663 = vpop.f32.mrb[0].mxu0
    %v664 = vadd.f32 %v438, %v663
    %v665 = vpop.f32.mrb[0].mxu0
    %666 = vmatprep.mubr.f32.mxu0 0.0
    %667 = vmatmul.mubr.f32.gmra.mrb[0].mxu0 %v481
    %v668 = vpop.f32.mrb[0].mxu0
    %v669 = vadd.f32 %v438, %v668
    %v670 = vpop.f32.mrb[0].mxu0
    %671 = vmatprep.mubr.f32.mxu0 0.0
    %672 = vmatmul.mubr.f32.gmra.mrb[0].mxu0 %v484
    %v673 = vpop.f32.mrb[0].mxu0
    %v674 = vadd.f32 %v438, %v673
    %v675 = vpop.f32.mrb[0].mxu0
    %676 = vmatprep.mubr.f32.mxu0 0.0
    %677 = vmatmul.mubr.f32.gmra.mrb[0].mxu0 %v487
    %v678 = vpop.f32.mrb[0].mxu0
    %v679 = vadd.f32 %v438, %v678
    %v680 = vpop.f32.mrb[0].mxu0
    %681 = vmatprep.mubr.f32.mxu0 0.0
    %682 = vmatmul.mubr.f32.gmra.mrb[0].mxu0 %v490
    %v683 = vpop.f32.mrb[0].mxu0
    %v684 = vadd.f32 %v438, %v683
    %v685 = vpop.f32.mrb[0].mxu0
    %686 = vmatprep.mubr.f32.mxu0 0.0
    %687 = vmatmul.mubr.f32.gmra.mrb[0].mxu0 %v493
    %v688 = vpop.f32.mrb[0].mxu0
    %v689 = vadd.f32 %v438, %v688
    %v690 = vpop.f32.mrb[0].mxu0
    %691 = vmatprep.mubr.f32.mxu0 0.0
    %692 = vmatmul.mubr.f32.gmra.mrb[0].mxu0 %v496
    %v693 = vpop.f32.mrb[0].mxu0
    %v694 = vadd.f32 %v438, %v693
    %v695 = vpop.f32.mrb[0].mxu0
    %696 = vmatprep.mubr.f32.mxu0 0.0
    %697 = vmatmul.mubr.f32.gmra.mrb[0].mxu0 %v499
    %v698 = vpop.f32.mrb[0].mxu0
    %v699 = vadd.f32 %v438, %v698
    %v700 = vpop.f32.mrb[0].mxu0
    %701 = vmatprep.mubr.f32.mxu0 0.0
    %702 = vmatmul.mubr.f32.gmra.mrb[0].mxu0 %v502
    %v703 = vpop.f32.mrb[0].mxu0
    %v704 = vadd.f32 %v438, %v703
    %v705 = vpop.f32.mrb[0].mxu0
    %706 = vmatprep.mubr.f32.mxu0 0.0
    %707 = vmatmul.mubr.f32.gmra.mrb[0].mxu0 %v505
    %v708 = vpop.f32.mrb[0].mxu0
    %v709 = vadd.f32 %v438, %v708
    %v710 = vpop.f32.mrb[0].mxu0
    %711 = vmatprep.mubr.f32.mxu0 0.0
    %712 = vmatmul.mubr.f32.gmra.mrb[0].mxu0 %v508
    %v713 = vpop.f32.mrb[0].mxu0
    %v714 = vadd.f32 %v438, %v713
    %v715 = vpop.f32.mrb[0].mxu0
    %716 = vmatprep.mubr.f32.mxu0 0.0
    %717 = vmatmul.mubr.f32.gmra.mrb[0].mxu0 %v511
    %v718 = vpop.f32.mrb[0].mxu0
    %v719 = vadd.f32 %v438, %v718
    %v720 = vpop.f32.mrb[0].mxu0
    %721 = vmatprep.mubr.f32.mxu0 0.0
    %722 = vmatmul.mubr.f32.gmra.mrb[0].mxu0 %v514
    %v723 = vpop.f32.mrb[0].mxu0
    %v724 = vadd.f32 %v438, %v723
    %v725 = vpop.f32.mrb[0].mxu0
    %726 = vmatprep.mubr.f32.mxu0 0.0
    %727 = vmatmul.mubr.f32.gmra.mrb[0].mxu0 %v517
    %v728 = vpop.f32.mrb[0].mxu0
    %v729 = vadd.f32 %v438, %v728
    %v730 = vpop.f32.mrb[0].mxu0
    %731 = vmatprep.mubr.f32.mxu0 0.0
    %732 = vmatmul.mubr.f32.gmra.mrb[0].mxu0 %v520
    %v733 = vpop.f32.mrb[0].mxu0
    %v734 = vadd.f32 %v438, %v733
    %v735 = vpop.f32.mrb[0].mxu0
    %736 = vmatprep.mubr.f32.mxu0 0.0
    %737 = vmatmul.mubr.f32.gmra.mrb[0].mxu0 %v523
    %v738 = vpop.f32.mrb[0].mxu0
    %v739 = vadd.f32 %v438, %v738
    %v740 = vpop.f32.mrb[0].mxu0
    %741 = vmatprep.mubr.f32.mxu0 0.0
    %742 = vmatmul.mubr.f32.gmra.mrb[0].mxu0 %v526
    %v743 = vpop.f32.mrb[0].mxu0
    %v744 = vadd.f32 %v438, %v743
    %v745 = vpop.f32.mrb[0].mxu0
    %746 = vmatprep.mubr.f32.mxu0 0.0
    %747 = vmatmul.mubr.f32.gmra.mrb[0].mxu0 %v529
    %v748 = vpop.f32.mrb[0].mxu0
    %v749 = vadd.f32 %v438, %v748
    %v750 = vpop.f32.mrb[0].mxu0
    %751 = vmatprep.mubr.f32.mxu0 0.0
    %752 = vmatmul.mubr.f32.gmra.mrb[0].mxu0 %v532
    %v753 = vpop.f32.mrb[0].mxu0
    %v754 = vadd.f32 %v438, %v753
    %v755 = vpop.f32.mrb[0].mxu0
    %756 = vmatprep.mubr.f32.mxu0 0.0
    %757 = vmatmul.mubr.f32.gmra.mrb[0].mxu0 %v535
    %v758 = vpop.f32.mrb[0].mxu0
    %v759 = vadd.f32 %v438, %v758
    %v760 = vpop.f32.mrb[0].mxu0
    %761 = vdwg.mxu0
    %v762 = vmax.f32 %v604, 0.0
    %v763 = vmax.f32 %v609, 0.0
    %v764 = vmax.f32 %v614, 0.0
    %v765 = vmax.f32 %v619, 0.0
    %v766 = vmax.f32 %v624, 0.0
    %v767 = vmax.f32 %v629, 0.0
    %v768 = vmax.f32 %v634, 0.0
    %v769 = vmax.f32 %v639, 0.0
    %v770 = vmax.f32 %v644, 0.0
    %v771 = vmax.f32 %v649, 0.0
    %v772 = vmax.f32 %v654, 0.0
    %v773 = vmax.f32 %v659, 0.0
    %v774 = vmax.f32 %v664, 0.0
    %v775 = vmax.f32 %v669, 0.0
    %v776 = vmax.f32 %v674, 0.0
    %v777 = vmax.f32 %v679, 0.0
    %v778 = vmax.f32 %v684, 0.0
    %v779 = vmax.f32 %v689, 0.0
    %v780 = vmax.f32 %v694, 0.0
    %v781 = vmax.f32 %v699, 0.0
    %v782 = vmax.f32 %v704, 0.0
    %v783 = vmax.f32 %v709, 0.0
    %v784 = vmax.f32 %v714, 0.0
    %v785 = vmax.f32 %v719, 0.0
    %v786 = vmax.f32 %v724, 0.0
    %v787 = vmax.f32 %v729, 0.0
    %v788 = vmax.f32 %v734, 0.0
    %v789 = vmax.f32 %v739, 0.0
    %v790 = vmax.f32 %v744, 0.0
    %v791 = vmax.f32 %v749, 0.0
    %v792 = vmax.f32 %v754, 0.0
    %v793 = vmax.f32 %v759, 0.0
    %v794 = vld [vmem:[%s6] sm:$0xff]
    %v795 = vld [vmem:[%s6 + $0x8] sm:$0xff]
    %v796 = vld [vmem:[%s6 + $0x10] sm:$0xff]
    %v797 = vld [vmem:[%s6 + $0x18] sm:$0xff]
    %v798 = vld [vmem:[%s6 + $0x20] sm:$0xff]
    %v799 = vld [vmem:[%s6 + $0x28] sm:$0xff]
    %v800 = vld [vmem:[%s6 + $0x30] sm:$0xff]
    %v801 = vld [vmem:[%s6 + $0x38] sm:$0xff]
    %v802 = vld [vmem:[%s7] sm:$0x1]
    %v804 = vlaneseq
    %v805 = vshrl.u32 %v804, 7
    %v806 = vsub.s32 0, %v805
    %v807 = vrot.slane %v802, %v806
    %v810 = vsel %vm440, %v762, 0
    %v813 = vsel %vm440, %v763, 0
    %v816 = vsel %vm440, %v764, 0
    %v819 = vsel %vm440, %v765, 0
    %v822 = vsel %vm440, %v766, 0
    %v825 = vsel %vm440, %v767, 0
    %v828 = vsel %vm440, %v768, 0
    %v831 = vsel %vm440, %v769, 0
    %v834 = vsel %vm440, %v770, 0
    %v837 = vsel %vm440, %v771, 0
    %v840 = vsel %vm440, %v772, 0
    %v843 = vsel %vm440, %v773, 0
    %v846 = vsel %vm440, %v774, 0
    %v849 = vsel %vm440, %v775, 0
    %v852 = vsel %vm440, %v776, 0
    %v855 = vsel %vm440, %v777, 0
    %v858 = vsel %vm440, %v778, 0
    %v861 = vsel %vm440, %v779, 0
    %v864 = vsel %vm440, %v780, 0
    %v867 = vsel %vm440, %v781, 0
    %v870 = vsel %vm440, %v782, 0
    %v873 = vsel %vm440, %v783, 0
    %v876 = vsel %vm440, %v784, 0
    %v879 = vsel %vm440, %v785, 0
    %v882 = vsel %vm440, %v786, 0
    %v885 = vsel %vm440, %v787, 0
    %v888 = vsel %vm440, %v788, 0
    %v891 = vsel %vm440, %v789, 0
    %v894 = vsel %vm440, %v790, 0
    %v897 = vsel %vm440, %v791, 0
    %v900 = vsel %vm440, %v792, 0
    %v903 = vsel %vm440, %v793, 0
    %905 = vmatprep.subr.mxu0 0.0
    %906 = vmatpush1.msra.mxu0 %v794
    %907 = vmatprep.subr.mxu0 0.0
    %908 = vmatpush1.msra.mxu0 %v795
    %909 = vmatprep.subr.mxu0 0.0
    %910 = vmatpush1.msra.mxu0 %v796
    %911 = vmatprep.subr.mxu0 0.0
    %912 = vmatpush1.msra.mxu0 %v797
    %913 = vmatprep.subr.mxu0 0.0
    %914 = vmatpush1.msra.mxu0 %v798
    %915 = vmatprep.subr.mxu0 0.0
    %916 = vmatpush1.msra.mxu0 %v799
    %917 = vmatprep.subr.mxu0 0.0
    %918 = vmatpush1.msra.mxu0 %v800
    %919 = vmatprep.subr.mxu0 0.0
    %920 = vmatpush1.msra.mxu0 %v801
    %921 = vmatprep.subr.mxu0 0.0
    %922 = vmatpush1.msra.mxu0 0.0
    %923 = vmatprep.subr.mxu0 0.0
    %924 = vmatpush1.msra.mxu0 0.0
    %925 = vmatprep.subr.mxu0 0.0
    %926 = vmatpush1.msra.mxu0 0.0
    %927 = vmatprep.subr.mxu0 0.0
    %928 = vmatpush1.msra.mxu0 0.0
    %929 = vmatprep.subr.mxu0 0.0
    %930 = vmatpush1.msra.mxu0 0.0
    %931 = vmatprep.subr.mxu0 0.0
    %932 = vmatpush1.msra.mxu0 0.0
    %933 = vmatprep.subr.mxu0 0.0
    %934 = vmatpush1.msra.mxu0 0.0
    %935 = vmatprep.subr.mxu0 0.0
    %936 = vmatpush1.msra.mxu0 0.0
    %937 = vmatprep.subr.mxu0 0.0
    %938 = vmatpush1.msra.mxu0 0.0
    %939 = vmatprep.subr.mxu0 0.0
    %940 = vmatpush1.msra.mxu0 0.0
    %941 = vmatprep.subr.mxu0 0.0
    %942 = vmatpush1.msra.mxu0 0.0
    %943 = vmatprep.subr.mxu0 0.0
    %944 = vmatpush1.msra.mxu0 0.0
    %945 = vmatprep.subr.mxu0 0.0
    %946 = vmatpush1.msra.mxu0 0.0
    %947 = vmatprep.subr.mxu0 0.0
    %948 = vmatpush1.msra.mxu0 0.0
    %949 = vmatprep.subr.mxu0 0.0
    %950 = vmatpush1.msra.mxu0 0.0
    %951 = vmatprep.subr.mxu0 0.0
    %952 = vmatpush1.msra.mxu0 0.0
    %953 = vmatprep.subr.mxu0 0.0
    %954 = vmatpush1.msra.mxu0 0.0
    %955 = vmatprep.subr.mxu0 0.0
    %956 = vmatpush1.msra.mxu0 0.0
    %957 = vmatprep.subr.mxu0 0.0
    %958 = vmatpush1.msra.mxu0 0.0
    %959 = vmatprep.subr.mxu0 0.0
    %960 = vmatpush1.msra.mxu0 0.0
    %961 = vmatprep.subr.mxu0 0.0
    %962 = vmatpush1.msra.mxu0 0.0
    %963 = vmatprep.subr.mxu0 0.0
    %964 = vmatpush1.msra.mxu0 0.0
    %965 = vmatprep.subr.mxu0 0.0
    %966 = vmatpush1.msra.mxu0 0.0
    %967 = vmatprep.subr.mxu0 0.0
    %968 = vmatpush1.msra.mxu0 0.0
    %969 = vmatprep.mubr.f32.mxu0 0.0
    %970 = vmatmul.mubr.f32.gmra.mrb[0].mxu0 %v810
    %v971 = vpop.f32.mrb[0].mxu0
    %v972 = vadd.f32 %v807, %v971
    %v973 = vpop.f32.mrb[0].mxu0
    %974 = vmatprep.mubr.f32.mxu0 0.0
    %975 = vmatmul.mubr.f32.gmra.mrb[0].mxu0 %v813
    %v976 = vpop.f32.mrb[0].mxu0
    %v977 = vadd.f32 %v807, %v976
    %v978 = vpop.f32.mrb[0].mxu0
    %979 = vmatprep.mubr.f32.mxu0 0.0
    %980 = vmatmul.mubr.f32.gmra.mrb[0].mxu0 %v816
    %v981 = vpop.f32.mrb[0].mxu0
    %v982 = vadd.f32 %v807, %v981
    %v983 = vpop.f32.mrb[0].mxu0
    %984 = vmatprep.mubr.f32.mxu0 0.0
    %985 = vmatmul.mubr.f32.gmra.mrb[0].mxu0 %v819
    %v986 = vpop.f32.mrb[0].mxu0
    %v987 = vadd.f32 %v807, %v986
    %v988 = vpop.f32.mrb[0].mxu0
    %989 = vmatprep.mubr.f32.mxu0 0.0
    %990 = vmatmul.mubr.f32.gmra.mrb[0].mxu0 %v822
    %v991 = vpop.f32.mrb[0].mxu0
    %v992 = vadd.f32 %v807, %v991
    %v993 = vpop.f32.mrb[0].mxu0
    %994 = vmatprep.mubr.f32.mxu0 0.0
    %995 = vmatmul.mubr.f32.gmra.mrb[0].mxu0 %v825
    %v996 = vpop.f32.mrb[0].mxu0
    %v997 = vadd.f32 %v807, %v996
    %v998 = vpop.f32.mrb[0].mxu0
    %999 = vmatprep.mubr.f32.mxu0 0.0
    %1000 = vmatmul.mubr.f32.gmra.mrb[0].mxu0 %v828
    %v1001 = vpop.f32.mrb[0].mxu0
    %v1002 = vadd.f32 %v807, %v1001
    %v1003 = vpop.f32.mrb[0].mxu0
    %1004 = vmatprep.mubr.f32.mxu0 0.0
    %1005 = vmatmul.mubr.f32.gmra.mrb[0].mxu0 %v831
    %v1006 = vpop.f32.mrb[0].mxu0
    %v1007 = vadd.f32 %v807, %v1006
    %v1008 = vpop.f32.mrb[0].mxu0
    %1009 = vmatprep.mubr.f32.mxu0 0.0
    %1010 = vmatmul.mubr.f32.gmra.mrb[0].mxu0 %v834
    %v1011 = vpop.f32.mrb[0].mxu0
    %v1012 = vadd.f32 %v807, %v1011
    %v1013 = vpop.f32.mrb[0].mxu0
    %1014 = vmatprep.mubr.f32.mxu0 0.0
    %1015 = vmatmul.mubr.f32.gmra.mrb[0].mxu0 %v837
    %v1016 = vpop.f32.mrb[0].mxu0
    %v1017 = vadd.f32 %v807, %v1016
    %v1018 = vpop.f32.mrb[0].mxu0
    %1019 = vmatprep.mubr.f32.mxu0 0.0
    %1020 = vmatmul.mubr.f32.gmra.mrb[0].mxu0 %v840
    %v1021 = vpop.f32.mrb[0].mxu0
    %v1022 = vadd.f32 %v807, %v1021
    %v1023 = vpop.f32.mrb[0].mxu0
    %1024 = vmatprep.mubr.f32.mxu0 0.0
    %1025 = vmatmul.mubr.f32.gmra.mrb[0].mxu0 %v843
    %v1026 = vpop.f32.mrb[0].mxu0
    %v1027 = vadd.f32 %v807, %v1026
    %v1028 = vpop.f32.mrb[0].mxu0
    %1029 = vmatprep.mubr.f32.mxu0 0.0
    %1030 = vmatmul.mubr.f32.gmra.mrb[0].mxu0 %v846
    %v1031 = vpop.f32.mrb[0].mxu0
    %v1032 = vadd.f32 %v807, %v1031
    %v1033 = vpop.f32.mrb[0].mxu0
    %1034 = vmatprep.mubr.f32.mxu0 0.0
    %1035 = vmatmul.mubr.f32.gmra.mrb[0].mxu0 %v849
    %v1036 = vpop.f32.mrb[0].mxu0
    %v1037 = vadd.f32 %v807, %v1036
    %v1038 = vpop.f32.mrb[0].mxu0
    %1039 = vmatprep.mubr.f32.mxu0 0.0
    %1040 = vmatmul.mubr.f32.gmra.mrb[0].mxu0 %v852
    %v1041 = vpop.f32.mrb[0].mxu0
    %v1042 = vadd.f32 %v807, %v1041
    %v1043 = vpop.f32.mrb[0].mxu0
    %1044 = vmatprep.mubr.f32.mxu0 0.0
    %1045 = vmatmul.mubr.f32.gmra.mrb[0].mxu0 %v855
    %v1046 = vpop.f32.mrb[0].mxu0
    %v1047 = vadd.f32 %v807, %v1046
    %v1048 = vpop.f32.mrb[0].mxu0
    %1049 = vmatprep.mubr.f32.mxu0 0.0
    %1050 = vmatmul.mubr.f32.gmra.mrb[0].mxu0 %v858
    %v1051 = vpop.f32.mrb[0].mxu0
    %v1052 = vadd.f32 %v807, %v1051
    %v1053 = vpop.f32.mrb[0].mxu0
    %1054 = vmatprep.mubr.f32.mxu0 0.0
    %1055 = vmatmul.mubr.f32.gmra.mrb[0].mxu0 %v861
    %v1056 = vpop.f32.mrb[0].mxu0
    %v1057 = vadd.f32 %v807, %v1056
    %v1058 = vpop.f32.mrb[0].mxu0
    %1059 = vmatprep.mubr.f32.mxu0 0.0
    %1060 = vmatmul.mubr.f32.gmra.mrb[0].mxu0 %v864
    %v1061 = vpop.f32.mrb[0].mxu0
    %v1062 = vadd.f32 %v807, %v1061
    %v1063 = vpop.f32.mrb[0].mxu0
    %1064 = vmatprep.mubr.f32.mxu0 0.0
    %1065 = vmatmul.mubr.f32.gmra.mrb[0].mxu0 %v867
    %v1066 = vpop.f32.mrb[0].mxu0
    %v1067 = vadd.f32 %v807, %v1066
    %v1068 = vpop.f32.mrb[0].mxu0
    %1069 = vmatprep.mubr.f32.mxu0 0.0
    %1070 = vmatmul.mubr.f32.gmra.mrb[0].mxu0 %v870
    %v1071 = vpop.f32.mrb[0].mxu0
    %v1072 = vadd.f32 %v807, %v1071
    %v1073 = vpop.f32.mrb[0].mxu0
    %1074 = vmatprep.mubr.f32.mxu0 0.0
    %1075 = vmatmul.mubr.f32.gmra.mrb[0].mxu0 %v873
    %v1076 = vpop.f32.mrb[0].mxu0
    %v1077 = vadd.f32 %v807, %v1076
    %v1078 = vpop.f32.mrb[0].mxu0
    %1079 = vmatprep.mubr.f32.mxu0 0.0
    %1080 = vmatmul.mubr.f32.gmra.mrb[0].mxu0 %v876
    %v1081 = vpop.f32.mrb[0].mxu0
    %v1082 = vadd.f32 %v807, %v1081
    %v1083 = vpop.f32.mrb[0].mxu0
    %1084 = vmatprep.mubr.f32.mxu0 0.0
    %1085 = vmatmul.mubr.f32.gmra.mrb[0].mxu0 %v879
    %v1086 = vpop.f32.mrb[0].mxu0
    %v1087 = vadd.f32 %v807, %v1086
    %v1088 = vpop.f32.mrb[0].mxu0
    %1089 = vmatprep.mubr.f32.mxu0 0.0
    %1090 = vmatmul.mubr.f32.gmra.mrb[0].mxu0 %v882
    %v1091 = vpop.f32.mrb[0].mxu0
    %v1092 = vadd.f32 %v807, %v1091
    %v1093 = vpop.f32.mrb[0].mxu0
    %1094 = vmatprep.mubr.f32.mxu0 0.0
    %1095 = vmatmul.mubr.f32.gmra.mrb[0].mxu0 %v885
    %v1096 = vpop.f32.mrb[0].mxu0
    %v1097 = vadd.f32 %v807, %v1096
    %v1098 = vpop.f32.mrb[0].mxu0
    %1099 = vmatprep.mubr.f32.mxu0 0.0
    %1100 = vmatmul.mubr.f32.gmra.mrb[0].mxu0 %v888
    %v1101 = vpop.f32.mrb[0].mxu0
    %v1102 = vadd.f32 %v807, %v1101
    %v1103 = vpop.f32.mrb[0].mxu0
    %1104 = vmatprep.mubr.f32.mxu0 0.0
    %1105 = vmatmul.mubr.f32.gmra.mrb[0].mxu0 %v891
    %v1106 = vpop.f32.mrb[0].mxu0
    %v1107 = vadd.f32 %v807, %v1106
    %v1108 = vpop.f32.mrb[0].mxu0
    %1109 = vmatprep.mubr.f32.mxu0 0.0
    %1110 = vmatmul.mubr.f32.gmra.mrb[0].mxu0 %v894
    %v1111 = vpop.f32.mrb[0].mxu0
    %v1112 = vadd.f32 %v807, %v1111
    %v1113 = vpop.f32.mrb[0].mxu0
    %1114 = vmatprep.mubr.f32.mxu0 0.0
    %1115 = vmatmul.mubr.f32.gmra.mrb[0].mxu0 %v897
    %v1116 = vpop.f32.mrb[0].mxu0
    %v1117 = vadd.f32 %v807, %v1116
    %v1118 = vpop.f32.mrb[0].mxu0
    %1119 = vmatprep.mubr.f32.mxu0 0.0
    %1120 = vmatmul.mubr.f32.gmra.mrb[0].mxu0 %v900
    %v1121 = vpop.f32.mrb[0].mxu0
    %v1122 = vadd.f32 %v807, %v1121
    %v1123 = vpop.f32.mrb[0].mxu0
    %1124 = vmatprep.mubr.f32.mxu0 0.0
    %1125 = vmatmul.mubr.f32.gmra.mrb[0].mxu0 %v903
    %v1126 = vpop.f32.mrb[0].mxu0
    %v1127 = vadd.f32 %v807, %v1126
    %v1128 = vpop.f32.mrb[0].mxu0
    %1129 = vdwg.mxu0
    %vm1130 = vcmask 64512
    %v1131 = vsel %vm1130, %v972, -inf
    %1132 = vmax.xlane.f32.xlu0 %v1131
    %v1133 = vpop.xlane.xlu0 %1132
    %v1134 = vsel %vm1130, %v977, -inf
    %1135 = vmax.xlane.f32.xlu0 %v1134
    %v1136 = vpop.xlane.xlu0 %1135
    %v1137 = vsel %vm1130, %v982, -inf
    %1138 = vmax.xlane.f32.xlu0 %v1137
    %v1139 = vpop.xlane.xlu0 %1138
    %v1140 = vsel %vm1130, %v987, -inf
    %1141 = vmax.xlane.f32.xlu0 %v1140
    %v1142 = vpop.xlane.xlu0 %1141
    %v1143 = vsel %vm1130, %v992, -inf
    %1144 = vmax.xlane.f32.xlu0 %v1143
    %v1145 = vpop.xlane.xlu0 %1144
    %v1146 = vsel %vm1130, %v997, -inf
    %1147 = vmax.xlane.f32.xlu0 %v1146
    %v1148 = vpop.xlane.xlu0 %1147
    %v1149 = vsel %vm1130, %v1002, -inf
    %1150 = vmax.xlane.f32.xlu0 %v1149
    %v1151 = vpop.xlane.xlu0 %1150
    %v1152 = vsel %vm1130, %v1007, -inf
    %1153 = vmax.xlane.f32.xlu0 %v1152
    %v1154 = vpop.xlane.xlu0 %1153
    %v1155 = vsel %vm1130, %v1012, -inf
    %1156 = vmax.xlane.f32.xlu0 %v1155
    %v1157 = vpop.xlane.xlu0 %1156
    %v1158 = vsel %vm1130, %v1017, -inf
    %1159 = vmax.xlane.f32.xlu0 %v1158
    %v1160 = vpop.xlane.xlu0 %1159
    %v1161 = vsel %vm1130, %v1022, -inf
    %1162 = vmax.xlane.f32.xlu0 %v1161
    %v1163 = vpop.xlane.xlu0 %1162
    %v1164 = vsel %vm1130, %v1027, -inf
    %1165 = vmax.xlane.f32.xlu0 %v1164
    %v1166 = vpop.xlane.xlu0 %1165
    %v1167 = vsel %vm1130, %v1032, -inf
    %1168 = vmax.xlane.f32.xlu0 %v1167
    %v1169 = vpop.xlane.xlu0 %1168
    %v1170 = vsel %vm1130, %v1037, -inf
    %1171 = vmax.xlane.f32.xlu0 %v1170
    %v1172 = vpop.xlane.xlu0 %1171
    %v1173 = vsel %vm1130, %v1042, -inf
    %1174 = vmax.xlane.f32.xlu0 %v1173
    %v1175 = vpop.xlane.xlu0 %1174
    %v1176 = vsel %vm1130, %v1047, -inf
    %1177 = vmax.xlane.f32.xlu0 %v1176
    %v1178 = vpop.xlane.xlu0 %1177
    %v1179 = vsel %vm1130, %v1052, -inf
    %1180 = vmax.xlane.f32.xlu0 %v1179
    %v1181 = vpop.xlane.xlu0 %1180
    %v1182 = vsel %vm1130, %v1057, -inf
    %1183 = vmax.xlane.f32.xlu0 %v1182
    %v1184 = vpop.xlane.xlu0 %1183
    %v1185 = vsel %vm1130, %v1062, -inf
    %1186 = vmax.xlane.f32.xlu0 %v1185
    %v1187 = vpop.xlane.xlu0 %1186
    %v1188 = vsel %vm1130, %v1067, -inf
    %1189 = vmax.xlane.f32.xlu0 %v1188
    %v1190 = vpop.xlane.xlu0 %1189
    %v1191 = vsel %vm1130, %v1072, -inf
    %1192 = vmax.xlane.f32.xlu0 %v1191
    %v1193 = vpop.xlane.xlu0 %1192
    %v1194 = vsel %vm1130, %v1077, -inf
    %1195 = vmax.xlane.f32.xlu0 %v1194
    %v1196 = vpop.xlane.xlu0 %1195
    %v1197 = vsel %vm1130, %v1082, -inf
    %1198 = vmax.xlane.f32.xlu0 %v1197
    %v1199 = vpop.xlane.xlu0 %1198
    %v1200 = vsel %vm1130, %v1087, -inf
    %1201 = vmax.xlane.f32.xlu0 %v1200
    %v1202 = vpop.xlane.xlu0 %1201
    %v1203 = vsel %vm1130, %v1092, -inf
    %1204 = vmax.xlane.f32.xlu0 %v1203
    %v1205 = vpop.xlane.xlu0 %1204
    %v1206 = vsel %vm1130, %v1097, -inf
    %1207 = vmax.xlane.f32.xlu0 %v1206
    %v1208 = vpop.xlane.xlu0 %1207
    %v1209 = vsel %vm1130, %v1102, -inf
    %1210 = vmax.xlane.f32.xlu0 %v1209
    %v1211 = vpop.xlane.xlu0 %1210
    %v1212 = vsel %vm1130, %v1107, -inf
    %1213 = vmax.xlane.f32.xlu0 %v1212
    %v1214 = vpop.xlane.xlu0 %1213
    %v1215 = vsel %vm1130, %v1112, -inf
    %1216 = vmax.xlane.f32.xlu0 %v1215
    %v1217 = vpop.xlane.xlu0 %1216
    %v1218 = vsel %vm1130, %v1117, -inf
    %1219 = vmax.xlane.f32.xlu0 %v1218
    %v1220 = vpop.xlane.xlu0 %1219
    %v1221 = vsel %vm1130, %v1122, -inf
    %1222 = vmax.xlane.f32.xlu0 %v1221
    %v1223 = vpop.xlane.xlu0 %1222
    %v1224 = vsel %vm1130, %v1127, -inf
    %1225 = vmax.xlane.f32.xlu0 %v1224
    %v1226 = vpop.xlane.xlu0 %1225
    %v1227 = vsub.f32 %v972, %v1133
    %v1228 = vsub.f32 %v977, %v1136
    %v1229 = vsub.f32 %v982, %v1139
    %v1230 = vsub.f32 %v987, %v1142
    %v1231 = vsub.f32 %v992, %v1145
    %v1232 = vsub.f32 %v997, %v1148
    %v1233 = vsub.f32 %v1002, %v1151
    %v1234 = vsub.f32 %v1007, %v1154
    %v1235 = vsub.f32 %v1012, %v1157
    %v1236 = vsub.f32 %v1017, %v1160
    %v1237 = vsub.f32 %v1022, %v1163
    %v1238 = vsub.f32 %v1027, %v1166
    %v1239 = vsub.f32 %v1032, %v1169
    %v1240 = vsub.f32 %v1037, %v1172
    %v1241 = vsub.f32 %v1042, %v1175
    %v1242 = vsub.f32 %v1047, %v1178
    %v1243 = vsub.f32 %v1052, %v1181
    %v1244 = vsub.f32 %v1057, %v1184
    %v1245 = vsub.f32 %v1062, %v1187
    %v1246 = vsub.f32 %v1067, %v1190
    %v1247 = vsub.f32 %v1072, %v1193
    %v1248 = vsub.f32 %v1077, %v1196
    %v1249 = vsub.f32 %v1082, %v1199
    %v1250 = vsub.f32 %v1087, %v1202
    %v1251 = vsub.f32 %v1092, %v1205
    %v1252 = vsub.f32 %v1097, %v1208
    %v1253 = vsub.f32 %v1102, %v1211
    %v1254 = vsub.f32 %v1107, %v1214
    %v1255 = vsub.f32 %v1112, %v1217
    %v1256 = vsub.f32 %v1117, %v1220
    %v1257 = vsub.f32 %v1122, %v1223
    %v1258 = vsub.f32 %v1127, %v1226
    %v1259 = vmul.f32 %v1227, 1.442695
    %v1260 = vpow.pop %v1259
    %v1261 = vmul.f32 %v1228, 1.442695
    %v1262 = vpow.pop %v1261
    %v1263 = vmul.f32 %v1229, 1.442695
    %v1264 = vpow.pop %v1263
    %v1265 = vmul.f32 %v1230, 1.442695
    %v1266 = vpow.pop %v1265
    %v1267 = vmul.f32 %v1231, 1.442695
    %v1268 = vpow.pop %v1267
    %v1269 = vmul.f32 %v1232, 1.442695
    %v1270 = vpow.pop %v1269
    %v1271 = vmul.f32 %v1233, 1.442695
    %v1272 = vpow.pop %v1271
    %v1273 = vmul.f32 %v1234, 1.442695
    %v1274 = vpow.pop %v1273
    %v1275 = vmul.f32 %v1235, 1.442695
    %v1276 = vpow.pop %v1275
    %v1277 = vmul.f32 %v1236, 1.442695
    %v1278 = vpow.pop %v1277
    %v1279 = vmul.f32 %v1237, 1.442695
    %v1280 = vpow.pop %v1279
    %v1281 = vmul.f32 %v1238, 1.442695
    %v1282 = vpow.pop %v1281
    %v1283 = vmul.f32 %v1239, 1.442695
    %v1284 = vpow.pop %v1283
    %v1285 = vmul.f32 %v1240, 1.442695
    %v1286 = vpow.pop %v1285
    %v1287 = vmul.f32 %v1241, 1.442695
    %v1288 = vpow.pop %v1287
    %v1289 = vmul.f32 %v1242, 1.442695
    %v1290 = vpow.pop %v1289
    %v1291 = vmul.f32 %v1243, 1.442695
    %v1292 = vpow.pop %v1291
    %v1293 = vmul.f32 %v1244, 1.442695
    %v1294 = vpow.pop %v1293
    %v1295 = vmul.f32 %v1245, 1.442695
    %v1296 = vpow.pop %v1295
    %v1297 = vmul.f32 %v1246, 1.442695
    %v1298 = vpow.pop %v1297
    %v1299 = vmul.f32 %v1247, 1.442695
    %v1300 = vpow.pop %v1299
    %v1301 = vmul.f32 %v1248, 1.442695
    %v1302 = vpow.pop %v1301
    %v1303 = vmul.f32 %v1249, 1.442695
    %v1304 = vpow.pop %v1303
    %v1305 = vmul.f32 %v1250, 1.442695
    %v1306 = vpow.pop %v1305
    %v1307 = vmul.f32 %v1251, 1.442695
    %v1308 = vpow.pop %v1307
    %v1309 = vmul.f32 %v1252, 1.442695
    %v1310 = vpow.pop %v1309
    %v1311 = vmul.f32 %v1253, 1.442695
    %v1312 = vpow.pop %v1311
    %v1313 = vmul.f32 %v1254, 1.442695
    %v1314 = vpow.pop %v1313
    %v1315 = vmul.f32 %v1255, 1.442695
    %v1316 = vpow.pop %v1315
    %v1317 = vmul.f32 %v1256, 1.442695
    %v1318 = vpow.pop %v1317
    %v1319 = vmul.f32 %v1257, 1.442695
    %v1320 = vpow.pop %v1319
    %v1321 = vmul.f32 %v1258, 1.442695
    %v1322 = vpow.pop %v1321
    %v1323 = vsel %vm1130, %v1260, 0.0
    %1324 = vadd.xlane.f32.xlu0 %v1323
    %v1325 = vpop.xlane.xlu0 %1324
    %v1326 = vsel %vm1130, %v1262, 0.0
    %1327 = vadd.xlane.f32.xlu0 %v1326
    %v1328 = vpop.xlane.xlu0 %1327
    %v1329 = vsel %vm1130, %v1264, 0.0
    %1330 = vadd.xlane.f32.xlu0 %v1329
    %v1331 = vpop.xlane.xlu0 %1330
    %v1332 = vsel %vm1130, %v1266, 0.0
    %1333 = vadd.xlane.f32.xlu0 %v1332
    %v1334 = vpop.xlane.xlu0 %1333
    %v1335 = vsel %vm1130, %v1268, 0.0
    %1336 = vadd.xlane.f32.xlu0 %v1335
    %v1337 = vpop.xlane.xlu0 %1336
    %v1338 = vsel %vm1130, %v1270, 0.0
    %1339 = vadd.xlane.f32.xlu0 %v1338
    %v1340 = vpop.xlane.xlu0 %1339
    %v1341 = vsel %vm1130, %v1272, 0.0
    %1342 = vadd.xlane.f32.xlu0 %v1341
    %v1343 = vpop.xlane.xlu0 %1342
    %v1344 = vsel %vm1130, %v1274, 0.0
    %1345 = vadd.xlane.f32.xlu0 %v1344
    %v1346 = vpop.xlane.xlu0 %1345
    %v1347 = vsel %vm1130, %v1276, 0.0
    %1348 = vadd.xlane.f32.xlu0 %v1347
    %v1349 = vpop.xlane.xlu0 %1348
    %v1350 = vsel %vm1130, %v1278, 0.0
    %1351 = vadd.xlane.f32.xlu0 %v1350
    %v1352 = vpop.xlane.xlu0 %1351
    %v1353 = vsel %vm1130, %v1280, 0.0
    %1354 = vadd.xlane.f32.xlu0 %v1353
    %v1355 = vpop.xlane.xlu0 %1354
    %v1356 = vsel %vm1130, %v1282, 0.0
    %1357 = vadd.xlane.f32.xlu0 %v1356
    %v1358 = vpop.xlane.xlu0 %1357
    %v1359 = vsel %vm1130, %v1284, 0.0
    %1360 = vadd.xlane.f32.xlu0 %v1359
    %v1361 = vpop.xlane.xlu0 %1360
    %v1362 = vsel %vm1130, %v1286, 0.0
    %1363 = vadd.xlane.f32.xlu0 %v1362
    %v1364 = vpop.xlane.xlu0 %1363
    %v1365 = vsel %vm1130, %v1288, 0.0
    %1366 = vadd.xlane.f32.xlu0 %v1365
    %v1367 = vpop.xlane.xlu0 %1366
    %v1368 = vsel %vm1130, %v1290, 0.0
    %1369 = vadd.xlane.f32.xlu0 %v1368
    %v1370 = vpop.xlane.xlu0 %1369
    %v1371 = vsel %vm1130, %v1292, 0.0
    %1372 = vadd.xlane.f32.xlu0 %v1371
    %v1373 = vpop.xlane.xlu0 %1372
    %v1374 = vsel %vm1130, %v1294, 0.0
    %1375 = vadd.xlane.f32.xlu0 %v1374
    %v1376 = vpop.xlane.xlu0 %1375
    %v1377 = vsel %vm1130, %v1296, 0.0
    %1378 = vadd.xlane.f32.xlu0 %v1377
    %v1379 = vpop.xlane.xlu0 %1378
    %v1380 = vsel %vm1130, %v1298, 0.0
    %1381 = vadd.xlane.f32.xlu0 %v1380
    %v1382 = vpop.xlane.xlu0 %1381
    %v1383 = vsel %vm1130, %v1300, 0.0
    %1384 = vadd.xlane.f32.xlu0 %v1383
    %v1385 = vpop.xlane.xlu0 %1384
    %v1386 = vsel %vm1130, %v1302, 0.0
    %1387 = vadd.xlane.f32.xlu0 %v1386
    %v1388 = vpop.xlane.xlu0 %1387
    %v1389 = vsel %vm1130, %v1304, 0.0
    %1390 = vadd.xlane.f32.xlu0 %v1389
    %v1391 = vpop.xlane.xlu0 %1390
    %v1392 = vsel %vm1130, %v1306, 0.0
    %1393 = vadd.xlane.f32.xlu0 %v1392
    %v1394 = vpop.xlane.xlu0 %1393
    %v1395 = vsel %vm1130, %v1308, 0.0
    %1396 = vadd.xlane.f32.xlu0 %v1395
    %v1397 = vpop.xlane.xlu0 %1396
    %v1398 = vsel %vm1130, %v1310, 0.0
    %1399 = vadd.xlane.f32.xlu0 %v1398
    %v1400 = vpop.xlane.xlu0 %1399
    %v1401 = vsel %vm1130, %v1312, 0.0
    %1402 = vadd.xlane.f32.xlu0 %v1401
    %v1403 = vpop.xlane.xlu0 %1402
    %v1404 = vsel %vm1130, %v1314, 0.0
    %1405 = vadd.xlane.f32.xlu0 %v1404
    %v1406 = vpop.xlane.xlu0 %1405
    %v1407 = vsel %vm1130, %v1316, 0.0
    %1408 = vadd.xlane.f32.xlu0 %v1407
    %v1409 = vpop.xlane.xlu0 %1408
    %v1410 = vsel %vm1130, %v1318, 0.0
    %1411 = vadd.xlane.f32.xlu0 %v1410
    %v1412 = vpop.xlane.xlu0 %1411
    %v1413 = vsel %vm1130, %v1320, 0.0
    %1414 = vadd.xlane.f32.xlu0 %v1413
    %v1415 = vpop.xlane.xlu0 %1414
    %v1416 = vsel %vm1130, %v1322, 0.0
    %1417 = vadd.xlane.f32.xlu0 %v1416
    %v1418 = vpop.xlane.xlu0 %1417
    %v1419 = vrcp.pop %v1325
    %v1420 = vmul.f32 %v1260, %v1419
    %v1421 = vrcp.pop %v1328
    %v1422 = vmul.f32 %v1262, %v1421
    %v1423 = vrcp.pop %v1331
    %v1424 = vmul.f32 %v1264, %v1423
    %v1425 = vrcp.pop %v1334
    %v1426 = vmul.f32 %v1266, %v1425
    %v1427 = vrcp.pop %v1337
    %v1428 = vmul.f32 %v1268, %v1427
    %v1429 = vrcp.pop %v1340
    %v1430 = vmul.f32 %v1270, %v1429
    %v1431 = vrcp.pop %v1343
    %v1432 = vmul.f32 %v1272, %v1431
    %v1433 = vrcp.pop %v1346
    %v1434 = vmul.f32 %v1274, %v1433
    %v1435 = vrcp.pop %v1349
    %v1436 = vmul.f32 %v1276, %v1435
    %v1437 = vrcp.pop %v1352
    %v1438 = vmul.f32 %v1278, %v1437
    %v1439 = vrcp.pop %v1355
    %v1440 = vmul.f32 %v1280, %v1439
    %v1441 = vrcp.pop %v1358
    %v1442 = vmul.f32 %v1282, %v1441
    %v1443 = vrcp.pop %v1361
    %v1444 = vmul.f32 %v1284, %v1443
    %v1445 = vrcp.pop %v1364
    %v1446 = vmul.f32 %v1286, %v1445
    %v1447 = vrcp.pop %v1367
    %v1448 = vmul.f32 %v1288, %v1447
    %v1449 = vrcp.pop %v1370
    %v1450 = vmul.f32 %v1290, %v1449
    %v1451 = vrcp.pop %v1373
    %v1452 = vmul.f32 %v1292, %v1451
    %v1453 = vrcp.pop %v1376
    %v1454 = vmul.f32 %v1294, %v1453
    %v1455 = vrcp.pop %v1379
    %v1456 = vmul.f32 %v1296, %v1455
    %v1457 = vrcp.pop %v1382
    %v1458 = vmul.f32 %v1298, %v1457
    %v1459 = vrcp.pop %v1385
    %v1460 = vmul.f32 %v1300, %v1459
    %v1461 = vrcp.pop %v1388
    %v1462 = vmul.f32 %v1302, %v1461
    %v1463 = vrcp.pop %v1391
    %v1464 = vmul.f32 %v1304, %v1463
    %v1465 = vrcp.pop %v1394
    %v1466 = vmul.f32 %v1306, %v1465
    %v1467 = vrcp.pop %v1397
    %v1468 = vmul.f32 %v1308, %v1467
    %v1469 = vrcp.pop %v1400
    %v1470 = vmul.f32 %v1310, %v1469
    %v1471 = vrcp.pop %v1403
    %v1472 = vmul.f32 %v1312, %v1471
    %v1473 = vrcp.pop %v1406
    %v1474 = vmul.f32 %v1314, %v1473
    %v1475 = vrcp.pop %v1409
    %v1476 = vmul.f32 %v1316, %v1475
    %v1477 = vrcp.pop %v1412
    %v1478 = vmul.f32 %v1318, %v1477
    %v1479 = vrcp.pop %v1415
    %v1480 = vmul.f32 %v1320, %v1479
    %v1481 = vrcp.pop %v1418
    %v1482 = vmul.f32 %v1322, %v1481
    %v1483 = vlog2.pop %v1325
    %v1484 = vmul.f32 %v1483, 0.6931472
    %v1485 = vlog2.pop %v1328
    %v1486 = vmul.f32 %v1485, 0.6931472
    %v1487 = vlog2.pop %v1331
    %v1488 = vmul.f32 %v1487, 0.6931472
    %v1489 = vlog2.pop %v1334
    %v1490 = vmul.f32 %v1489, 0.6931472
    %v1491 = vlog2.pop %v1337
    %v1492 = vmul.f32 %v1491, 0.6931472
    %v1493 = vlog2.pop %v1340
    %v1494 = vmul.f32 %v1493, 0.6931472
    %v1495 = vlog2.pop %v1343
    %v1496 = vmul.f32 %v1495, 0.6931472
    %v1497 = vlog2.pop %v1346
    %v1498 = vmul.f32 %v1497, 0.6931472
    %v1499 = vlog2.pop %v1349
    %v1500 = vmul.f32 %v1499, 0.6931472
    %v1501 = vlog2.pop %v1352
    %v1502 = vmul.f32 %v1501, 0.6931472
    %v1503 = vlog2.pop %v1355
    %v1504 = vmul.f32 %v1503, 0.6931472
    %v1505 = vlog2.pop %v1358
    %v1506 = vmul.f32 %v1505, 0.6931472
    %v1507 = vlog2.pop %v1361
    %v1508 = vmul.f32 %v1507, 0.6931472
    %v1509 = vlog2.pop %v1364
    %v1510 = vmul.f32 %v1509, 0.6931472
    %v1511 = vlog2.pop %v1367
    %v1512 = vmul.f32 %v1511, 0.6931472
    %v1513 = vlog2.pop %v1370
    %v1514 = vmul.f32 %v1513, 0.6931472
    %v1515 = vlog2.pop %v1373
    %v1516 = vmul.f32 %v1515, 0.6931472
    %v1517 = vlog2.pop %v1376
    %v1518 = vmul.f32 %v1517, 0.6931472
    %v1519 = vlog2.pop %v1379
    %v1520 = vmul.f32 %v1519, 0.6931472
    %v1521 = vlog2.pop %v1382
    %v1522 = vmul.f32 %v1521, 0.6931472
    %v1523 = vlog2.pop %v1385
    %v1524 = vmul.f32 %v1523, 0.6931472
    %v1525 = vlog2.pop %v1388
    %v1526 = vmul.f32 %v1525, 0.6931472
    %v1527 = vlog2.pop %v1391
    %v1528 = vmul.f32 %v1527, 0.6931472
    %v1529 = vlog2.pop %v1394
    %v1530 = vmul.f32 %v1529, 0.6931472
    %v1531 = vlog2.pop %v1397
    %v1532 = vmul.f32 %v1531, 0.6931472
    %v1533 = vlog2.pop %v1400
    %v1534 = vmul.f32 %v1533, 0.6931472
    %v1535 = vlog2.pop %v1403
    %v1536 = vmul.f32 %v1535, 0.6931472
    %v1537 = vlog2.pop %v1406
    %v1538 = vmul.f32 %v1537, 0.6931472
    %v1539 = vlog2.pop %v1409
    %v1540 = vmul.f32 %v1539, 0.6931472
    %v1541 = vlog2.pop %v1412
    %v1542 = vmul.f32 %v1541, 0.6931472
    %v1543 = vlog2.pop %v1415
    %v1544 = vmul.f32 %v1543, 0.6931472
    %v1545 = vlog2.pop %v1418
    %v1546 = vmul.f32 %v1545, 0.6931472
    %v1547 = vsub.f32 %v1227, %v1484
    %v1548 = vsub.f32 %v1228, %v1486
    %v1549 = vsub.f32 %v1229, %v1488
    %v1550 = vsub.f32 %v1230, %v1490
    %v1551 = vsub.f32 %v1231, %v1492
    %v1552 = vsub.f32 %v1232, %v1494
    %v1553 = vsub.f32 %v1233, %v1496
    %v1554 = vsub.f32 %v1234, %v1498
    %v1555 = vsub.f32 %v1235, %v1500
    %v1556 = vsub.f32 %v1236, %v1502
    %v1557 = vsub.f32 %v1237, %v1504
    %v1558 = vsub.f32 %v1238, %v1506
    %v1559 = vsub.f32 %v1239, %v1508
    %v1560 = vsub.f32 %v1240, %v1510
    %v1561 = vsub.f32 %v1241, %v1512
    %v1562 = vsub.f32 %v1242, %v1514
    %v1563 = vsub.f32 %v1243, %v1516
    %v1564 = vsub.f32 %v1244, %v1518
    %v1565 = vsub.f32 %v1245, %v1520
    %v1566 = vsub.f32 %v1246, %v1522
    %v1567 = vsub.f32 %v1247, %v1524
    %v1568 = vsub.f32 %v1248, %v1526
    %v1569 = vsub.f32 %v1249, %v1528
    %v1570 = vsub.f32 %v1250, %v1530
    %v1571 = vsub.f32 %v1251, %v1532
    %v1572 = vsub.f32 %v1252, %v1534
    %v1573 = vsub.f32 %v1253, %v1536
    %v1574 = vsub.f32 %v1254, %v1538
    %v1575 = vsub.f32 %v1255, %v1540
    %v1576 = vsub.f32 %v1256, %v1542
    %v1577 = vsub.f32 %v1257, %v1544
    %v1578 = vsub.f32 %v1258, %v1546
    %v1579 = vld [vmem:[%s1] sm:$0xff]
    %v1580 = vld [vmem:[%s1 + $0x8] sm:$0xff]
    %v1581 = vld [vmem:[%s1 + $0x10] sm:$0xff]
    %v1582 = vld [vmem:[%s1 + $0x18] sm:$0xff]
    %v1583 = vld [vmem:[%s1 + $0x20] sm:$0xff]
    %v1584 = vld [vmem:[%s1 + $0x28] sm:$0xff]
    %v1585 = vld [vmem:[%s1 + $0x30] sm:$0xff]
    %v1586 = vld [vmem:[%s1 + $0x38] sm:$0xff]
    %v1587 = vld [vmem:[%s1 + $0x40] sm:$0xff]
    %v1588 = vld [vmem:[%s1 + $0x48] sm:$0xff]
    %v1589 = vld [vmem:[%s1 + $0x50] sm:$0xff]
    %v1590 = vld [vmem:[%s1 + $0x58] sm:$0xff]
    %v1591 = vld [vmem:[%s1 + $0x60] sm:$0xff]
    %v1592 = vld [vmem:[%s1 + $0x68] sm:$0xff]
    %v1593 = vld [vmem:[%s1 + $0x70] sm:$0xff]
    %v1594 = vld [vmem:[%s1 + $0x78] sm:$0xff]
    %v1595 = vld [vmem:[%s1 + $0x80] sm:$0xff]
    %v1596 = vld [vmem:[%s1 + $0x88] sm:$0xff]
    %v1597 = vld [vmem:[%s1 + $0x90] sm:$0xff]
    %v1598 = vld [vmem:[%s1 + $0x98] sm:$0xff]
    %v1599 = vld [vmem:[%s1 + $0xa0] sm:$0xff]
    %v1600 = vld [vmem:[%s1 + $0xa8] sm:$0xff]
    %v1601 = vld [vmem:[%s1 + $0xb0] sm:$0xff]
    %v1602 = vld [vmem:[%s1 + $0xb8] sm:$0xff]
    %v1603 = vld [vmem:[%s1 + $0xc0] sm:$0xff]
    %v1604 = vld [vmem:[%s1 + $0xc8] sm:$0xff]
    %v1605 = vld [vmem:[%s1 + $0xd0] sm:$0xff]
    %v1606 = vld [vmem:[%s1 + $0xd8] sm:$0xff]
    %v1607 = vld [vmem:[%s1 + $0xe0] sm:$0xff]
    %v1608 = vld [vmem:[%s1 + $0xe8] sm:$0xff]
    %v1609 = vld [vmem:[%s1 + $0xf0] sm:$0xff]
    %v1610 = vld [vmem:[%s1 + $0xf8] sm:$0xff]
    %v1611 = vlaneseq
    %v1612 = vand.u32 %v1611, 127
    %1613 = vset.pattern.permute.xlu0 0
    %1614 = vperm.xlu0 %1613, %v1579
    %v1615 = vpop.permute.xlu0 %1614
    %1616 = vset.pattern.permute.xlu0 0
    %1617 = vperm.xlu0 %1616, %v1580
    %v1618 = vpop.permute.xlu0 %1617
    %1619 = vset.pattern.permute.xlu0 0
    %1620 = vperm.xlu0 %1619, %v1581
    %v1621 = vpop.permute.xlu0 %1620
    %1622 = vset.pattern.permute.xlu0 0
    %1623 = vperm.xlu0 %1622, %v1582
    %v1624 = vpop.permute.xlu0 %1623
    %1625 = vset.pattern.permute.xlu0 0
    %1626 = vperm.xlu0 %1625, %v1583
    %v1627 = vpop.permute.xlu0 %1626
    %1628 = vset.pattern.permute.xlu0 0
    %1629 = vperm.xlu0 %1628, %v1584
    %v1630 = vpop.permute.xlu0 %1629
    %1631 = vset.pattern.permute.xlu0 0
    %1632 = vperm.xlu0 %1631, %v1585
    %v1633 = vpop.permute.xlu0 %1632
    %1634 = vset.pattern.permute.xlu0 0
    %1635 = vperm.xlu0 %1634, %v1586
    %v1636 = vpop.permute.xlu0 %1635
    %1637 = vset.pattern.permute.xlu0 0
    %1638 = vperm.xlu0 %1637, %v1587
    %v1639 = vpop.permute.xlu0 %1638
    %1640 = vset.pattern.permute.xlu0 0
    %1641 = vperm.xlu0 %1640, %v1588
    %v1642 = vpop.permute.xlu0 %1641
    %1643 = vset.pattern.permute.xlu0 0
    %1644 = vperm.xlu0 %1643, %v1589
    %v1645 = vpop.permute.xlu0 %1644
    %1646 = vset.pattern.permute.xlu0 0
    %1647 = vperm.xlu0 %1646, %v1590
    %v1648 = vpop.permute.xlu0 %1647
    %1649 = vset.pattern.permute.xlu0 0
    %1650 = vperm.xlu0 %1649, %v1591
    %v1651 = vpop.permute.xlu0 %1650
    %1652 = vset.pattern.permute.xlu0 0
    %1653 = vperm.xlu0 %1652, %v1592
    %v1654 = vpop.permute.xlu0 %1653
    %1655 = vset.pattern.permute.xlu0 0
    %1656 = vperm.xlu0 %1655, %v1593
    %v1657 = vpop.permute.xlu0 %1656
    %1658 = vset.pattern.permute.xlu0 0
    %1659 = vperm.xlu0 %1658, %v1594
    %v1660 = vpop.permute.xlu0 %1659
    %1661 = vset.pattern.permute.xlu0 0
    %1662 = vperm.xlu0 %1661, %v1595
    %v1663 = vpop.permute.xlu0 %1662
    %1664 = vset.pattern.permute.xlu0 0
    %1665 = vperm.xlu0 %1664, %v1596
    %v1666 = vpop.permute.xlu0 %1665
    %1667 = vset.pattern.permute.xlu0 0
    %1668 = vperm.xlu0 %1667, %v1597
    %v1669 = vpop.permute.xlu0 %1668
    %1670 = vset.pattern.permute.xlu0 0
    %1671 = vperm.xlu0 %1670, %v1598
    %v1672 = vpop.permute.xlu0 %1671
    %1673 = vset.pattern.permute.xlu0 0
    %1674 = vperm.xlu0 %1673, %v1599
    %v1675 = vpop.permute.xlu0 %1674
    %1676 = vset.pattern.permute.xlu0 0
    %1677 = vperm.xlu0 %1676, %v1600
    %v1678 = vpop.permute.xlu0 %1677
    %1679 = vset.pattern.permute.xlu0 0
    %1680 = vperm.xlu0 %1679, %v1601
    %v1681 = vpop.permute.xlu0 %1680
    %1682 = vset.pattern.permute.xlu0 0
    %1683 = vperm.xlu0 %1682, %v1602
    %v1684 = vpop.permute.xlu0 %1683
    %1685 = vset.pattern.permute.xlu0 0
    %1686 = vperm.xlu0 %1685, %v1603
    %v1687 = vpop.permute.xlu0 %1686
    %1688 = vset.pattern.permute.xlu0 0
    %1689 = vperm.xlu0 %1688, %v1604
    %v1690 = vpop.permute.xlu0 %1689
    %1691 = vset.pattern.permute.xlu0 0
    %1692 = vperm.xlu0 %1691, %v1605
    %v1693 = vpop.permute.xlu0 %1692
    %1694 = vset.pattern.permute.xlu0 0
    %1695 = vperm.xlu0 %1694, %v1606
    %v1696 = vpop.permute.xlu0 %1695
    %1697 = vset.pattern.permute.xlu0 0
    %1698 = vperm.xlu0 %1697, %v1607
    %v1699 = vpop.permute.xlu0 %1698
    %1700 = vset.pattern.permute.xlu0 0
    %1701 = vperm.xlu0 %1700, %v1608
    %v1702 = vpop.permute.xlu0 %1701
    %1703 = vset.pattern.permute.xlu0 0
    %1704 = vperm.xlu0 %1703, %v1609
    %v1705 = vpop.permute.xlu0 %1704
    %1706 = vset.pattern.permute.xlu0 0
    %1707 = vperm.xlu0 %1706, %v1610
    %v1708 = vpop.permute.xlu0 %1707
    %vm1709 = vcmp.eq.s32.totalorder %v1612, %v1615
    %vm1710 = vcmp.eq.s32.totalorder %v1612, %v1618
    %vm1711 = vcmp.eq.s32.totalorder %v1612, %v1621
    %vm1712 = vcmp.eq.s32.totalorder %v1612, %v1624
    %vm1713 = vcmp.eq.s32.totalorder %v1612, %v1627
    %vm1714 = vcmp.eq.s32.totalorder %v1612, %v1630
    %vm1715 = vcmp.eq.s32.totalorder %v1612, %v1633
    %vm1716 = vcmp.eq.s32.totalorder %v1612, %v1636
    %vm1717 = vcmp.eq.s32.totalorder %v1612, %v1639
    %vm1718 = vcmp.eq.s32.totalorder %v1612, %v1642
    %vm1719 = vcmp.eq.s32.totalorder %v1612, %v1645
    %vm1720 = vcmp.eq.s32.totalorder %v1612, %v1648
    %vm1721 = vcmp.eq.s32.totalorder %v1612, %v1651
    %vm1722 = vcmp.eq.s32.totalorder %v1612, %v1654
    %vm1723 = vcmp.eq.s32.totalorder %v1612, %v1657
    %vm1724 = vcmp.eq.s32.totalorder %v1612, %v1660
    %vm1725 = vcmp.eq.s32.totalorder %v1612, %v1663
    %vm1726 = vcmp.eq.s32.totalorder %v1612, %v1666
    %vm1727 = vcmp.eq.s32.totalorder %v1612, %v1669
    %vm1728 = vcmp.eq.s32.totalorder %v1612, %v1672
    %vm1729 = vcmp.eq.s32.totalorder %v1612, %v1675
    %vm1730 = vcmp.eq.s32.totalorder %v1612, %v1678
    %vm1731 = vcmp.eq.s32.totalorder %v1612, %v1681
    %vm1732 = vcmp.eq.s32.totalorder %v1612, %v1684
    %vm1733 = vcmp.eq.s32.totalorder %v1612, %v1687
    %vm1734 = vcmp.eq.s32.totalorder %v1612, %v1690
    %vm1735 = vcmp.eq.s32.totalorder %v1612, %v1693
    %vm1736 = vcmp.eq.s32.totalorder %v1612, %v1696
    %vm1737 = vcmp.eq.s32.totalorder %v1612, %v1699
    %vm1738 = vcmp.eq.s32.totalorder %v1612, %v1702
    %vm1739 = vcmp.eq.s32.totalorder %v1612, %v1705
    %vm1740 = vcmp.eq.s32.totalorder %v1612, %v1708
    %v1741 = vsel %vm1709, 1, 0
    %v1742 = vsel %vm1710, 1, 0
    %v1743 = vsel %vm1711, 1, 0
    %v1744 = vsel %vm1712, 1, 0
    %v1745 = vsel %vm1713, 1, 0
    %v1746 = vsel %vm1714, 1, 0
    %v1747 = vsel %vm1715, 1, 0
    %v1748 = vsel %vm1716, 1, 0
    %v1749 = vsel %vm1717, 1, 0
    %v1750 = vsel %vm1718, 1, 0
    %v1751 = vsel %vm1719, 1, 0
    %v1752 = vsel %vm1720, 1, 0
    %v1753 = vsel %vm1721, 1, 0
    %v1754 = vsel %vm1722, 1, 0
    %v1755 = vsel %vm1723, 1, 0
    %v1756 = vsel %vm1724, 1, 0
    %v1757 = vsel %vm1725, 1, 0
    %v1758 = vsel %vm1726, 1, 0
    %v1759 = vsel %vm1727, 1, 0
    %v1760 = vsel %vm1728, 1, 0
    %v1761 = vsel %vm1729, 1, 0
    %v1762 = vsel %vm1730, 1, 0
    %v1763 = vsel %vm1731, 1, 0
    %v1764 = vsel %vm1732, 1, 0
    %v1765 = vsel %vm1733, 1, 0
    %v1766 = vsel %vm1734, 1, 0
    %v1767 = vsel %vm1735, 1, 0
    %v1768 = vsel %vm1736, 1, 0
    %v1769 = vsel %vm1737, 1, 0
    %v1770 = vsel %vm1738, 1, 0
    %v1771 = vsel %vm1739, 1, 0
    %v1772 = vsel %vm1740, 1, 0
    %v1773 = vcvt.s32.f32 %v1741
    %v1774 = vcvt.s32.f32 %v1742
    %v1775 = vcvt.s32.f32 %v1743
    %v1776 = vcvt.s32.f32 %v1744
    %v1777 = vcvt.s32.f32 %v1745
    %v1778 = vcvt.s32.f32 %v1746
    %v1779 = vcvt.s32.f32 %v1747
    %v1780 = vcvt.s32.f32 %v1748
    %v1781 = vcvt.s32.f32 %v1749
    %v1782 = vcvt.s32.f32 %v1750
    %v1783 = vcvt.s32.f32 %v1751
    %v1784 = vcvt.s32.f32 %v1752
    %v1785 = vcvt.s32.f32 %v1753
    %v1786 = vcvt.s32.f32 %v1754
    %v1787 = vcvt.s32.f32 %v1755
    %v1788 = vcvt.s32.f32 %v1756
    %v1789 = vcvt.s32.f32 %v1757
    %v1790 = vcvt.s32.f32 %v1758
    %v1791 = vcvt.s32.f32 %v1759
    %v1792 = vcvt.s32.f32 %v1760
    %v1793 = vcvt.s32.f32 %v1761
    %v1794 = vcvt.s32.f32 %v1762
    %v1795 = vcvt.s32.f32 %v1763
    %v1796 = vcvt.s32.f32 %v1764
    %v1797 = vcvt.s32.f32 %v1765
    %v1798 = vcvt.s32.f32 %v1766
    %v1799 = vcvt.s32.f32 %v1767
    %v1800 = vcvt.s32.f32 %v1768
    %v1801 = vcvt.s32.f32 %v1769
    %v1802 = vcvt.s32.f32 %v1770
    %v1803 = vcvt.s32.f32 %v1771
    %v1804 = vcvt.s32.f32 %v1772
    %v1805 = vmul.f32 %v1773, %v1547
    %v1806 = vmul.f32 %v1774, %v1548
    %v1807 = vmul.f32 %v1775, %v1549
    %v1808 = vmul.f32 %v1776, %v1550
    %v1809 = vmul.f32 %v1777, %v1551
    %v1810 = vmul.f32 %v1778, %v1552
    %v1811 = vmul.f32 %v1779, %v1553
    %v1812 = vmul.f32 %v1780, %v1554
    %v1813 = vmul.f32 %v1781, %v1555
    %v1814 = vmul.f32 %v1782, %v1556
    %v1815 = vmul.f32 %v1783, %v1557
    %v1816 = vmul.f32 %v1784, %v1558
    %v1817 = vmul.f32 %v1785, %v1559
    %v1818 = vmul.f32 %v1786, %v1560
    %v1819 = vmul.f32 %v1787, %v1561
    %v1820 = vmul.f32 %v1788, %v1562
    %v1821 = vmul.f32 %v1789, %v1563
    %v1822 = vmul.f32 %v1790, %v1564
    %v1823 = vmul.f32 %v1791, %v1565
    %v1824 = vmul.f32 %v1792, %v1566
    %v1825 = vmul.f32 %v1793, %v1567
    %v1826 = vmul.f32 %v1794, %v1568
    %v1827 = vmul.f32 %v1795, %v1569
    %v1828 = vmul.f32 %v1796, %v1570
    %v1829 = vmul.f32 %v1797, %v1571
    %v1830 = vmul.f32 %v1798, %v1572
    %v1831 = vmul.f32 %v1799, %v1573
    %v1832 = vmul.f32 %v1800, %v1574
    %v1833 = vmul.f32 %v1801, %v1575
    %v1834 = vmul.f32 %v1802, %v1576
    %v1835 = vmul.f32 %v1803, %v1577
    %v1836 = vmul.f32 %v1804, %v1578
    %v1837 = vsel %vm1130, %v1805, 0.0
    %1838 = vadd.xlane.f32.xlu0 %v1837
    %v1839 = vpop.xlane.xlu0 %1838
    %v1840 = vsel %vm1130, %v1806, 0.0
    %1841 = vadd.xlane.f32.xlu0 %v1840
    %v1842 = vpop.xlane.xlu0 %1841
    %v1843 = vsel %vm1130, %v1807, 0.0
    %1844 = vadd.xlane.f32.xlu0 %v1843
    %v1845 = vpop.xlane.xlu0 %1844
    %v1846 = vsel %vm1130, %v1808, 0.0
    %1847 = vadd.xlane.f32.xlu0 %v1846
    %v1848 = vpop.xlane.xlu0 %1847
    %v1849 = vsel %vm1130, %v1809, 0.0
    %1850 = vadd.xlane.f32.xlu0 %v1849
    %v1851 = vpop.xlane.xlu0 %1850
    %v1852 = vsel %vm1130, %v1810, 0.0
    %1853 = vadd.xlane.f32.xlu0 %v1852
    %v1854 = vpop.xlane.xlu0 %1853
    %v1855 = vsel %vm1130, %v1811, 0.0
    %1856 = vadd.xlane.f32.xlu0 %v1855
    %v1857 = vpop.xlane.xlu0 %1856
    %v1858 = vsel %vm1130, %v1812, 0.0
    %1859 = vadd.xlane.f32.xlu0 %v1858
    %v1860 = vpop.xlane.xlu0 %1859
    %v1861 = vsel %vm1130, %v1813, 0.0
    %1862 = vadd.xlane.f32.xlu0 %v1861
    %v1863 = vpop.xlane.xlu0 %1862
    %v1864 = vsel %vm1130, %v1814, 0.0
    %1865 = vadd.xlane.f32.xlu0 %v1864
    %v1866 = vpop.xlane.xlu0 %1865
    %v1867 = vsel %vm1130, %v1815, 0.0
    %1868 = vadd.xlane.f32.xlu0 %v1867
    %v1869 = vpop.xlane.xlu0 %1868
    %v1870 = vsel %vm1130, %v1816, 0.0
    %1871 = vadd.xlane.f32.xlu0 %v1870
    %v1872 = vpop.xlane.xlu0 %1871
    %v1873 = vsel %vm1130, %v1817, 0.0
    %1874 = vadd.xlane.f32.xlu0 %v1873
    %v1875 = vpop.xlane.xlu0 %1874
    %v1876 = vsel %vm1130, %v1818, 0.0
    %1877 = vadd.xlane.f32.xlu0 %v1876
    %v1878 = vpop.xlane.xlu0 %1877
    %v1879 = vsel %vm1130, %v1819, 0.0
    %1880 = vadd.xlane.f32.xlu0 %v1879
    %v1881 = vpop.xlane.xlu0 %1880
    %v1882 = vsel %vm1130, %v1820, 0.0
    %1883 = vadd.xlane.f32.xlu0 %v1882
    %v1884 = vpop.xlane.xlu0 %1883
    %v1885 = vsel %vm1130, %v1821, 0.0
    %1886 = vadd.xlane.f32.xlu0 %v1885
    %v1887 = vpop.xlane.xlu0 %1886
    %v1888 = vsel %vm1130, %v1822, 0.0
    %1889 = vadd.xlane.f32.xlu0 %v1888
    %v1890 = vpop.xlane.xlu0 %1889
    %v1891 = vsel %vm1130, %v1823, 0.0
    %1892 = vadd.xlane.f32.xlu0 %v1891
    %v1893 = vpop.xlane.xlu0 %1892
    %v1894 = vsel %vm1130, %v1824, 0.0
    %1895 = vadd.xlane.f32.xlu0 %v1894
    %v1896 = vpop.xlane.xlu0 %1895
    %v1897 = vsel %vm1130, %v1825, 0.0
    %1898 = vadd.xlane.f32.xlu0 %v1897
    %v1899 = vpop.xlane.xlu0 %1898
    %v1900 = vsel %vm1130, %v1826, 0.0
    %1901 = vadd.xlane.f32.xlu0 %v1900
    %v1902 = vpop.xlane.xlu0 %1901
    %v1903 = vsel %vm1130, %v1827, 0.0
    %1904 = vadd.xlane.f32.xlu0 %v1903
    %v1905 = vpop.xlane.xlu0 %1904
    %v1906 = vsel %vm1130, %v1828, 0.0
    %1907 = vadd.xlane.f32.xlu0 %v1906
    %v1908 = vpop.xlane.xlu0 %1907
    %v1909 = vsel %vm1130, %v1829, 0.0
    %1910 = vadd.xlane.f32.xlu0 %v1909
    %v1911 = vpop.xlane.xlu0 %1910
    %v1912 = vsel %vm1130, %v1830, 0.0
    %1913 = vadd.xlane.f32.xlu0 %v1912
    %v1914 = vpop.xlane.xlu0 %1913
    %v1915 = vsel %vm1130, %v1831, 0.0
    %1916 = vadd.xlane.f32.xlu0 %v1915
    %v1917 = vpop.xlane.xlu0 %1916
    %v1918 = vsel %vm1130, %v1832, 0.0
    %1919 = vadd.xlane.f32.xlu0 %v1918
    %v1920 = vpop.xlane.xlu0 %1919
    %v1921 = vsel %vm1130, %v1833, 0.0
    %1922 = vadd.xlane.f32.xlu0 %v1921
    %v1923 = vpop.xlane.xlu0 %1922
    %v1924 = vsel %vm1130, %v1834, 0.0
    %1925 = vadd.xlane.f32.xlu0 %v1924
    %v1926 = vpop.xlane.xlu0 %1925
    %v1927 = vsel %vm1130, %v1835, 0.0
    %1928 = vadd.xlane.f32.xlu0 %v1927
    %v1929 = vpop.xlane.xlu0 %1928
    %v1930 = vsel %vm1130, %v1836, 0.0
    %1931 = vadd.xlane.f32.xlu0 %v1930
    %v1932 = vpop.xlane.xlu0 %1931
    %v1933 = vmul.f32 %v1420, %v1547
    %v1934 = vmul.f32 %v1422, %v1548
    %v1935 = vmul.f32 %v1424, %v1549
    %v1936 = vmul.f32 %v1426, %v1550
    %v1937 = vmul.f32 %v1428, %v1551
    %v1938 = vmul.f32 %v1430, %v1552
    %v1939 = vmul.f32 %v1432, %v1553
    %v1940 = vmul.f32 %v1434, %v1554
    %v1941 = vmul.f32 %v1436, %v1555
    %v1942 = vmul.f32 %v1438, %v1556
    %v1943 = vmul.f32 %v1440, %v1557
    %v1944 = vmul.f32 %v1442, %v1558
    %v1945 = vmul.f32 %v1444, %v1559
    %v1946 = vmul.f32 %v1446, %v1560
    %v1947 = vmul.f32 %v1448, %v1561
    %v1948 = vmul.f32 %v1450, %v1562
    %v1949 = vmul.f32 %v1452, %v1563
    %v1950 = vmul.f32 %v1454, %v1564
    %v1951 = vmul.f32 %v1456, %v1565
    %v1952 = vmul.f32 %v1458, %v1566
    %v1953 = vmul.f32 %v1460, %v1567
    %v1954 = vmul.f32 %v1462, %v1568
    %v1955 = vmul.f32 %v1464, %v1569
    %v1956 = vmul.f32 %v1466, %v1570
    %v1957 = vmul.f32 %v1468, %v1571
    %v1958 = vmul.f32 %v1470, %v1572
    %v1959 = vmul.f32 %v1472, %v1573
    %v1960 = vmul.f32 %v1474, %v1574
    %v1961 = vmul.f32 %v1476, %v1575
    %v1962 = vmul.f32 %v1478, %v1576
    %v1963 = vmul.f32 %v1480, %v1577
    %v1964 = vmul.f32 %v1482, %v1578
    %v1965 = vsel %vm1130, %v1933, 0.0
    %1966 = vadd.xlane.f32.xlu0 %v1965
    %v1967 = vpop.xlane.xlu0 %1966
    %v1968 = vsel %vm1130, %v1934, 0.0
    %1969 = vadd.xlane.f32.xlu0 %v1968
    %v1970 = vpop.xlane.xlu0 %1969
    %v1971 = vsel %vm1130, %v1935, 0.0
    %1972 = vadd.xlane.f32.xlu0 %v1971
    %v1973 = vpop.xlane.xlu0 %1972
    %v1974 = vsel %vm1130, %v1936, 0.0
    %1975 = vadd.xlane.f32.xlu0 %v1974
    %v1976 = vpop.xlane.xlu0 %1975
    %v1977 = vsel %vm1130, %v1937, 0.0
    %1978 = vadd.xlane.f32.xlu0 %v1977
    %v1979 = vpop.xlane.xlu0 %1978
    %v1980 = vsel %vm1130, %v1938, 0.0
    %1981 = vadd.xlane.f32.xlu0 %v1980
    %v1982 = vpop.xlane.xlu0 %1981
    %v1983 = vsel %vm1130, %v1939, 0.0
    %1984 = vadd.xlane.f32.xlu0 %v1983
    %v1985 = vpop.xlane.xlu0 %1984
    %v1986 = vsel %vm1130, %v1940, 0.0
    %1987 = vadd.xlane.f32.xlu0 %v1986
    %v1988 = vpop.xlane.xlu0 %1987
    %v1989 = vsel %vm1130, %v1941, 0.0
    %1990 = vadd.xlane.f32.xlu0 %v1989
    %v1991 = vpop.xlane.xlu0 %1990
    %v1992 = vsel %vm1130, %v1942, 0.0
    %1993 = vadd.xlane.f32.xlu0 %v1992
    %v1994 = vpop.xlane.xlu0 %1993
    %v1995 = vsel %vm1130, %v1943, 0.0
    %1996 = vadd.xlane.f32.xlu0 %v1995
    %v1997 = vpop.xlane.xlu0 %1996
    %v1998 = vsel %vm1130, %v1944, 0.0
    %1999 = vadd.xlane.f32.xlu0 %v1998
    %v2000 = vpop.xlane.xlu0 %1999
    %v2001 = vsel %vm1130, %v1945, 0.0
    %2002 = vadd.xlane.f32.xlu0 %v2001
    %v2003 = vpop.xlane.xlu0 %2002
    %v2004 = vsel %vm1130, %v1946, 0.0
    %2005 = vadd.xlane.f32.xlu0 %v2004
    %v2006 = vpop.xlane.xlu0 %2005
    %v2007 = vsel %vm1130, %v1947, 0.0
    %2008 = vadd.xlane.f32.xlu0 %v2007
    %v2009 = vpop.xlane.xlu0 %2008
    %v2010 = vsel %vm1130, %v1948, 0.0
    %2011 = vadd.xlane.f32.xlu0 %v2010
    %v2012 = vpop.xlane.xlu0 %2011
    %v2013 = vsel %vm1130, %v1949, 0.0
    %2014 = vadd.xlane.f32.xlu0 %v2013
    %v2015 = vpop.xlane.xlu0 %2014
    %v2016 = vsel %vm1130, %v1950, 0.0
    %2017 = vadd.xlane.f32.xlu0 %v2016
    %v2018 = vpop.xlane.xlu0 %2017
    %v2019 = vsel %vm1130, %v1951, 0.0
    %2020 = vadd.xlane.f32.xlu0 %v2019
    %v2021 = vpop.xlane.xlu0 %2020
    %v2022 = vsel %vm1130, %v1952, 0.0
    %2023 = vadd.xlane.f32.xlu0 %v2022
    %v2024 = vpop.xlane.xlu0 %2023
    %v2025 = vsel %vm1130, %v1953, 0.0
    %2026 = vadd.xlane.f32.xlu0 %v2025
    %v2027 = vpop.xlane.xlu0 %2026
    %v2028 = vsel %vm1130, %v1954, 0.0
    %2029 = vadd.xlane.f32.xlu0 %v2028
    %v2030 = vpop.xlane.xlu0 %2029
    %v2031 = vsel %vm1130, %v1955, 0.0
    %2032 = vadd.xlane.f32.xlu0 %v2031
    %v2033 = vpop.xlane.xlu0 %2032
    %v2034 = vsel %vm1130, %v1956, 0.0
    %2035 = vadd.xlane.f32.xlu0 %v2034
    %v2036 = vpop.xlane.xlu0 %2035
    %v2037 = vsel %vm1130, %v1957, 0.0
    %2038 = vadd.xlane.f32.xlu0 %v2037
    %v2039 = vpop.xlane.xlu0 %2038
    %v2040 = vsel %vm1130, %v1958, 0.0
    %2041 = vadd.xlane.f32.xlu0 %v2040
    %v2042 = vpop.xlane.xlu0 %2041
    %v2043 = vsel %vm1130, %v1959, 0.0
    %2044 = vadd.xlane.f32.xlu0 %v2043
    %v2045 = vpop.xlane.xlu0 %2044
    %v2046 = vsel %vm1130, %v1960, 0.0
    %2047 = vadd.xlane.f32.xlu0 %v2046
    %v2048 = vpop.xlane.xlu0 %2047
    %v2049 = vsel %vm1130, %v1961, 0.0
    %2050 = vadd.xlane.f32.xlu0 %v2049
    %v2051 = vpop.xlane.xlu0 %2050
    %v2052 = vsel %vm1130, %v1962, 0.0
    %2053 = vadd.xlane.f32.xlu0 %v2052
    %v2054 = vpop.xlane.xlu0 %2053
    %v2055 = vsel %vm1130, %v1963, 0.0
    %2056 = vadd.xlane.f32.xlu0 %v2055
    %v2057 = vpop.xlane.xlu0 %2056
    %v2058 = vsel %vm1130, %v1964, 0.0
    %2059 = vadd.xlane.f32.xlu0 %v2058
    %v2060 = vpop.xlane.xlu0 %2059
    %v2061 = vsub.f32 0.0, %v1967
    %v2062 = vsub.f32 0.0, %v1970
    %v2063 = vsub.f32 0.0, %v1973
    %v2064 = vsub.f32 0.0, %v1976
    %v2065 = vsub.f32 0.0, %v1979
    %v2066 = vsub.f32 0.0, %v1982
    %v2067 = vsub.f32 0.0, %v1985
    %v2068 = vsub.f32 0.0, %v1988
    %v2069 = vsub.f32 0.0, %v1991
    %v2070 = vsub.f32 0.0, %v1994
    %v2071 = vsub.f32 0.0, %v1997
    %v2072 = vsub.f32 0.0, %v2000
    %v2073 = vsub.f32 0.0, %v2003
    %v2074 = vsub.f32 0.0, %v2006
    %v2075 = vsub.f32 0.0, %v2009
    %v2076 = vsub.f32 0.0, %v2012
    %v2077 = vsub.f32 0.0, %v2015
    %v2078 = vsub.f32 0.0, %v2018
    %v2079 = vsub.f32 0.0, %v2021
    %v2080 = vsub.f32 0.0, %v2024
    %v2081 = vsub.f32 0.0, %v2027
    %v2082 = vsub.f32 0.0, %v2030
    %v2083 = vsub.f32 0.0, %v2033
    %v2084 = vsub.f32 0.0, %v2036
    %v2085 = vsub.f32 0.0, %v2039
    %v2086 = vsub.f32 0.0, %v2042
    %v2087 = vsub.f32 0.0, %v2045
    %v2088 = vsub.f32 0.0, %v2048
    %v2089 = vsub.f32 0.0, %v2051
    %v2090 = vsub.f32 0.0, %v2054
    %v2091 = vsub.f32 0.0, %v2057
    %v2092 = vsub.f32 0.0, %v2060
    %vm2093 = vcmp.eq.s32.totalorder %v1612, 0
    %vm2094 = vcmp.eq.s32.totalorder %v1612, 1
    %vm2095 = vcmp.eq.s32.totalorder %v1612, 2
    %v2096 = vsel %vm2095, %v2061, 0.0
    %v2097 = vsel %vm2095, %v2062, 0.0
    %v2098 = vsel %vm2095, %v2063, 0.0
    %v2099 = vsel %vm2095, %v2064, 0.0
    %v2100 = vsel %vm2095, %v2065, 0.0
    %v2101 = vsel %vm2095, %v2066, 0.0
    %v2102 = vsel %vm2095, %v2067, 0.0
    %v2103 = vsel %vm2095, %v2068, 0.0
    %v2104 = vsel %vm2095, %v2069, 0.0
    %v2105 = vsel %vm2095, %v2070, 0.0
    %v2106 = vsel %vm2095, %v2071, 0.0
    %v2107 = vsel %vm2095, %v2072, 0.0
    %v2108 = vsel %vm2095, %v2073, 0.0
    %v2109 = vsel %vm2095, %v2074, 0.0
    %v2110 = vsel %vm2095, %v2075, 0.0
    %v2111 = vsel %vm2095, %v2076, 0.0
    %v2112 = vsel %vm2095, %v2077, 0.0
    %v2113 = vsel %vm2095, %v2078, 0.0
    %v2114 = vsel %vm2095, %v2079, 0.0
    %v2115 = vsel %vm2095, %v2080, 0.0
    %v2116 = vsel %vm2095, %v2081, 0.0
    %v2117 = vsel %vm2095, %v2082, 0.0
    %v2118 = vsel %vm2095, %v2083, 0.0
    %v2119 = vsel %vm2095, %v2084, 0.0
    %v2120 = vsel %vm2095, %v2085, 0.0
    %v2121 = vsel %vm2095, %v2086, 0.0
    %v2122 = vsel %vm2095, %v2087, 0.0
    %v2123 = vsel %vm2095, %v2088, 0.0
    %v2124 = vsel %vm2095, %v2089, 0.0
    %v2125 = vsel %vm2095, %v2090, 0.0
    %v2126 = vsel %vm2095, %v2091, 0.0
    %v2127 = vsel %vm2095, %v2092, 0.0
    %2129 = vset.pattern.permute.xlu0 8
    %2130 = vperm.xlu0 %2129, %v972
    %v2131 = vpop.permute.xlu0 %2130
    %2134 = vset.pattern.permute.xlu0 8
    %2135 = vperm.xlu0 %2134, %v977
    %v2136 = vpop.permute.xlu0 %2135
    %2139 = vset.pattern.permute.xlu0 8
    %2140 = vperm.xlu0 %2139, %v982
    %v2141 = vpop.permute.xlu0 %2140
    %2144 = vset.pattern.permute.xlu0 8
    %2145 = vperm.xlu0 %2144, %v987
    %v2146 = vpop.permute.xlu0 %2145
    %2149 = vset.pattern.permute.xlu0 8
    %2150 = vperm.xlu0 %2149, %v992
    %v2151 = vpop.permute.xlu0 %2150
    %2154 = vset.pattern.permute.xlu0 8
    %2155 = vperm.xlu0 %2154, %v997
    %v2156 = vpop.permute.xlu0 %2155
    %2159 = vset.pattern.permute.xlu0 8
    %2160 = vperm.xlu0 %2159, %v1002
    %v2161 = vpop.permute.xlu0 %2160
    %2164 = vset.pattern.permute.xlu0 8
    %2165 = vperm.xlu0 %2164, %v1007
    %v2166 = vpop.permute.xlu0 %2165
    %2169 = vset.pattern.permute.xlu0 8
    %2170 = vperm.xlu0 %2169, %v1012
    %v2171 = vpop.permute.xlu0 %2170
    %2174 = vset.pattern.permute.xlu0 8
    %2175 = vperm.xlu0 %2174, %v1017
    %v2176 = vpop.permute.xlu0 %2175
    %2179 = vset.pattern.permute.xlu0 8
    %2180 = vperm.xlu0 %2179, %v1022
    %v2181 = vpop.permute.xlu0 %2180
    %2184 = vset.pattern.permute.xlu0 8
    %2185 = vperm.xlu0 %2184, %v1027
    %v2186 = vpop.permute.xlu0 %2185
    %2189 = vset.pattern.permute.xlu0 8
    %2190 = vperm.xlu0 %2189, %v1032
    %v2191 = vpop.permute.xlu0 %2190
    %2194 = vset.pattern.permute.xlu0 8
    %2195 = vperm.xlu0 %2194, %v1037
    %v2196 = vpop.permute.xlu0 %2195
    %2199 = vset.pattern.permute.xlu0 8
    %2200 = vperm.xlu0 %2199, %v1042
    %v2201 = vpop.permute.xlu0 %2200
    %2204 = vset.pattern.permute.xlu0 8
    %2205 = vperm.xlu0 %2204, %v1047
    %v2206 = vpop.permute.xlu0 %2205
    %2209 = vset.pattern.permute.xlu0 8
    %2210 = vperm.xlu0 %2209, %v1052
    %v2211 = vpop.permute.xlu0 %2210
    %2214 = vset.pattern.permute.xlu0 8
    %2215 = vperm.xlu0 %2214, %v1057
    %v2216 = vpop.permute.xlu0 %2215
    %2219 = vset.pattern.permute.xlu0 8
    %2220 = vperm.xlu0 %2219, %v1062
    %v2221 = vpop.permute.xlu0 %2220
    %2224 = vset.pattern.permute.xlu0 8
    %2225 = vperm.xlu0 %2224, %v1067
    %v2226 = vpop.permute.xlu0 %2225
    %2229 = vset.pattern.permute.xlu0 8
    %2230 = vperm.xlu0 %2229, %v1072
    %v2231 = vpop.permute.xlu0 %2230
    %2234 = vset.pattern.permute.xlu0 8
    %2235 = vperm.xlu0 %2234, %v1077
    %v2236 = vpop.permute.xlu0 %2235
    %2239 = vset.pattern.permute.xlu0 8
    %2240 = vperm.xlu0 %2239, %v1082
    %v2241 = vpop.permute.xlu0 %2240
    %2244 = vset.pattern.permute.xlu0 8
    %2245 = vperm.xlu0 %2244, %v1087
    %v2246 = vpop.permute.xlu0 %2245
    %2249 = vset.pattern.permute.xlu0 8
    %2250 = vperm.xlu0 %2249, %v1092
    %v2251 = vpop.permute.xlu0 %2250
    %2254 = vset.pattern.permute.xlu0 8
    %2255 = vperm.xlu0 %2254, %v1097
    %v2256 = vpop.permute.xlu0 %2255
    %2259 = vset.pattern.permute.xlu0 8
    %2260 = vperm.xlu0 %2259, %v1102
    %v2261 = vpop.permute.xlu0 %2260
    %2264 = vset.pattern.permute.xlu0 8
    %2265 = vperm.xlu0 %2264, %v1107
    %v2266 = vpop.permute.xlu0 %2265
    %2269 = vset.pattern.permute.xlu0 8
    %2270 = vperm.xlu0 %2269, %v1112
    %v2271 = vpop.permute.xlu0 %2270
    %2274 = vset.pattern.permute.xlu0 8
    %2275 = vperm.xlu0 %2274, %v1117
    %v2276 = vpop.permute.xlu0 %2275
    %2279 = vset.pattern.permute.xlu0 8
    %2280 = vperm.xlu0 %2279, %v1122
    %v2281 = vpop.permute.xlu0 %2280
    %2284 = vset.pattern.permute.xlu0 8
    %2285 = vperm.xlu0 %2284, %v1127
    %v2286 = vpop.permute.xlu0 %2285
    %v2288 = vsel %vm2094, %v2131, %v2096
    %v2289 = vsel %vm2094, %v2136, %v2097
    %v2290 = vsel %vm2094, %v2141, %v2098
    %v2291 = vsel %vm2094, %v2146, %v2099
    %v2292 = vsel %vm2094, %v2151, %v2100
    %v2293 = vsel %vm2094, %v2156, %v2101
    %v2294 = vsel %vm2094, %v2161, %v2102
    %v2295 = vsel %vm2094, %v2166, %v2103
    %v2296 = vsel %vm2094, %v2171, %v2104
    %v2297 = vsel %vm2094, %v2176, %v2105
    %v2298 = vsel %vm2094, %v2181, %v2106
    %v2299 = vsel %vm2094, %v2186, %v2107
    %v2300 = vsel %vm2094, %v2191, %v2108
    %v2301 = vsel %vm2094, %v2196, %v2109
    %v2302 = vsel %vm2094, %v2201, %v2110
    %v2303 = vsel %vm2094, %v2206, %v2111
    %v2304 = vsel %vm2094, %v2211, %v2112
    %v2305 = vsel %vm2094, %v2216, %v2113
    %v2306 = vsel %vm2094, %v2221, %v2114
    %v2307 = vsel %vm2094, %v2226, %v2115
    %v2308 = vsel %vm2094, %v2231, %v2116
    %v2309 = vsel %vm2094, %v2236, %v2117
    %v2310 = vsel %vm2094, %v2241, %v2118
    %v2311 = vsel %vm2094, %v2246, %v2119
    %v2312 = vsel %vm2094, %v2251, %v2120
    %v2313 = vsel %vm2094, %v2256, %v2121
    %v2314 = vsel %vm2094, %v2261, %v2122
    %v2315 = vsel %vm2094, %v2266, %v2123
    %v2316 = vsel %vm2094, %v2271, %v2124
    %v2317 = vsel %vm2094, %v2276, %v2125
    %v2318 = vsel %vm2094, %v2281, %v2126
    %v2319 = vsel %vm2094, %v2286, %v2127
    %v2320 = vsel %vm2093, %v1839, %v2288
    %v2321 = vsel %vm2093, %v1842, %v2289
    %v2322 = vsel %vm2093, %v1845, %v2290
    %v2323 = vsel %vm2093, %v1848, %v2291
    %v2324 = vsel %vm2093, %v1851, %v2292
    %v2325 = vsel %vm2093, %v1854, %v2293
    %v2326 = vsel %vm2093, %v1857, %v2294
    %v2327 = vsel %vm2093, %v1860, %v2295
    %v2328 = vsel %vm2093, %v1863, %v2296
    %v2329 = vsel %vm2093, %v1866, %v2297
    %v2330 = vsel %vm2093, %v1869, %v2298
    %v2331 = vsel %vm2093, %v1872, %v2299
    %v2332 = vsel %vm2093, %v1875, %v2300
    %v2333 = vsel %vm2093, %v1878, %v2301
    %v2334 = vsel %vm2093, %v1881, %v2302
    %v2335 = vsel %vm2093, %v1884, %v2303
    %v2336 = vsel %vm2093, %v1887, %v2304
    %v2337 = vsel %vm2093, %v1890, %v2305
    %v2338 = vsel %vm2093, %v1893, %v2306
    %v2339 = vsel %vm2093, %v1896, %v2307
    %v2340 = vsel %vm2093, %v1899, %v2308
    %v2341 = vsel %vm2093, %v1902, %v2309
    %v2342 = vsel %vm2093, %v1905, %v2310
    %v2343 = vsel %vm2093, %v1908, %v2311
    %v2344 = vsel %vm2093, %v1911, %v2312
    %v2345 = vsel %vm2093, %v1914, %v2313
    %v2346 = vsel %vm2093, %v1917, %v2314
    %v2347 = vsel %vm2093, %v1920, %v2315
    %v2348 = vsel %vm2093, %v1923, %v2316
    %v2349 = vsel %vm2093, %v1926, %v2317
    %v2350 = vsel %vm2093, %v1929, %v2318
    %v2351 = vsel %vm2093, %v1932, %v2319
    %2352 = vst [vmem:[#allocation2] sm:$0xff] %v2320
    %2353 = vst [vmem:[#allocation2 + $0x8] sm:$0xff] %v2321
    %2354 = vst [vmem:[#allocation2 + $0x10] sm:$0xff] %v2322
    %2355 = vst [vmem:[#allocation2 + $0x18] sm:$0xff] %v2323
    %2356 = vst [vmem:[#allocation2 + $0x20] sm:$0xff] %v2324
    %2357 = vst [vmem:[#allocation2 + $0x28] sm:$0xff] %v2325
    %2358 = vst [vmem:[#allocation2 + $0x30] sm:$0xff] %v2326
    %2359 = vst [vmem:[#allocation2 + $0x38] sm:$0xff] %v2327
    %2360 = vst [vmem:[#allocation2 + $0x40] sm:$0xff] %v2328
    %2361 = vst [vmem:[#allocation2 + $0x48] sm:$0xff] %v2329
    %2362 = vst [vmem:[#allocation2 + $0x50] sm:$0xff] %v2330
    %2363 = vst [vmem:[#allocation2 + $0x58] sm:$0xff] %v2331
    %2364 = vst [vmem:[#allocation2 + $0x60] sm:$0xff] %v2332
    %2365 = vst [vmem:[#allocation2 + $0x68] sm:$0xff] %v2333
    %2366 = vst [vmem:[#allocation2 + $0x70] sm:$0xff] %v2334
    %2367 = vst [vmem:[#allocation2 + $0x78] sm:$0xff] %v2335
    %2368 = vst [vmem:[#allocation2 + $0x80] sm:$0xff] %v2336
    %2369 = vst [vmem:[#allocation2 + $0x88] sm:$0xff] %v2337
    %2370 = vst [vmem:[#allocation2 + $0x90] sm:$0xff] %v2338
    %2371 = vst [vmem:[#allocation2 + $0x98] sm:$0xff] %v2339
    %2372 = vst [vmem:[#allocation2 + $0xa0] sm:$0xff] %v2340
    %2373 = vst [vmem:[#allocation2 + $0xa8] sm:$0xff] %v2341
    %2374 = vst [vmem:[#allocation2 + $0xb0] sm:$0xff] %v2342
    %2375 = vst [vmem:[#allocation2 + $0xb8] sm:$0xff] %v2343
    %2376 = vst [vmem:[#allocation2 + $0xc0] sm:$0xff] %v2344
    %2377 = vst [vmem:[#allocation2 + $0xc8] sm:$0xff] %v2345
    %2378 = vst [vmem:[#allocation2 + $0xd0] sm:$0xff] %v2346
    %2379 = vst [vmem:[#allocation2 + $0xd8] sm:$0xff] %v2347
    %2380 = vst [vmem:[#allocation2 + $0xe0] sm:$0xff] %v2348
    %2381 = vst [vmem:[#allocation2 + $0xe8] sm:$0xff] %v2349
    %2382 = vst [vmem:[#allocation2 + $0xf0] sm:$0xff] %v2350
    %2383 = vst [vmem:[#allocation2 + $0xf8] sm:$0xff] %v2351
    // Predicated region
    $region34: #{tpu_custom_call.1} parent=1 // pred_check
      _
    $region35: #{tpu_custom_call.1} parent=1 // pred_check_branch
      %2385 = sbr.rel (0) target = $region37
    $region36: #{tpu_custom_call.1} parent=1 // pred_region
      %s2387 = ssub.s32 4096, 4096
      %2388 = vsyncadd [#allocation3], %s2387
      %s2389 = sshll.u32 [#allocation2], 4
      %s2390 = int_to_ptr.vmem [resolvable:$true] %s2389
      %2395 = dma.vmem_to_hbm [thread:$0]  %s2390, 4096, %s8, [#allocation3], 128, 128, 8
    $region37: #{tpu_custom_call.1} parent=1 // pred_fallthru
      _
    // Predicated region
    $region38: #{tpu_custom_call.1} parent=1 // pred_check
      _
    $region39: #{tpu_custom_call.1} parent=1 // pred_check_branch
      %2397 = sbr.rel (0) target = $region41
    $region40: #{tpu_custom_call.1} parent=1 // pred_region
      %2398 = dma.done [#allocation3], 4096
    $region41: #{tpu_custom_call.1} parent=1 // pred_fallthru
      _
    %2399 = vsyncpa [#allocation3], 1

</llo_original>
